<compile_context>
chip_gen: v7x
topology: tpu7x:2x2x1
jax: 0.10.0
libtpu: 0.0.40
codegen_flags: <defaults>
</compile_context>

<pallas_src>
import functools

import jax
import jax.numpy as jnp
from jax.experimental import pallas as pl
from jax.experimental.pallas import tpu as pltpu

F32 = jnp.float32
BF16 = jnp.bfloat16
LANES = 128
NUM_TIMESTEPS = 3  # AttentiveFP(num_timesteps=3) in the PyTorch module


# ----------------------------- elementwise helpers (f32, VPU/EUP) -----------------------------

def _leaky(x, slope=0.01):
    return jnp.where(x > 0, x, slope * x)


def _elu(x):
    return jnp.where(x > 0, x, jnp.exp(jnp.minimum(x, 0.0)) - 1.0)


def _silu(x):
    return x * jax.nn.sigmoid(x)


def _masked_softmax(pre, mask):
    """Row-wise softmax over axis=1 restricted to mask>0 (PyG segment softmax); all f32, exact div."""
    pm = jnp.where(mask > 0, pre, -1e30)
    mx = jnp.max(pm, axis=1, keepdims=True)
    ex = jnp.where(mask > 0, jnp.exp(pm - mx), 0.0)
    den = jnp.maximum(jnp.sum(ex, axis=1, keepdims=True), 1e-12)
    return ex / den


# ----------------------------- the single fused Pallas kernel -----------------------------

def _attfp_fused_kernel(x_ref, adj_ref, eflat_ref, mmask_ref, mfeat_ref,
                        wslab_ref, rslab_ref, o_ref, *,
                        meta_w, meta_r, hidden, n_nodes, n_layers):
    H = hidden
    N = n_nodes
    n_atom = n_layers[0] - 1
    n_fcm = n_layers[1]
    n_fc = n_layers[2]

    def W(name, full=False):
        """bf16 weight block from the packed slab (static offsets)."""
        off, r, c = meta_w[name]
        blk = wslab_ref[off:off + r, :]
        return blk if full else blk[:, :c]

    def R(name, full=False):
        """f32 bias / attention row from the packed slab."""
        off, _, c = meta_r[name]
        row = rslab_ref[off:off + 1, :]
        return row if full else row[:, :c]

    def mm(a, w):
        """bf16 MXU matmul, f32 accumulate (w already bf16 from the slab)."""
        return jnp.dot(a.astype(BF16), w, preferred_element_type=F32)

    def rowdot(v, m):
        """(1,H) x (M,H)^T -> (1,M) on the MXU (lane-dense result, no transpose relayout)."""
        return jax.lax.dot_general(v.astype(BF16), m.astype(BF16),
                                   (((1,), (1,)), ((), ())),
                                   preferred_element_type=F32)

    def gru_relu(inp, hid, tag):
        """torch.nn.GRUCell + ReLU, fused [r|z|n] gate slabs -> 2 matmuls instead of 6."""
        gi = mm(inp, W(tag + "_wi")) + R(tag + "_bi")                 # (M, 3H)
        gh = mm(hid, W(tag + "_wh")) + R(tag + "_bh")                 # (M, 3H)
        r = jax.nn.sigmoid(gi[:, 0 * H:1 * H] + gh[:, 0 * H:1 * H])
        z = jax.nn.sigmoid(gi[:, 1 * H:2 * H] + gh[:, 1 * H:2 * H])
        n = jnp.tanh(gi[:, 2 * H:3 * H] + r * gh[:, 2 * H:3 * H])
        return jnp.maximum((1.0 - z) * n + z * hid, 0.0)

    adj = adj_ref[...]                                                # (N, N)  0/1 f32
    mmask = mmask_ref[...]                                            # (Bp, N) 0/1 f32

    # ---- AttentiveFP: lin1 + leaky_relu ----
    h_node = _leaky(mm(x_ref[...], W("lin1")) + R("lin1_b"))          # (N, H)

    # ---- GATEConv: edge-conditioned attention over all (dst, src) pairs (no P/Q selectors) ----
    node_proj = mm(h_node, W("gate_node"))                            # (N, 2H+1) = [xW1 | xW2 | x.att_r]
    xw1 = node_proj[:, :H]
    xw2 = node_proj[:, H:2 * H]
    ai = node_proj[:, 2 * H:2 * H + 1]                                # (N, 1) : per-dst term
    eproj = _leaky(mm(eflat_ref[...], W("gate_edge")).reshape(N, N, H)
                   + xw1[None, :, :])                                 # (N, N, H): leaky(lin1([x_src|e]))
    aj = jnp.sum(eproj * R("gate_attl"), axis=-1)                     # (N, N) lane reduce (no matmul)
    att = _masked_softmax(_leaky(aj + ai), adj)                       # softmax over src per dst
    h = _elu(mm(att, xw2) + R("gate_bias"))
    h_node = gru_relu(h, h_node, "gru0")

    # ---- atom-level GATConv layers (heads=1, slope=0.01, no self-loops) ----
    for li in range(n_atom):
        ga = mm(h_node, W(f"atom{li}_w"))                             # (N, H+1) = [g | g.att_dst]
        g, a_dst = ga[:, :H], ga[:, H:H + 1]
        pre = _leaky(a_dst + rowdot(W(f"atom{li}_asrc"), g))          # (N, N)
        att = _masked_softmax(pre, adj)
        h = _elu(mm(att, g) + R(f"atom{li}_b"))
        h_node = gru_relu(h, h_node, f"agru{li}")

    # ---- molecule readout: global_add_pool + relu, then 3 GRU timesteps ----
    out = jnp.maximum(mm(mmask, h_node), 0.0)                         # (Bp, H)
    gs = mm(h_node, W("mol_w"))                                       # (N, H)  hoisted out of the loop
    s_row = rowdot(W("mol_asrc"), gs)                                 # (1, N)  hoisted out of the loop
    wadst = R("mol_wadst")                                            # (1, H)  = att_dst @ W^T (host fold)
    for _ in range(NUM_TIMESTEPS):
        a_dst = jnp.sum(out * wadst, axis=-1, keepdims=True)          # (Bp, 1) VPU reduce, no width-1 MXU
        att = _masked_softmax(_leaky(a_dst + s_row), mmask)           # (Bp, N)
        h = _elu(mm(att, gs) + R("mol_b"))
        out = gru_relu(h, out, "mgru")
    hg = mm(out, W("lin2")) + R("lin2_b")                             # (Bp, OUT_GC)

    # ---- molecular-descriptor MLP branch ----
    h_m = _silu(mm(mfeat_ref[...], W("fcm0")) + R("fcm0_b"))
    for i in range(1, n_fcm):
        h_m = _silu(mm(h_m, W(f"fcm{i}")) + R(f"fcm{i}_b"))

    # ---- fused head: concat([hg, h_m]) @ W0 expressed as a split matmul (no in-kernel concat) ----
    w0 = W("fc0")
    d1 = hg.shape[1]
    hh = _silu(mm(hg, w0[:d1, :]) + mm(h_m, w0[d1:, :]) + R("fc0_b"))
    for i in range(1, n_fc - 1):
        hh = _silu(mm(hh, W(f"fc{i}")) + R(f"fc{i}_b"))
    # final layer written lane-dense: its weight/bias blocks are zero-padded to 128 output lanes
    o_ref[...] = mm(hh, W(f"fc{n_fc - 1}", full=True)) + R(f"fc{n_fc - 1}_b", full=True)


# ----------------------------- parameters (torch-module-shaped) -----------------------------

def init_params(key, num_node_feats, num_edge_feats, n_mol_feats, dims, n_layers):
    keys = iter(jax.random.split(key, 256))

    def w(shape, scale=0.1):
        return scale * jax.random.normal(next(keys), shape, dtype=F32)

    H, OUT_GC = dims[0], dims[1]

    def gru():
        # fused [r|z|n] gate slabs (H, 3H): torch GRUCell weight_ih/_hh transposed + concatenated
        return dict(wi=w((H, 3 * H)), wh=w((H, 3 * H)),
                    bi=w((1, 3 * H), 0.01), bh=w((1, 3 * H), 0.01))

    p = {}
    p["lin1_w"] = w((num_node_feats, H)); p["lin1_b"] = w((1, H), 0.01)
    p["gate"] = dict(w1x=w((H, H)), w1e=w((num_edge_feats, H)), w2=w((H, H)),
                     attl=w((1, H)), attr=w((1, H)), bias=w((1, H), 0.01))
    p["gru0"] = gru()
    p["atom_convs"], p["atom_grus"] = [], []
    for _ in range(n_layers[0] - 1):
        p["atom_convs"].append(dict(w=w((H, H)), asrc=w((1, H)), adst=w((1, H)), bias=w((1, H), 0.01)))
        p["atom_grus"].append(gru())
    p["mol_conv"] = dict(w=w((H, H)), asrc=w((1, H)), adst=w((1, H)), bias=w((1, H), 0.01))
    p["mol_gru"] = gru()
    p["lin2_w"] = w((H, OUT_GC)); p["lin2_b"] = w((1, OUT_GC), 0.01)
    fcm = [dict(w=w((n_mol_feats, dims[0])), b=w((1, dims[0]), 0.01))]
    for _ in range(max(0, n_layers[1] - 2)):
        fcm.append(dict(w=w((dims[0], dims[0])), b=w((1, dims[0]), 0.01)))
    fcm.append(dict(w=w((dims[0], dims[1])), b=w((1, dims[1]), 0.01)))
    p["fc_m"] = fcm
    fc = [dict(w=w((dims[1] * 2, dims[2])), b=w((1, dims[2]), 0.01))]
    for _ in range(max(0, n_layers[2] - 3)):
        fc.append(dict(w=w((dims[2], dims[2])), b=w((1, dims[2]), 0.01)))
    fc.append(dict(w=w((dims[2], dims[3])), b=w((1, dims[3]), 0.01)))
    fc.append(dict(w=w((dims[3], dims[-1])), b=w((1, dims[-1]), 0.01)))
    p["fc"] = fc
    return p


# ----------------------------- host-side weight folding + slab packing -----------------------------

def _pack(named, dtype, row_align):
    """Pack (name, 2-D array) blocks into one (rows, 128) slab; returns (slab, {name: (off, rows, cols)})."""
    parts, offs, cur = [], {}, 0
    for name, arr in named:
        r, c = arr.shape
        assert c <= LANES
        r_pad = -(-r // row_align) * row_align
        blk = jnp.zeros((r_pad, LANES), dtype).at[:r, :c].set(arr.astype(dtype))
        parts.append(blk)
        offs[name] = (cur, r, c)
        cur += r_pad
    return jnp.concatenate(parts, axis=0), offs


def pack_params(p):
    wl, rl = [], []
    wl.append(("lin1", p["lin1_w"])); rl.append(("lin1_b", p["lin1_b"]))

    g = p["gate"]
    # one node projection yields [x@W1x | x@W2 | x@att_r^T]
    wl.append(("gate_node", jnp.concatenate([g["w1x"], g["w2"], g["attr"].T], axis=1)))
    wl.append(("gate_edge", g["w1e"]))
    rl.append(("gate_attl", g["attl"])); rl.append(("gate_bias", g["bias"]))

    def add_gru(tag, gr):
        wl.append((tag + "_wi", gr["wi"])); wl.append((tag + "_wh", gr["wh"]))
        rl.append((tag + "_bi", gr["bi"])); rl.append((tag + "_bh", gr["bh"]))

    add_gru("gru0", p["gru0"])

    for i, (cv, gr) in enumerate(zip(p["atom_convs"], p["atom_grus"])):
        # one projection yields [g | g.att_dst]
        wl.append((f"atom{i}_w", jnp.concatenate([cv["w"], jnp.dot(cv["w"], cv["adst"].T)], axis=1)))
        wl.append((f"atom{i}_asrc", cv["asrc"]))
        rl.append((f"atom{i}_b", cv["bias"]))
        add_gru(f"agru{i}", gr)

    mc = p["mol_conv"]
    wl.append(("mol_w", mc["w"])); wl.append(("mol_asrc", mc["asrc"]))
    rl.append(("mol_b", mc["bias"]))
    rl.append(("mol_wadst", jnp.dot(mc["adst"], mc["w"].T)))   # alpha_dst = out . (att_dst @ W^T)
    add_gru("mgru", p["mol_gru"])

    wl.append(("lin2", p["lin2_w"])); rl.append(("lin2_b", p["lin2_b"]))
    for i, layer in enumerate(p["fc_m"]):
        wl.append((f"fcm{i}", layer["w"])); rl.append((f"fcm{i}_b", layer["b"]))
    for i, layer in enumerate(p["fc"]):
        wl.append((f"fc{i}", layer["w"])); rl.append((f"fc{i}_b", layer["b"]))

    wslab, meta_w = _pack(wl, BF16, row_align=16)   # bf16 MXU-operand slab, 16-row aligned blocks
    rslab, meta_r = _pack(rl, F32, row_align=1)     # one f32 row per bias / attention vector
    return wslab, rslab, meta_w, meta_r


# ----------------------------- forward (one pallas_call; glue only densifies layout) -----------------------------

def attfp_forward(wslab, rslab, meta_w, meta_r, x, adj, eattr, mol_mask, mol_feats, dims, n_layers):
    n = x.shape[0]
    b = mol_mask.shape[0]
    fe = eattr.shape[-1]
    out_dim = dims[-1]
    bp = max(8, -(-b // 8) * 8)                        # sublane-pad the molecule axis (dense output tile)

    eflat = eattr.reshape(n * n, fe).astype(BF16)      # row dst*N+src; bf16 MXU operand
    xb = x.astype(BF16)
    mmask_p = jnp.zeros((bp, n), F32).at[:b, :].set(mol_mask)
    mfeat_p = jnp.zeros((bp, mol_feats.shape[1]), F32).at[:b, :].set(mol_feats)

    kernel = functools.partial(_attfp_fused_kernel, meta_w=meta_w, meta_r=meta_r,
                               hidden=dims[0], n_nodes=n, n_layers=tuple(n_layers))
    out = pl.pallas_call(
        kernel,
        out_shape=jax.ShapeDtypeStruct((bp, LANES), F32),   # lane-dense (Bp,128) store
        in_specs=[pl.BlockSpec(memory_space=pltpu.MemorySpace.VMEM)] * 7,
        out_specs=pl.BlockSpec(memory_space=pltpu.MemorySpace.VMEM),
    )(xb, adj, eflat, mmask_p, mfeat_p, wslab, rslab)
    return out[:b, :out_dim]


# ----------------------------- main -----------------------------

if __name__ == "__main__":
    key = jax.random.PRNGKey(0)
    num_node_feats, num_edge_feats, n_mol_feats = 8, 4, 16
    dims = (32, 32, 32, 16, 1)
    n_layers = (2, 2, 4)
    B, nodes_per_mol = 2, 8
    N = B * nodes_per_mol

    k_param, k_x, k_e, k_m = jax.random.split(key, 4)
    params = init_params(k_param, num_node_feats, num_edge_feats, n_mol_feats, dims, n_layers)
    wslab, rslab, meta_w, meta_r = pack_params(params)

    x = jax.random.normal(k_x, (N, num_node_feats), dtype=F32)
    # bidirectional ring graph per molecule
    edges = []
    for m in range(B):
        base = m * nodes_per_mol
        for kk in range(nodes_per_mol):
            a, c = base + kk, base + (kk + 1) % nodes_per_mol
            edges.append((a, c))
            edges.append((c, a))
    edge_index = jnp.asarray(edges, dtype=jnp.int32).T               # (2, E) = [src; dst]
    edge_attr = jax.random.normal(k_e, (edge_index.shape[1], num_edge_feats), dtype=F32)
    batch = jnp.repeat(jnp.arange(B, dtype=jnp.int32), nodes_per_mol)
    mol_feats = jax.random.normal(k_m, (B, n_mol_feats), dtype=F32)

    # densify the graph (layout glue; all message-passing math runs inside the fused kernel)
    src, dst = edge_index[0], edge_index[1]
    adj = jnp.zeros((N, N), F32).at[dst, src].set(1.0)
    eattr = jnp.zeros((N, N, num_edge_feats), F32).at[dst, src].set(edge_attr)
    mol_mask = (batch[None, :] == jnp.arange(B)[:, None]).astype(F32)

    out = attfp_forward(wslab, rslab, meta_w, meta_r, x, adj, eattr, mol_mask, mol_feats, dims, n_layers)
    out = jax.block_until_ready(out)
    assert out.shape == (B, dims[-1]) and out.dtype == F32
    print("KERNEL_OK")
</pallas_src>

<mosaic_0001>
module attributes {stable_mosaic.version = 11 : i64} {
  func.func @_attfp_fused_kernel(%arg0: memref<16x8xbf16, #tpu.memory_space<vmem>>, %arg1: memref<16x16xf32, #tpu.memory_space<vmem>>, %arg2: memref<256x4xbf16, #tpu.memory_space<vmem>>, %arg3: memref<8x16xf32, #tpu.memory_space<vmem>>, %arg4: memref<8x16xf32, #tpu.memory_space<vmem>>, %arg5: memref<576x128xbf16, #tpu.memory_space<vmem>>, %arg6: memref<19x128xf32, #tpu.memory_space<vmem>>, %arg7: memref<8x128xf32, #tpu.memory_space<vmem>>) attributes {dimension_semantics = [], scalar_prefetch = 0 : i64, scratch_operands = 0 : i64, tpu.core_type = #tpu.core_type<tc>} {
    %c0 = arith.constant 0 : index
    %c0_0 = arith.constant 0 : index
    %0 = vector.load %arg1[%c0, %c0_0] : memref<16x16xf32, #tpu.memory_space<vmem>>, vector<16x16xf32>
    %c0_1 = arith.constant 0 : index
    %c0_2 = arith.constant 0 : index
    %1 = vector.load %arg3[%c0_1, %c0_2] : memref<8x16xf32, #tpu.memory_space<vmem>>, vector<8x16xf32>
    %c0_3 = arith.constant 0 : index
    %c0_4 = arith.constant 0 : index
    %2 = vector.load %arg0[%c0_3, %c0_4] : memref<16x8xbf16, #tpu.memory_space<vmem>>, vector<16x8xbf16>
    %c0_5 = arith.constant 0 : index
    %c0_6 = arith.constant 0 : index
    %3 = vector.load %arg5[%c0_5, %c0_6] : memref<576x128xbf16, #tpu.memory_space<vmem>>, vector<8x128xbf16>
    %4 = vector.extract_strided_slice %3 {offsets = [0, 0], sizes = [8, 32], strides = [1, 1]} : vector<8x128xbf16> to vector<8x32xbf16>
    %cst = arith.constant dense<0.000000e+00> : vector<16x32xf32>
    %5 = tpu.matmul %2, %4, %cst {dimension_numbers = #tpu.dot_dimension_numbers<[1], [0], [0], [1], [0, 0, 1, 1], [], []>} : vector<16x8xbf16>, vector<8x32xbf16>, vector<16x32xf32> -> vector<16x32xf32>
    %c0_7 = arith.constant 0 : index
    %c0_8 = arith.constant 0 : index
    %6 = vector.load %arg6[%c0_7, %c0_8] : memref<19x128xf32, #tpu.memory_space<vmem>>, vector<1x128xf32>
    %7 = vector.extract_strided_slice %6 {offsets = [0, 0], sizes = [1, 32], strides = [1, 1]} : vector<1x128xf32> to vector<1x32xf32>
    %8 = vector.broadcast %7 : vector<1x32xf32> to vector<16x32xf32>
    %9 = arith.addf %5, %8 : vector<16x32xf32>
    %cst_9 = arith.constant 0.000000e+00 : f32
    %10 = vector.broadcast %cst_9 : f32 to vector<16x32xf32>
    %11 = arith.cmpf ogt, %9, %10 : vector<16x32xf32>
    %cst_10 = arith.constant 0.00999999977 : f32
    %12 = vector.broadcast %cst_10 : f32 to vector<16x32xf32>
    %13 = arith.mulf %12, %9 : vector<16x32xf32>
    %14 = arith.select %11, %9, %13 : vector<16x32xi1>, vector<16x32xf32>
    %c16 = arith.constant 16 : index
    %c0_11 = arith.constant 0 : index
    %15 = vector.load %arg5[%c16, %c0_11] : memref<576x128xbf16, #tpu.memory_space<vmem>>, vector<32x128xbf16>
    %16 = vector.extract_strided_slice %15 {offsets = [0, 0], sizes = [32, 65], strides = [1, 1]} : vector<32x128xbf16> to vector<32x65xbf16>
    %17 = arith.truncf %14 : vector<16x32xf32> to vector<16x32xbf16>
    %cst_12 = arith.constant dense<0.000000e+00> : vector<16x65xf32>
    %18 = tpu.matmul %17, %16, %cst_12 {dimension_numbers = #tpu.dot_dimension_numbers<[1], [0], [0], [1], [0, 0, 1, 1], [], []>} : vector<16x32xbf16>, vector<32x65xbf16>, vector<16x65xf32> -> vector<16x65xf32>
    %19 = vector.extract_strided_slice %18 {offsets = [0, 0], sizes = [16, 32], strides = [1, 1]} : vector<16x65xf32> to vector<16x32xf32>
    %20 = vector.extract_strided_slice %18 {offsets = [0, 32], sizes = [16, 32], strides = [1, 1]} : vector<16x65xf32> to vector<16x32xf32>
    %21 = vector.extract_strided_slice %18 {offsets = [0, 64], sizes = [16, 1], strides = [1, 1]} : vector<16x65xf32> to vector<16x1xf32>
    %c0_13 = arith.constant 0 : index
    %c0_14 = arith.constant 0 : index
    %22 = vector.load %arg2[%c0_13, %c0_14] : memref<256x4xbf16, #tpu.memory_space<vmem>>, vector<256x4xbf16>
    %c48 = arith.constant 48 : index
    %c0_15 = arith.constant 0 : index
    %23 = vector.load %arg5[%c48, %c0_15] : memref<576x128xbf16, #tpu.memory_space<vmem>>, vector<4x128xbf16>
    %24 = vector.extract_strided_slice %23 {offsets = [0, 0], sizes = [4, 32], strides = [1, 1]} : vector<4x128xbf16> to vector<4x32xbf16>
    %cst_16 = arith.constant dense<0.000000e+00> : vector<256x32xf32>
    %25 = tpu.matmul %22, %24, %cst_16 {dimension_numbers = #tpu.dot_dimension_numbers<[1], [0], [0], [1], [0, 0, 1, 1], [], []>} : vector<256x4xbf16>, vector<4x32xbf16>, vector<256x32xf32> -> vector<256x32xf32>
    %26 = vector.shape_cast %25 : vector<256x32xf32> to vector<16x16x32xf32>
    %27 = vector.shape_cast %19 : vector<16x32xf32> to vector<1x16x32xf32>
    %28 = vector.broadcast %27 : vector<1x16x32xf32> to vector<16x16x32xf32>
    %29 = arith.addf %26, %28 : vector<16x16x32xf32>
    %cst_17 = arith.constant 0.000000e+00 : f32
    %30 = vector.broadcast %cst_17 : f32 to vector<16x16x32xf32>
    %31 = arith.cmpf ogt, %29, %30 : vector<16x16x32xf32>
    %cst_18 = arith.constant 0.00999999977 : f32
    %32 = vector.broadcast %cst_18 : f32 to vector<16x16x32xf32>
    %33 = arith.mulf %32, %29 : vector<16x16x32xf32>
    %34 = arith.select %31, %29, %33 : vector<16x16x32xi1>, vector<16x16x32xf32>
    %c1 = arith.constant 1 : index
    %c0_19 = arith.constant 0 : index
    %35 = vector.load %arg6[%c1, %c0_19] : memref<19x128xf32, #tpu.memory_space<vmem>>, vector<1x128xf32>
    %36 = vector.extract_strided_slice %35 {offsets = [0, 0], sizes = [1, 32], strides = [1, 1]} : vector<1x128xf32> to vector<1x32xf32>
    %37 = vector.shape_cast %36 : vector<1x32xf32> to vector<1x1x32xf32>
    %38 = vector.broadcast %37 : vector<1x1x32xf32> to vector<16x16x32xf32>
    %39 = arith.mulf %34, %38 : vector<16x16x32xf32>
    %cst_20 = arith.constant dense<0.000000e+00> : vector<16x16xf32>
    %40 = vector.multi_reduction <add>, %39, %cst_20 [2] : vector<16x16x32xf32> to vector<16x16xf32>
    %41 = vector.broadcast %21 : vector<16x1xf32> to vector<16x16xf32>
    %42 = arith.addf %40, %41 : vector<16x16xf32>
    %cst_21 = arith.constant 0.000000e+00 : f32
    %43 = vector.broadcast %cst_21 : f32 to vector<16x16xf32>
    %44 = arith.cmpf ogt, %42, %43 : vector<16x16xf32>
    %cst_22 = arith.constant 0.00999999977 : f32
    %45 = vector.broadcast %cst_22 : f32 to vector<16x16xf32>
    %46 = arith.mulf %45, %42 : vector<16x16xf32>
    %47 = arith.select %44, %42, %46 : vector<16x16xi1>, vector<16x16xf32>
    %cst_23 = arith.constant 0.000000e+00 : f32
    %48 = vector.broadcast %cst_23 : f32 to vector<16x16xf32>
    %49 = arith.cmpf ogt, %0, %48 : vector<16x16xf32>
    %cst_24 = arith.constant -1.000000e+30 : f32
    %50 = vector.broadcast %cst_24 : f32 to vector<16x16xf32>
    %51 = arith.select %49, %47, %50 : vector<16x16xi1>, vector<16x16xf32>
    %cst_25 = arith.constant dense<0xFF800000> : vector<16xf32>
    %52 = vector.multi_reduction <maximumf>, %51, %cst_25 [1] : vector<16x16xf32> to vector<16xf32>
    %53 = vector.shape_cast %52 : vector<16xf32> to vector<16x1xf32>
    %cst_26 = arith.constant 0.000000e+00 : f32
    %54 = vector.broadcast %cst_26 : f32 to vector<16x16xf32>
    %55 = arith.cmpf ogt, %0, %54 : vector<16x16xf32>
    %56 = vector.broadcast %53 : vector<16x1xf32> to vector<16x16xf32>
    %57 = arith.subf %51, %56 : vector<16x16xf32>
    %58 = math.exp %57 : vector<16x16xf32>
    %cst_27 = arith.constant 0.000000e+00 : f32
    %59 = vector.broadcast %cst_27 : f32 to vector<16x16xf32>
    %60 = arith.select %55, %58, %59 : vector<16x16xi1>, vector<16x16xf32>
    %cst_28 = arith.constant dense<0.000000e+00> : vector<16xf32>
    %61 = vector.multi_reduction <add>, %60, %cst_28 [1] : vector<16x16xf32> to vector<16xf32>
    %62 = vector.shape_cast %61 : vector<16xf32> to vector<16x1xf32>
    %cst_29 = arith.constant 9.99999996E-13 : f32
    %63 = vector.broadcast %cst_29 : f32 to vector<16x1xf32>
    %64 = arith.maximumf %62, %63 : vector<16x1xf32>
    %65 = vector.broadcast %64 : vector<16x1xf32> to vector<16x16xf32>
    %66 = arith.divf %60, %65 : vector<16x16xf32>
    %67 = arith.truncf %66 : vector<16x16xf32> to vector<16x16xbf16>
    %cst_30 = arith.constant dense<0.000000e+00> : vector<16x32xf32>
    %68 = tpu.matmul %67, %20, %cst_30 {dimension_numbers = #tpu.dot_dimension_numbers<[1], [0], [0], [1], [0, 0, 1, 1], [], []>} : vector<16x16xbf16>, vector<16x32xf32>, vector<16x32xf32> -> vector<16x32xf32>
    %c2 = arith.constant 2 : index
    %c0_31 = arith.constant 0 : index
    %69 = vector.load %arg6[%c2, %c0_31] : memref<19x128xf32, #tpu.memory_space<vmem>>, vector<1x128xf32>
    %70 = vector.extract_strided_slice %69 {offsets = [0, 0], sizes = [1, 32], strides = [1, 1]} : vector<1x128xf32> to vector<1x32xf32>
    %71 = vector.broadcast %70 : vector<1x32xf32> to vector<16x32xf32>
    %72 = arith.addf %68, %71 : vector<16x32xf32>
    %cst_32 = arith.constant 0.000000e+00 : f32
    %73 = vector.broadcast %cst_32 : f32 to vector<16x32xf32>
    %74 = arith.cmpf ogt, %72, %73 : vector<16x32xf32>
    %cst_33 = arith.constant 0.000000e+00 : f32
    %75 = vector.broadcast %cst_33 : f32 to vector<16x32xf32>
    %76 = arith.minimumf %72, %75 : vector<16x32xf32>
    %77 = math.exp %76 : vector<16x32xf32>
    %cst_34 = arith.constant 1.000000e+00 : f32
    %78 = vector.broadcast %cst_34 : f32 to vector<16x32xf32>
    %79 = arith.subf %77, %78 : vector<16x32xf32>
    %80 = arith.select %74, %72, %79 : vector<16x32xi1>, vector<16x32xf32>
    %c64 = arith.constant 64 : index
    %c0_35 = arith.constant 0 : index
    %81 = vector.load %arg5[%c64, %c0_35] : memref<576x128xbf16, #tpu.memory_space<vmem>>, vector<32x128xbf16>
    %82 = vector.extract_strided_slice %81 {offsets = [0, 0], sizes = [32, 96], strides = [1, 1]} : vector<32x128xbf16> to vector<32x96xbf16>
    %83 = arith.truncf %80 : vector<16x32xf32> to vector<16x32xbf16>
    %cst_36 = arith.constant dense<0.000000e+00> : vector<16x96xf32>
    %84 = tpu.matmul %83, %82, %cst_36 {dimension_numbers = #tpu.dot_dimension_numbers<[1], [0], [0], [1], [0, 0, 1, 1], [], []>} : vector<16x32xbf16>, vector<32x96xbf16>, vector<16x96xf32> -> vector<16x96xf32>
    %c3 = arith.constant 3 : index
    %c0_37 = arith.constant 0 : index
    %85 = vector.load %arg6[%c3, %c0_37] : memref<19x128xf32, #tpu.memory_space<vmem>>, vector<1x128xf32>
    %86 = vector.extract_strided_slice %85 {offsets = [0, 0], sizes = [1, 96], strides = [1, 1]} : vector<1x128xf32> to vector<1x96xf32>
    %87 = vector.broadcast %86 : vector<1x96xf32> to vector<16x96xf32>
    %88 = arith.addf %84, %87 : vector<16x96xf32>
    %c96 = arith.constant 96 : index
    %c0_38 = arith.constant 0 : index
    %89 = vector.load %arg5[%c96, %c0_38] : memref<576x128xbf16, #tpu.memory_space<vmem>>, vector<32x128xbf16>
    %90 = vector.extract_strided_slice %89 {offsets = [0, 0], sizes = [32, 96], strides = [1, 1]} : vector<32x128xbf16> to vector<32x96xbf16>
    %91 = arith.truncf %14 : vector<16x32xf32> to vector<16x32xbf16>
    %cst_39 = arith.constant dense<0.000000e+00> : vector<16x96xf32>
    %92 = tpu.matmul %91, %90, %cst_39 {dimension_numbers = #tpu.dot_dimension_numbers<[1], [0], [0], [1], [0, 0, 1, 1], [], []>} : vector<16x32xbf16>, vector<32x96xbf16>, vector<16x96xf32> -> vector<16x96xf32>
    %c4 = arith.constant 4 : index
    %c0_40 = arith.constant 0 : index
    %93 = vector.load %arg6[%c4, %c0_40] : memref<19x128xf32, #tpu.memory_space<vmem>>, vector<1x128xf32>
    %94 = vector.extract_strided_slice %93 {offsets = [0, 0], sizes = [1, 96], strides = [1, 1]} : vector<1x128xf32> to vector<1x96xf32>
    %95 = vector.broadcast %94 : vector<1x96xf32> to vector<16x96xf32>
    %96 = arith.addf %92, %95 : vector<16x96xf32>
    %97 = vector.extract_strided_slice %88 {offsets = [0, 0], sizes = [16, 32], strides = [1, 1]} : vector<16x96xf32> to vector<16x32xf32>
    %98 = vector.extract_strided_slice %96 {offsets = [0, 0], sizes = [16, 32], strides = [1, 1]} : vector<16x96xf32> to vector<16x32xf32>
    %99 = arith.addf %97, %98 : vector<16x32xf32>
    %100 = arith.negf %99 : vector<16x32xf32>
    %101 = math.exp %100 : vector<16x32xf32>
    %cst_41 = arith.constant 1.000000e+00 : f32
    %102 = vector.broadcast %cst_41 : f32 to vector<16x32xf32>
    %103 = arith.addf %102, %101 : vector<16x32xf32>
    %104 = arith.divf %102, %103 : vector<16x32xf32>
    %105 = vector.extract_strided_slice %88 {offsets = [0, 32], sizes = [16, 32], strides = [1, 1]} : vector<16x96xf32> to vector<16x32xf32>
    %106 = vector.extract_strided_slice %96 {offsets = [0, 32], sizes = [16, 32], strides = [1, 1]} : vector<16x96xf32> to vector<16x32xf32>
    %107 = arith.addf %105, %106 : vector<16x32xf32>
    %108 = arith.negf %107 : vector<16x32xf32>
    %109 = math.exp %108 : vector<16x32xf32>
    %cst_42 = arith.constant 1.000000e+00 : f32
    %110 = vector.broadcast %cst_42 : f32 to vector<16x32xf32>
    %111 = arith.addf %110, %109 : vector<16x32xf32>
    %112 = arith.divf %110, %111 : vector<16x32xf32>
    %113 = vector.extract_strided_slice %88 {offsets = [0, 64], sizes = [16, 32], strides = [1, 1]} : vector<16x96xf32> to vector<16x32xf32>
    %114 = vector.extract_strided_slice %96 {offsets = [0, 64], sizes = [16, 32], strides = [1, 1]} : vector<16x96xf32> to vector<16x32xf32>
    %115 = arith.mulf %104, %114 : vector<16x32xf32>
    %116 = arith.addf %113, %115 : vector<16x32xf32>
    %117 = math.tanh %116 : vector<16x32xf32>
    %cst_43 = arith.constant 1.000000e+00 : f32
    %118 = vector.broadcast %cst_43 : f32 to vector<16x32xf32>
    %119 = arith.subf %118, %112 : vector<16x32xf32>
    %120 = arith.mulf %119, %117 : vector<16x32xf32>
    %121 = arith.mulf %112, %14 : vector<16x32xf32>
    %122 = arith.addf %120, %121 : vector<16x32xf32>
    %cst_44 = arith.constant 0.000000e+00 : f32
    %123 = vector.broadcast %cst_44 : f32 to vector<16x32xf32>
    %124 = arith.maximumf %122, %123 : vector<16x32xf32>
    %c128 = arith.constant 128 : index
    %c0_45 = arith.constant 0 : index
    %125 = vector.load %arg5[%c128, %c0_45] : memref<576x128xbf16, #tpu.memory_space<vmem>>, vector<32x128xbf16>
    %126 = vector.extract_strided_slice %125 {offsets = [0, 0], sizes = [32, 33], strides = [1, 1]} : vector<32x128xbf16> to vector<32x33xbf16>
    %127 = arith.truncf %124 : vector<16x32xf32> to vector<16x32xbf16>
    %cst_46 = arith.constant dense<0.000000e+00> : vector<16x33xf32>
    %128 = tpu.matmul %127, %126, %cst_46 {dimension_numbers = #tpu.dot_dimension_numbers<[1], [0], [0], [1], [0, 0, 1, 1], [], []>} : vector<16x32xbf16>, vector<32x33xbf16>, vector<16x33xf32> -> vector<16x33xf32>
    %129 = vector.extract_strided_slice %128 {offsets = [0, 0], sizes = [16, 32], strides = [1, 1]} : vector<16x33xf32> to vector<16x32xf32>
    %130 = vector.extract_strided_slice %128 {offsets = [0, 32], sizes = [16, 1], strides = [1, 1]} : vector<16x33xf32> to vector<16x1xf32>
    %c160 = arith.constant 160 : index
    %c0_47 = arith.constant 0 : index
    %131 = vector.load %arg5[%c160, %c0_47] : memref<576x128xbf16, #tpu.memory_space<vmem>>, vector<1x128xbf16>
    %132 = vector.extract_strided_slice %131 {offsets = [0, 0], sizes = [1, 32], strides = [1, 1]} : vector<1x128xbf16> to vector<1x32xbf16>
    %133 = arith.truncf %129 : vector<16x32xf32> to vector<16x32xbf16>
    %cst_48 = arith.constant dense<0.000000e+00> : vector<1x16xf32>
    %134 = tpu.matmul %132, %133, %cst_48 {dimension_numbers = #tpu.dot_dimension_numbers<[1], [1], [0], [0], [0, 0, 1, 0], [], []>} : vector<1x32xbf16>, vector<16x32xbf16>, vector<1x16xf32> -> vector<1x16xf32>
    %135 = vector.broadcast %130 : vector<16x1xf32> to vector<16x16xf32>
    %136 = vector.broadcast %134 : vector<1x16xf32> to vector<16x16xf32>
    %137 = arith.addf %135, %136 : vector<16x16xf32>
    %cst_49 = arith.constant 0.000000e+00 : f32
    %138 = vector.broadcast %cst_49 : f32 to vector<16x16xf32>
    %139 = arith.cmpf ogt, %137, %138 : vector<16x16xf32>
    %cst_50 = arith.constant 0.00999999977 : f32
    %140 = vector.broadcast %cst_50 : f32 to vector<16x16xf32>
    %141 = arith.mulf %140, %137 : vector<16x16xf32>
    %142 = arith.select %139, %137, %141 : vector<16x16xi1>, vector<16x16xf32>
    %cst_51 = arith.constant 0.000000e+00 : f32
    %143 = vector.broadcast %cst_51 : f32 to vector<16x16xf32>
    %144 = arith.cmpf ogt, %0, %143 : vector<16x16xf32>
    %cst_52 = arith.constant -1.000000e+30 : f32
    %145 = vector.broadcast %cst_52 : f32 to vector<16x16xf32>
    %146 = arith.select %144, %142, %145 : vector<16x16xi1>, vector<16x16xf32>
    %cst_53 = arith.constant dense<0xFF800000> : vector<16xf32>
    %147 = vector.multi_reduction <maximumf>, %146, %cst_53 [1] : vector<16x16xf32> to vector<16xf32>
    %148 = vector.shape_cast %147 : vector<16xf32> to vector<16x1xf32>
    %cst_54 = arith.constant 0.000000e+00 : f32
    %149 = vector.broadcast %cst_54 : f32 to vector<16x16xf32>
    %150 = arith.cmpf ogt, %0, %149 : vector<16x16xf32>
    %151 = vector.broadcast %148 : vector<16x1xf32> to vector<16x16xf32>
    %152 = arith.subf %146, %151 : vector<16x16xf32>
    %153 = math.exp %152 : vector<16x16xf32>
    %cst_55 = arith.constant 0.000000e+00 : f32
    %154 = vector.broadcast %cst_55 : f32 to vector<16x16xf32>
    %155 = arith.select %150, %153, %154 : vector<16x16xi1>, vector<16x16xf32>
    %cst_56 = arith.constant dense<0.000000e+00> : vector<16xf32>
    %156 = vector.multi_reduction <add>, %155, %cst_56 [1] : vector<16x16xf32> to vector<16xf32>
    %157 = vector.shape_cast %156 : vector<16xf32> to vector<16x1xf32>
    %cst_57 = arith.constant 9.99999996E-13 : f32
    %158 = vector.broadcast %cst_57 : f32 to vector<16x1xf32>
    %159 = arith.maximumf %157, %158 : vector<16x1xf32>
    %160 = vector.broadcast %159 : vector<16x1xf32> to vector<16x16xf32>
    %161 = arith.divf %155, %160 : vector<16x16xf32>
    %162 = arith.truncf %161 : vector<16x16xf32> to vector<16x16xbf16>
    %cst_58 = arith.constant dense<0.000000e+00> : vector<16x32xf32>
    %163 = tpu.matmul %162, %129, %cst_58 {dimension_numbers = #tpu.dot_dimension_numbers<[1], [0], [0], [1], [0, 0, 1, 1], [], []>} : vector<16x16xbf16>, vector<16x32xf32>, vector<16x32xf32> -> vector<16x32xf32>
    %c5 = arith.constant 5 : index
    %c0_59 = arith.constant 0 : index
    %164 = vector.load %arg6[%c5, %c0_59] : memref<19x128xf32, #tpu.memory_space<vmem>>, vector<1x128xf32>
    %165 = vector.extract_strided_slice %164 {offsets = [0, 0], sizes = [1, 32], strides = [1, 1]} : vector<1x128xf32> to vector<1x32xf32>
    %166 = vector.broadcast %165 : vector<1x32xf32> to vector<16x32xf32>
    %167 = arith.addf %163, %166 : vector<16x32xf32>
    %cst_60 = arith.constant 0.000000e+00 : f32
    %168 = vector.broadcast %cst_60 : f32 to vector<16x32xf32>
    %169 = arith.cmpf ogt, %167, %168 : vector<16x32xf32>
    %cst_61 = arith.constant 0.000000e+00 : f32
    %170 = vector.broadcast %cst_61 : f32 to vector<16x32xf32>
    %171 = arith.minimumf %167, %170 : vector<16x32xf32>
    %172 = math.exp %171 : vector<16x32xf32>
    %cst_62 = arith.constant 1.000000e+00 : f32
    %173 = vector.broadcast %cst_62 : f32 to vector<16x32xf32>
    %174 = arith.subf %172, %173 : vector<16x32xf32>
    %175 = arith.select %169, %167, %174 : vector<16x32xi1>, vector<16x32xf32>
    %c176 = arith.constant 176 : index
    %c0_63 = arith.constant 0 : index
    %176 = vector.load %arg5[%c176, %c0_63] : memref<576x128xbf16, #tpu.memory_space<vmem>>, vector<32x128xbf16>
    %177 = vector.extract_strided_slice %176 {offsets = [0, 0], sizes = [32, 96], strides = [1, 1]} : vector<32x128xbf16> to vector<32x96xbf16>
    %178 = arith.truncf %175 : vector<16x32xf32> to vector<16x32xbf16>
    %cst_64 = arith.constant dense<0.000000e+00> : vector<16x96xf32>
    %179 = tpu.matmul %178, %177, %cst_64 {dimension_numbers = #tpu.dot_dimension_numbers<[1], [0], [0], [1], [0, 0, 1, 1], [], []>} : vector<16x32xbf16>, vector<32x96xbf16>, vector<16x96xf32> -> vector<16x96xf32>
    %c6 = arith.constant 6 : index
    %c0_65 = arith.constant 0 : index
    %180 = vector.load %arg6[%c6, %c0_65] : memref<19x128xf32, #tpu.memory_space<vmem>>, vector<1x128xf32>
    %181 = vector.extract_strided_slice %180 {offsets = [0, 0], sizes = [1, 96], strides = [1, 1]} : vector<1x128xf32> to vector<1x96xf32>
    %182 = vector.broadcast %181 : vector<1x96xf32> to vector<16x96xf32>
    %183 = arith.addf %179, %182 : vector<16x96xf32>
    %c208 = arith.constant 208 : index
    %c0_66 = arith.constant 0 : index
    %184 = vector.load %arg5[%c208, %c0_66] : memref<576x128xbf16, #tpu.memory_space<vmem>>, vector<32x128xbf16>
    %185 = vector.extract_strided_slice %184 {offsets = [0, 0], sizes = [32, 96], strides = [1, 1]} : vector<32x128xbf16> to vector<32x96xbf16>
    %186 = arith.truncf %124 : vector<16x32xf32> to vector<16x32xbf16>
    %cst_67 = arith.constant dense<0.000000e+00> : vector<16x96xf32>
    %187 = tpu.matmul %186, %185, %cst_67 {dimension_numbers = #tpu.dot_dimension_numbers<[1], [0], [0], [1], [0, 0, 1, 1], [], []>} : vector<16x32xbf16>, vector<32x96xbf16>, vector<16x96xf32> -> vector<16x96xf32>
    %c7 = arith.constant 7 : index
    %c0_68 = arith.constant 0 : index
    %188 = vector.load %arg6[%c7, %c0_68] : memref<19x128xf32, #tpu.memory_space<vmem>>, vector<1x128xf32>
    %189 = vector.extract_strided_slice %188 {offsets = [0, 0], sizes = [1, 96], strides = [1, 1]} : vector<1x128xf32> to vector<1x96xf32>
    %190 = vector.broadcast %189 : vector<1x96xf32> to vector<16x96xf32>
    %191 = arith.addf %187, %190 : vector<16x96xf32>
    %192 = vector.extract_strided_slice %183 {offsets = [0, 0], sizes = [16, 32], strides = [1, 1]} : vector<16x96xf32> to vector<16x32xf32>
    %193 = vector.extract_strided_slice %191 {offsets = [0, 0], sizes = [16, 32], strides = [1, 1]} : vector<16x96xf32> to vector<16x32xf32>
    %194 = arith.addf %192, %193 : vector<16x32xf32>
    %195 = arith.negf %194 : vector<16x32xf32>
    %196 = math.exp %195 : vector<16x32xf32>
    %cst_69 = arith.constant 1.000000e+00 : f32
    %197 = vector.broadcast %cst_69 : f32 to vector<16x32xf32>
    %198 = arith.addf %197, %196 : vector<16x32xf32>
    %199 = arith.divf %197, %198 : vector<16x32xf32>
    %200 = vector.extract_strided_slice %183 {offsets = [0, 32], sizes = [16, 32], strides = [1, 1]} : vector<16x96xf32> to vector<16x32xf32>
    %201 = vector.extract_strided_slice %191 {offsets = [0, 32], sizes = [16, 32], strides = [1, 1]} : vector<16x96xf32> to vector<16x32xf32>
    %202 = arith.addf %200, %201 : vector<16x32xf32>
    %203 = arith.negf %202 : vector<16x32xf32>
    %204 = math.exp %203 : vector<16x32xf32>
    %cst_70 = arith.constant 1.000000e+00 : f32
    %205 = vector.broadcast %cst_70 : f32 to vector<16x32xf32>
    %206 = arith.addf %205, %204 : vector<16x32xf32>
    %207 = arith.divf %205, %206 : vector<16x32xf32>
    %208 = vector.extract_strided_slice %183 {offsets = [0, 64], sizes = [16, 32], strides = [1, 1]} : vector<16x96xf32> to vector<16x32xf32>
    %209 = vector.extract_strided_slice %191 {offsets = [0, 64], sizes = [16, 32], strides = [1, 1]} : vector<16x96xf32> to vector<16x32xf32>
    %210 = arith.mulf %199, %209 : vector<16x32xf32>
    %211 = arith.addf %208, %210 : vector<16x32xf32>
    %212 = math.tanh %211 : vector<16x32xf32>
    %cst_71 = arith.constant 1.000000e+00 : f32
    %213 = vector.broadcast %cst_71 : f32 to vector<16x32xf32>
    %214 = arith.subf %213, %207 : vector<16x32xf32>
    %215 = arith.mulf %214, %212 : vector<16x32xf32>
    %216 = arith.mulf %207, %124 : vector<16x32xf32>
    %217 = arith.addf %215, %216 : vector<16x32xf32>
    %cst_72 = arith.constant 0.000000e+00 : f32
    %218 = vector.broadcast %cst_72 : f32 to vector<16x32xf32>
    %219 = arith.maximumf %217, %218 : vector<16x32xf32>
    %220 = arith.truncf %1 : vector<8x16xf32> to vector<8x16xbf16>
    %cst_73 = arith.constant dense<0.000000e+00> : vector<8x32xf32>
    %221 = tpu.matmul %220, %219, %cst_73 {dimension_numbers = #tpu.dot_dimension_numbers<[1], [0], [0], [1], [0, 0, 1, 1], [], []>} : vector<8x16xbf16>, vector<16x32xf32>, vector<8x32xf32> -> vector<8x32xf32>
    %cst_74 = arith.constant 0.000000e+00 : f32
    %222 = vector.broadcast %cst_74 : f32 to vector<8x32xf32>
    %223 = arith.maximumf %221, %222 : vector<8x32xf32>
    %c240 = arith.constant 240 : index
    %c0_75 = arith.constant 0 : index
    %224 = vector.load %arg5[%c240, %c0_75] : memref<576x128xbf16, #tpu.memory_space<vmem>>, vector<32x128xbf16>
    %225 = vector.extract_strided_slice %224 {offsets = [0, 0], sizes = [32, 32], strides = [1, 1]} : vector<32x128xbf16> to vector<32x32xbf16>
    %226 = arith.truncf %219 : vector<16x32xf32> to vector<16x32xbf16>
    %cst_76 = arith.constant dense<0.000000e+00> : vector<16x32xf32>
    %227 = tpu.matmul %226, %225, %cst_76 {dimension_numbers = #tpu.dot_dimension_numbers<[1], [0], [0], [1], [0, 0, 1, 1], [], []>} : vector<16x32xbf16>, vector<32x32xbf16>, vector<16x32xf32> -> vector<16x32xf32>
    %c272 = arith.constant 272 : index
    %c0_77 = arith.constant 0 : index
    %228 = vector.load %arg5[%c272, %c0_77] : memref<576x128xbf16, #tpu.memory_space<vmem>>, vector<1x128xbf16>
    %229 = vector.extract_strided_slice %228 {offsets = [0, 0], sizes = [1, 32], strides = [1, 1]} : vector<1x128xbf16> to vector<1x32xbf16>
    %230 = arith.truncf %227 : vector<16x32xf32> to vector<16x32xbf16>
    %cst_78 = arith.constant dense<0.000000e+00> : vector<1x16xf32>
    %231 = tpu.matmul %229, %230, %cst_78 {dimension_numbers = #tpu.dot_dimension_numbers<[1], [1], [0], [0], [0, 0, 1, 0], [], []>} : vector<1x32xbf16>, vector<16x32xbf16>, vector<1x16xf32> -> vector<1x16xf32>
    %c9 = arith.constant 9 : index
    %c0_79 = arith.constant 0 : index
    %232 = vector.load %arg6[%c9, %c0_79] : memref<19x128xf32, #tpu.memory_space<vmem>>, vector<1x128xf32>
    %233 = vector.extract_strided_slice %232 {offsets = [0, 0], sizes = [1, 32], strides = [1, 1]} : vector<1x128xf32> to vector<1x32xf32>
    %234 = vector.broadcast %233 : vector<1x32xf32> to vector<8x32xf32>
    %235 = arith.mulf %223, %234 : vector<8x32xf32>
    %cst_80 = arith.constant dense<0.000000e+00> : vector<8xf32>
    %236 = vector.multi_reduction <add>, %235, %cst_80 [1] : vector<8x32xf32> to vector<8xf32>
    %237 = vector.shape_cast %236 : vector<8xf32> to vector<8x1xf32>
    %238 = vector.broadcast %237 : vector<8x1xf32> to vector<8x16xf32>
    %239 = vector.broadcast %231 : vector<1x16xf32> to vector<8x16xf32>
    %240 = arith.addf %238, %239 : vector<8x16xf32>
    %cst_81 = arith.constant 0.000000e+00 : f32
    %241 = vector.broadcast %cst_81 : f32 to vector<8x16xf32>
    %242 = arith.cmpf ogt, %240, %241 : vector<8x16xf32>
    %cst_82 = arith.constant 0.00999999977 : f32
    %243 = vector.broadcast %cst_82 : f32 to vector<8x16xf32>
    %244 = arith.mulf %243, %240 : vector<8x16xf32>
    %245 = arith.select %242, %240, %244 : vector<8x16xi1>, vector<8x16xf32>
    %cst_83 = arith.constant 0.000000e+00 : f32
    %246 = vector.broadcast %cst_83 : f32 to vector<8x16xf32>
    %247 = arith.cmpf ogt, %1, %246 : vector<8x16xf32>
    %cst_84 = arith.constant -1.000000e+30 : f32
    %248 = vector.broadcast %cst_84 : f32 to vector<8x16xf32>
    %249 = arith.select %247, %245, %248 : vector<8x16xi1>, vector<8x16xf32>
    %cst_85 = arith.constant dense<0xFF800000> : vector<8xf32>
    %250 = vector.multi_reduction <maximumf>, %249, %cst_85 [1] : vector<8x16xf32> to vector<8xf32>
    %251 = vector.shape_cast %250 : vector<8xf32> to vector<8x1xf32>
    %cst_86 = arith.constant 0.000000e+00 : f32
    %252 = vector.broadcast %cst_86 : f32 to vector<8x16xf32>
    %253 = arith.cmpf ogt, %1, %252 : vector<8x16xf32>
    %254 = vector.broadcast %251 : vector<8x1xf32> to vector<8x16xf32>
    %255 = arith.subf %249, %254 : vector<8x16xf32>
    %256 = math.exp %255 : vector<8x16xf32>
    %cst_87 = arith.constant 0.000000e+00 : f32
    %257 = vector.broadcast %cst_87 : f32 to vector<8x16xf32>
    %258 = arith.select %253, %256, %257 : vector<8x16xi1>, vector<8x16xf32>
    %cst_88 = arith.constant dense<0.000000e+00> : vector<8xf32>
    %259 = vector.multi_reduction <add>, %258, %cst_88 [1] : vector<8x16xf32> to vector<8xf32>
    %260 = vector.shape_cast %259 : vector<8xf32> to vector<8x1xf32>
    %cst_89 = arith.constant 9.99999996E-13 : f32
    %261 = vector.broadcast %cst_89 : f32 to vector<8x1xf32>
    %262 = arith.maximumf %260, %261 : vector<8x1xf32>
    %263 = vector.broadcast %262 : vector<8x1xf32> to vector<8x16xf32>
    %264 = arith.divf %258, %263 : vector<8x16xf32>
    %265 = arith.truncf %264 : vector<8x16xf32> to vector<8x16xbf16>
    %cst_90 = arith.constant dense<0.000000e+00> : vector<8x32xf32>
    %266 = tpu.matmul %265, %227, %cst_90 {dimension_numbers = #tpu.dot_dimension_numbers<[1], [0], [0], [1], [0, 0, 1, 1], [], []>} : vector<8x16xbf16>, vector<16x32xf32>, vector<8x32xf32> -> vector<8x32xf32>
    %c8 = arith.constant 8 : index
    %c0_91 = arith.constant 0 : index
    %267 = vector.load %arg6[%c8, %c0_91] : memref<19x128xf32, #tpu.memory_space<vmem>>, vector<1x128xf32>
    %268 = vector.extract_strided_slice %267 {offsets = [0, 0], sizes = [1, 32], strides = [1, 1]} : vector<1x128xf32> to vector<1x32xf32>
    %269 = vector.broadcast %268 : vector<1x32xf32> to vector<8x32xf32>
    %270 = arith.addf %266, %269 : vector<8x32xf32>
    %cst_92 = arith.constant 0.000000e+00 : f32
    %271 = vector.broadcast %cst_92 : f32 to vector<8x32xf32>
    %272 = arith.cmpf ogt, %270, %271 : vector<8x32xf32>
    %cst_93 = arith.constant 0.000000e+00 : f32
    %273 = vector.broadcast %cst_93 : f32 to vector<8x32xf32>
    %274 = arith.minimumf %270, %273 : vector<8x32xf32>
    %275 = math.exp %274 : vector<8x32xf32>
    %cst_94 = arith.constant 1.000000e+00 : f32
    %276 = vector.broadcast %cst_94 : f32 to vector<8x32xf32>
    %277 = arith.subf %275, %276 : vector<8x32xf32>
    %278 = arith.select %272, %270, %277 : vector<8x32xi1>, vector<8x32xf32>
    %c288 = arith.constant 288 : index
    %c0_95 = arith.constant 0 : index
    %279 = vector.load %arg5[%c288, %c0_95] : memref<576x128xbf16, #tpu.memory_space<vmem>>, vector<32x128xbf16>
    %280 = vector.extract_strided_slice %279 {offsets = [0, 0], sizes = [32, 96], strides = [1, 1]} : vector<32x128xbf16> to vector<32x96xbf16>
    %281 = arith.truncf %278 : vector<8x32xf32> to vector<8x32xbf16>
    %cst_96 = arith.constant dense<0.000000e+00> : vector<8x96xf32>
    %282 = tpu.matmul %281, %280, %cst_96 {dimension_numbers = #tpu.dot_dimension_numbers<[1], [0], [0], [1], [0, 0, 1, 1], [], []>} : vector<8x32xbf16>, vector<32x96xbf16>, vector<8x96xf32> -> vector<8x96xf32>
    %c10 = arith.constant 10 : index
    %c0_97 = arith.constant 0 : index
    %283 = vector.load %arg6[%c10, %c0_97] : memref<19x128xf32, #tpu.memory_space<vmem>>, vector<1x128xf32>
    %284 = vector.extract_strided_slice %283 {offsets = [0, 0], sizes = [1, 96], strides = [1, 1]} : vector<1x128xf32> to vector<1x96xf32>
    %285 = vector.broadcast %284 : vector<1x96xf32> to vector<8x96xf32>
    %286 = arith.addf %282, %285 : vector<8x96xf32>
    %c320 = arith.constant 320 : index
    %c0_98 = arith.constant 0 : index
    %287 = vector.load %arg5[%c320, %c0_98] : memref<576x128xbf16, #tpu.memory_space<vmem>>, vector<32x128xbf16>
    %288 = vector.extract_strided_slice %287 {offsets = [0, 0], sizes = [32, 96], strides = [1, 1]} : vector<32x128xbf16> to vector<32x96xbf16>
    %289 = arith.truncf %223 : vector<8x32xf32> to vector<8x32xbf16>
    %cst_99 = arith.constant dense<0.000000e+00> : vector<8x96xf32>
    %290 = tpu.matmul %289, %288, %cst_99 {dimension_numbers = #tpu.dot_dimension_numbers<[1], [0], [0], [1], [0, 0, 1, 1], [], []>} : vector<8x32xbf16>, vector<32x96xbf16>, vector<8x96xf32> -> vector<8x96xf32>
    %c11 = arith.constant 11 : index
    %c0_100 = arith.constant 0 : index
    %291 = vector.load %arg6[%c11, %c0_100] : memref<19x128xf32, #tpu.memory_space<vmem>>, vector<1x128xf32>
    %292 = vector.extract_strided_slice %291 {offsets = [0, 0], sizes = [1, 96], strides = [1, 1]} : vector<1x128xf32> to vector<1x96xf32>
    %293 = vector.broadcast %292 : vector<1x96xf32> to vector<8x96xf32>
    %294 = arith.addf %290, %293 : vector<8x96xf32>
    %295 = vector.extract_strided_slice %286 {offsets = [0, 0], sizes = [8, 32], strides = [1, 1]} : vector<8x96xf32> to vector<8x32xf32>
    %296 = vector.extract_strided_slice %294 {offsets = [0, 0], sizes = [8, 32], strides = [1, 1]} : vector<8x96xf32> to vector<8x32xf32>
    %297 = arith.addf %295, %296 : vector<8x32xf32>
    %298 = arith.negf %297 : vector<8x32xf32>
    %299 = math.exp %298 : vector<8x32xf32>
    %cst_101 = arith.constant 1.000000e+00 : f32
    %300 = vector.broadcast %cst_101 : f32 to vector<8x32xf32>
    %301 = arith.addf %300, %299 : vector<8x32xf32>
    %302 = arith.divf %300, %301 : vector<8x32xf32>
    %303 = vector.extract_strided_slice %286 {offsets = [0, 32], sizes = [8, 32], strides = [1, 1]} : vector<8x96xf32> to vector<8x32xf32>
    %304 = vector.extract_strided_slice %294 {offsets = [0, 32], sizes = [8, 32], strides = [1, 1]} : vector<8x96xf32> to vector<8x32xf32>
    %305 = arith.addf %303, %304 : vector<8x32xf32>
    %306 = arith.negf %305 : vector<8x32xf32>
    %307 = math.exp %306 : vector<8x32xf32>
    %cst_102 = arith.constant 1.000000e+00 : f32
    %308 = vector.broadcast %cst_102 : f32 to vector<8x32xf32>
    %309 = arith.addf %308, %307 : vector<8x32xf32>
    %310 = arith.divf %308, %309 : vector<8x32xf32>
    %311 = vector.extract_strided_slice %286 {offsets = [0, 64], sizes = [8, 32], strides = [1, 1]} : vector<8x96xf32> to vector<8x32xf32>
    %312 = vector.extract_strided_slice %294 {offsets = [0, 64], sizes = [8, 32], strides = [1, 1]} : vector<8x96xf32> to vector<8x32xf32>
    %313 = arith.mulf %302, %312 : vector<8x32xf32>
    %314 = arith.addf %311, %313 : vector<8x32xf32>
    %315 = math.tanh %314 : vector<8x32xf32>
    %cst_103 = arith.constant 1.000000e+00 : f32
    %316 = vector.broadcast %cst_103 : f32 to vector<8x32xf32>
    %317 = arith.subf %316, %310 : vector<8x32xf32>
    %318 = arith.mulf %317, %315 : vector<8x32xf32>
    %319 = arith.mulf %310, %223 : vector<8x32xf32>
    %320 = arith.addf %318, %319 : vector<8x32xf32>
    %cst_104 = arith.constant 0.000000e+00 : f32
    %321 = vector.broadcast %cst_104 : f32 to vector<8x32xf32>
    %322 = arith.maximumf %320, %321 : vector<8x32xf32>
    %323 = vector.broadcast %233 : vector<1x32xf32> to vector<8x32xf32>
    %324 = arith.mulf %322, %323 : vector<8x32xf32>
    %cst_105 = arith.constant dense<0.000000e+00> : vector<8xf32>
    %325 = vector.multi_reduction <add>, %324, %cst_105 [1] : vector<8x32xf32> to vector<8xf32>
    %326 = vector.shape_cast %325 : vector<8xf32> to vector<8x1xf32>
    %327 = vector.broadcast %326 : vector<8x1xf32> to vector<8x16xf32>
    %328 = vector.broadcast %231 : vector<1x16xf32> to vector<8x16xf32>
    %329 = arith.addf %327, %328 : vector<8x16xf32>
    %cst_106 = arith.constant 0.000000e+00 : f32
    %330 = vector.broadcast %cst_106 : f32 to vector<8x16xf32>
    %331 = arith.cmpf ogt, %329, %330 : vector<8x16xf32>
    %cst_107 = arith.constant 0.00999999977 : f32
    %332 = vector.broadcast %cst_107 : f32 to vector<8x16xf32>
    %333 = arith.mulf %332, %329 : vector<8x16xf32>
    %334 = arith.select %331, %329, %333 : vector<8x16xi1>, vector<8x16xf32>
    %cst_108 = arith.constant 0.000000e+00 : f32
    %335 = vector.broadcast %cst_108 : f32 to vector<8x16xf32>
    %336 = arith.cmpf ogt, %1, %335 : vector<8x16xf32>
    %cst_109 = arith.constant -1.000000e+30 : f32
    %337 = vector.broadcast %cst_109 : f32 to vector<8x16xf32>
    %338 = arith.select %336, %334, %337 : vector<8x16xi1>, vector<8x16xf32>
    %cst_110 = arith.constant dense<0xFF800000> : vector<8xf32>
    %339 = vector.multi_reduction <maximumf>, %338, %cst_110 [1] : vector<8x16xf32> to vector<8xf32>
    %340 = vector.shape_cast %339 : vector<8xf32> to vector<8x1xf32>
    %cst_111 = arith.constant 0.000000e+00 : f32
    %341 = vector.broadcast %cst_111 : f32 to vector<8x16xf32>
    %342 = arith.cmpf ogt, %1, %341 : vector<8x16xf32>
    %343 = vector.broadcast %340 : vector<8x1xf32> to vector<8x16xf32>
    %344 = arith.subf %338, %343 : vector<8x16xf32>
    %345 = math.exp %344 : vector<8x16xf32>
    %cst_112 = arith.constant 0.000000e+00 : f32
    %346 = vector.broadcast %cst_112 : f32 to vector<8x16xf32>
    %347 = arith.select %342, %345, %346 : vector<8x16xi1>, vector<8x16xf32>
    %cst_113 = arith.constant dense<0.000000e+00> : vector<8xf32>
    %348 = vector.multi_reduction <add>, %347, %cst_113 [1] : vector<8x16xf32> to vector<8xf32>
    %349 = vector.shape_cast %348 : vector<8xf32> to vector<8x1xf32>
    %cst_114 = arith.constant 9.99999996E-13 : f32
    %350 = vector.broadcast %cst_114 : f32 to vector<8x1xf32>
    %351 = arith.maximumf %349, %350 : vector<8x1xf32>
    %352 = vector.broadcast %351 : vector<8x1xf32> to vector<8x16xf32>
    %353 = arith.divf %347, %352 : vector<8x16xf32>
    %354 = arith.truncf %353 : vector<8x16xf32> to vector<8x16xbf16>
    %cst_115 = arith.constant dense<0.000000e+00> : vector<8x32xf32>
    %355 = tpu.matmul %354, %227, %cst_115 {dimension_numbers = #tpu.dot_dimension_numbers<[1], [0], [0], [1], [0, 0, 1, 1], [], []>} : vector<8x16xbf16>, vector<16x32xf32>, vector<8x32xf32> -> vector<8x32xf32>
    %c8_116 = arith.constant 8 : index
    %c0_117 = arith.constant 0 : index
    %356 = vector.load %arg6[%c8_116, %c0_117] : memref<19x128xf32, #tpu.memory_space<vmem>>, vector<1x128xf32>
    %357 = vector.extract_strided_slice %356 {offsets = [0, 0], sizes = [1, 32], strides = [1, 1]} : vector<1x128xf32> to vector<1x32xf32>
    %358 = vector.broadcast %357 : vector<1x32xf32> to vector<8x32xf32>
    %359 = arith.addf %355, %358 : vector<8x32xf32>
    %cst_118 = arith.constant 0.000000e+00 : f32
    %360 = vector.broadcast %cst_118 : f32 to vector<8x32xf32>
    %361 = arith.cmpf ogt, %359, %360 : vector<8x32xf32>
    %cst_119 = arith.constant 0.000000e+00 : f32
    %362 = vector.broadcast %cst_119 : f32 to vector<8x32xf32>
    %363 = arith.minimumf %359, %362 : vector<8x32xf32>
    %364 = math.exp %363 : vector<8x32xf32>
    %cst_120 = arith.constant 1.000000e+00 : f32
    %365 = vector.broadcast %cst_120 : f32 to vector<8x32xf32>
    %366 = arith.subf %364, %365 : vector<8x32xf32>
    %367 = arith.select %361, %359, %366 : vector<8x32xi1>, vector<8x32xf32>
    %c288_121 = arith.constant 288 : index
    %c0_122 = arith.constant 0 : index
    %368 = vector.load %arg5[%c288_121, %c0_122] : memref<576x128xbf16, #tpu.memory_space<vmem>>, vector<32x128xbf16>
    %369 = vector.extract_strided_slice %368 {offsets = [0, 0], sizes = [32, 96], strides = [1, 1]} : vector<32x128xbf16> to vector<32x96xbf16>
    %370 = arith.truncf %367 : vector<8x32xf32> to vector<8x32xbf16>
    %cst_123 = arith.constant dense<0.000000e+00> : vector<8x96xf32>
    %371 = tpu.matmul %370, %369, %cst_123 {dimension_numbers = #tpu.dot_dimension_numbers<[1], [0], [0], [1], [0, 0, 1, 1], [], []>} : vector<8x32xbf16>, vector<32x96xbf16>, vector<8x96xf32> -> vector<8x96xf32>
    %c10_124 = arith.constant 10 : index
    %c0_125 = arith.constant 0 : index
    %372 = vector.load %arg6[%c10_124, %c0_125] : memref<19x128xf32, #tpu.memory_space<vmem>>, vector<1x128xf32>
    %373 = vector.extract_strided_slice %372 {offsets = [0, 0], sizes = [1, 96], strides = [1, 1]} : vector<1x128xf32> to vector<1x96xf32>
    %374 = vector.broadcast %373 : vector<1x96xf32> to vector<8x96xf32>
    %375 = arith.addf %371, %374 : vector<8x96xf32>
    %c320_126 = arith.constant 320 : index
    %c0_127 = arith.constant 0 : index
    %376 = vector.load %arg5[%c320_126, %c0_127] : memref<576x128xbf16, #tpu.memory_space<vmem>>, vector<32x128xbf16>
    %377 = vector.extract_strided_slice %376 {offsets = [0, 0], sizes = [32, 96], strides = [1, 1]} : vector<32x128xbf16> to vector<32x96xbf16>
    %378 = arith.truncf %322 : vector<8x32xf32> to vector<8x32xbf16>
    %cst_128 = arith.constant dense<0.000000e+00> : vector<8x96xf32>
    %379 = tpu.matmul %378, %377, %cst_128 {dimension_numbers = #tpu.dot_dimension_numbers<[1], [0], [0], [1], [0, 0, 1, 1], [], []>} : vector<8x32xbf16>, vector<32x96xbf16>, vector<8x96xf32> -> vector<8x96xf32>
    %c11_129 = arith.constant 11 : index
    %c0_130 = arith.constant 0 : index
    %380 = vector.load %arg6[%c11_129, %c0_130] : memref<19x128xf32, #tpu.memory_space<vmem>>, vector<1x128xf32>
    %381 = vector.extract_strided_slice %380 {offsets = [0, 0], sizes = [1, 96], strides = [1, 1]} : vector<1x128xf32> to vector<1x96xf32>
    %382 = vector.broadcast %381 : vector<1x96xf32> to vector<8x96xf32>
    %383 = arith.addf %379, %382 : vector<8x96xf32>
    %384 = vector.extract_strided_slice %375 {offsets = [0, 0], sizes = [8, 32], strides = [1, 1]} : vector<8x96xf32> to vector<8x32xf32>
    %385 = vector.extract_strided_slice %383 {offsets = [0, 0], sizes = [8, 32], strides = [1, 1]} : vector<8x96xf32> to vector<8x32xf32>
    %386 = arith.addf %384, %385 : vector<8x32xf32>
    %387 = arith.negf %386 : vector<8x32xf32>
    %388 = math.exp %387 : vector<8x32xf32>
    %cst_131 = arith.constant 1.000000e+00 : f32
    %389 = vector.broadcast %cst_131 : f32 to vector<8x32xf32>
    %390 = arith.addf %389, %388 : vector<8x32xf32>
    %391 = arith.divf %389, %390 : vector<8x32xf32>
    %392 = vector.extract_strided_slice %375 {offsets = [0, 32], sizes = [8, 32], strides = [1, 1]} : vector<8x96xf32> to vector<8x32xf32>
    %393 = vector.extract_strided_slice %383 {offsets = [0, 32], sizes = [8, 32], strides = [1, 1]} : vector<8x96xf32> to vector<8x32xf32>
    %394 = arith.addf %392, %393 : vector<8x32xf32>
    %395 = arith.negf %394 : vector<8x32xf32>
    %396 = math.exp %395 : vector<8x32xf32>
    %cst_132 = arith.constant 1.000000e+00 : f32
    %397 = vector.broadcast %cst_132 : f32 to vector<8x32xf32>
    %398 = arith.addf %397, %396 : vector<8x32xf32>
    %399 = arith.divf %397, %398 : vector<8x32xf32>
    %400 = vector.extract_strided_slice %375 {offsets = [0, 64], sizes = [8, 32], strides = [1, 1]} : vector<8x96xf32> to vector<8x32xf32>
    %401 = vector.extract_strided_slice %383 {offsets = [0, 64], sizes = [8, 32], strides = [1, 1]} : vector<8x96xf32> to vector<8x32xf32>
    %402 = arith.mulf %391, %401 : vector<8x32xf32>
    %403 = arith.addf %400, %402 : vector<8x32xf32>
    %404 = math.tanh %403 : vector<8x32xf32>
    %cst_133 = arith.constant 1.000000e+00 : f32
    %405 = vector.broadcast %cst_133 : f32 to vector<8x32xf32>
    %406 = arith.subf %405, %399 : vector<8x32xf32>
    %407 = arith.mulf %406, %404 : vector<8x32xf32>
    %408 = arith.mulf %399, %322 : vector<8x32xf32>
    %409 = arith.addf %407, %408 : vector<8x32xf32>
    %cst_134 = arith.constant 0.000000e+00 : f32
    %410 = vector.broadcast %cst_134 : f32 to vector<8x32xf32>
    %411 = arith.maximumf %409, %410 : vector<8x32xf32>
    %412 = vector.broadcast %233 : vector<1x32xf32> to vector<8x32xf32>
    %413 = arith.mulf %411, %412 : vector<8x32xf32>
    %cst_135 = arith.constant dense<0.000000e+00> : vector<8xf32>
    %414 = vector.multi_reduction <add>, %413, %cst_135 [1] : vector<8x32xf32> to vector<8xf32>
    %415 = vector.shape_cast %414 : vector<8xf32> to vector<8x1xf32>
    %416 = vector.broadcast %415 : vector<8x1xf32> to vector<8x16xf32>
    %417 = vector.broadcast %231 : vector<1x16xf32> to vector<8x16xf32>
    %418 = arith.addf %416, %417 : vector<8x16xf32>
    %cst_136 = arith.constant 0.000000e+00 : f32
    %419 = vector.broadcast %cst_136 : f32 to vector<8x16xf32>
    %420 = arith.cmpf ogt, %418, %419 : vector<8x16xf32>
    %cst_137 = arith.constant 0.00999999977 : f32
    %421 = vector.broadcast %cst_137 : f32 to vector<8x16xf32>
    %422 = arith.mulf %421, %418 : vector<8x16xf32>
    %423 = arith.select %420, %418, %422 : vector<8x16xi1>, vector<8x16xf32>
    %cst_138 = arith.constant 0.000000e+00 : f32
    %424 = vector.broadcast %cst_138 : f32 to vector<8x16xf32>
    %425 = arith.cmpf ogt, %1, %424 : vector<8x16xf32>
    %cst_139 = arith.constant -1.000000e+30 : f32
    %426 = vector.broadcast %cst_139 : f32 to vector<8x16xf32>
    %427 = arith.select %425, %423, %426 : vector<8x16xi1>, vector<8x16xf32>
    %cst_140 = arith.constant dense<0xFF800000> : vector<8xf32>
    %428 = vector.multi_reduction <maximumf>, %427, %cst_140 [1] : vector<8x16xf32> to vector<8xf32>
    %429 = vector.shape_cast %428 : vector<8xf32> to vector<8x1xf32>
    %cst_141 = arith.constant 0.000000e+00 : f32
    %430 = vector.broadcast %cst_141 : f32 to vector<8x16xf32>
    %431 = arith.cmpf ogt, %1, %430 : vector<8x16xf32>
    %432 = vector.broadcast %429 : vector<8x1xf32> to vector<8x16xf32>
    %433 = arith.subf %427, %432 : vector<8x16xf32>
    %434 = math.exp %433 : vector<8x16xf32>
    %cst_142 = arith.constant 0.000000e+00 : f32
    %435 = vector.broadcast %cst_142 : f32 to vector<8x16xf32>
    %436 = arith.select %431, %434, %435 : vector<8x16xi1>, vector<8x16xf32>
    %cst_143 = arith.constant dense<0.000000e+00> : vector<8xf32>
    %437 = vector.multi_reduction <add>, %436, %cst_143 [1] : vector<8x16xf32> to vector<8xf32>
    %438 = vector.shape_cast %437 : vector<8xf32> to vector<8x1xf32>
    %cst_144 = arith.constant 9.99999996E-13 : f32
    %439 = vector.broadcast %cst_144 : f32 to vector<8x1xf32>
    %440 = arith.maximumf %438, %439 : vector<8x1xf32>
    %441 = vector.broadcast %440 : vector<8x1xf32> to vector<8x16xf32>
    %442 = arith.divf %436, %441 : vector<8x16xf32>
    %443 = arith.truncf %442 : vector<8x16xf32> to vector<8x16xbf16>
    %cst_145 = arith.constant dense<0.000000e+00> : vector<8x32xf32>
    %444 = tpu.matmul %443, %227, %cst_145 {dimension_numbers = #tpu.dot_dimension_numbers<[1], [0], [0], [1], [0, 0, 1, 1], [], []>} : vector<8x16xbf16>, vector<16x32xf32>, vector<8x32xf32> -> vector<8x32xf32>
    %c8_146 = arith.constant 8 : index
    %c0_147 = arith.constant 0 : index
    %445 = vector.load %arg6[%c8_146, %c0_147] : memref<19x128xf32, #tpu.memory_space<vmem>>, vector<1x128xf32>
    %446 = vector.extract_strided_slice %445 {offsets = [0, 0], sizes = [1, 32], strides = [1, 1]} : vector<1x128xf32> to vector<1x32xf32>
    %447 = vector.broadcast %446 : vector<1x32xf32> to vector<8x32xf32>
    %448 = arith.addf %444, %447 : vector<8x32xf32>
    %cst_148 = arith.constant 0.000000e+00 : f32
    %449 = vector.broadcast %cst_148 : f32 to vector<8x32xf32>
    %450 = arith.cmpf ogt, %448, %449 : vector<8x32xf32>
    %cst_149 = arith.constant 0.000000e+00 : f32
    %451 = vector.broadcast %cst_149 : f32 to vector<8x32xf32>
    %452 = arith.minimumf %448, %451 : vector<8x32xf32>
    %453 = math.exp %452 : vector<8x32xf32>
    %cst_150 = arith.constant 1.000000e+00 : f32
    %454 = vector.broadcast %cst_150 : f32 to vector<8x32xf32>
    %455 = arith.subf %453, %454 : vector<8x32xf32>
    %456 = arith.select %450, %448, %455 : vector<8x32xi1>, vector<8x32xf32>
    %c288_151 = arith.constant 288 : index
    %c0_152 = arith.constant 0 : index
    %457 = vector.load %arg5[%c288_151, %c0_152] : memref<576x128xbf16, #tpu.memory_space<vmem>>, vector<32x128xbf16>
    %458 = vector.extract_strided_slice %457 {offsets = [0, 0], sizes = [32, 96], strides = [1, 1]} : vector<32x128xbf16> to vector<32x96xbf16>
    %459 = arith.truncf %456 : vector<8x32xf32> to vector<8x32xbf16>
    %cst_153 = arith.constant dense<0.000000e+00> : vector<8x96xf32>
    %460 = tpu.matmul %459, %458, %cst_153 {dimension_numbers = #tpu.dot_dimension_numbers<[1], [0], [0], [1], [0, 0, 1, 1], [], []>} : vector<8x32xbf16>, vector<32x96xbf16>, vector<8x96xf32> -> vector<8x96xf32>
    %c10_154 = arith.constant 10 : index
    %c0_155 = arith.constant 0 : index
    %461 = vector.load %arg6[%c10_154, %c0_155] : memref<19x128xf32, #tpu.memory_space<vmem>>, vector<1x128xf32>
    %462 = vector.extract_strided_slice %461 {offsets = [0, 0], sizes = [1, 96], strides = [1, 1]} : vector<1x128xf32> to vector<1x96xf32>
    %463 = vector.broadcast %462 : vector<1x96xf32> to vector<8x96xf32>
    %464 = arith.addf %460, %463 : vector<8x96xf32>
    %c320_156 = arith.constant 320 : index
    %c0_157 = arith.constant 0 : index
    %465 = vector.load %arg5[%c320_156, %c0_157] : memref<576x128xbf16, #tpu.memory_space<vmem>>, vector<32x128xbf16>
    %466 = vector.extract_strided_slice %465 {offsets = [0, 0], sizes = [32, 96], strides = [1, 1]} : vector<32x128xbf16> to vector<32x96xbf16>
    %467 = arith.truncf %411 : vector<8x32xf32> to vector<8x32xbf16>
    %cst_158 = arith.constant dense<0.000000e+00> : vector<8x96xf32>
    %468 = tpu.matmul %467, %466, %cst_158 {dimension_numbers = #tpu.dot_dimension_numbers<[1], [0], [0], [1], [0, 0, 1, 1], [], []>} : vector<8x32xbf16>, vector<32x96xbf16>, vector<8x96xf32> -> vector<8x96xf32>
    %c11_159 = arith.constant 11 : index
    %c0_160 = arith.constant 0 : index
    %469 = vector.load %arg6[%c11_159, %c0_160] : memref<19x128xf32, #tpu.memory_space<vmem>>, vector<1x128xf32>
    %470 = vector.extract_strided_slice %469 {offsets = [0, 0], sizes = [1, 96], strides = [1, 1]} : vector<1x128xf32> to vector<1x96xf32>
    %471 = vector.broadcast %470 : vector<1x96xf32> to vector<8x96xf32>
    %472 = arith.addf %468, %471 : vector<8x96xf32>
    %473 = vector.extract_strided_slice %464 {offsets = [0, 0], sizes = [8, 32], strides = [1, 1]} : vector<8x96xf32> to vector<8x32xf32>
    %474 = vector.extract_strided_slice %472 {offsets = [0, 0], sizes = [8, 32], strides = [1, 1]} : vector<8x96xf32> to vector<8x32xf32>
    %475 = arith.addf %473, %474 : vector<8x32xf32>
    %476 = arith.negf %475 : vector<8x32xf32>
    %477 = math.exp %476 : vector<8x32xf32>
    %cst_161 = arith.constant 1.000000e+00 : f32
    %478 = vector.broadcast %cst_161 : f32 to vector<8x32xf32>
    %479 = arith.addf %478, %477 : vector<8x32xf32>
    %480 = arith.divf %478, %479 : vector<8x32xf32>
    %481 = vector.extract_strided_slice %464 {offsets = [0, 32], sizes = [8, 32], strides = [1, 1]} : vector<8x96xf32> to vector<8x32xf32>
    %482 = vector.extract_strided_slice %472 {offsets = [0, 32], sizes = [8, 32], strides = [1, 1]} : vector<8x96xf32> to vector<8x32xf32>
    %483 = arith.addf %481, %482 : vector<8x32xf32>
    %484 = arith.negf %483 : vector<8x32xf32>
    %485 = math.exp %484 : vector<8x32xf32>
    %cst_162 = arith.constant 1.000000e+00 : f32
    %486 = vector.broadcast %cst_162 : f32 to vector<8x32xf32>
    %487 = arith.addf %486, %485 : vector<8x32xf32>
    %488 = arith.divf %486, %487 : vector<8x32xf32>
    %489 = vector.extract_strided_slice %464 {offsets = [0, 64], sizes = [8, 32], strides = [1, 1]} : vector<8x96xf32> to vector<8x32xf32>
    %490 = vector.extract_strided_slice %472 {offsets = [0, 64], sizes = [8, 32], strides = [1, 1]} : vector<8x96xf32> to vector<8x32xf32>
    %491 = arith.mulf %480, %490 : vector<8x32xf32>
    %492 = arith.addf %489, %491 : vector<8x32xf32>
    %493 = math.tanh %492 : vector<8x32xf32>
    %cst_163 = arith.constant 1.000000e+00 : f32
    %494 = vector.broadcast %cst_163 : f32 to vector<8x32xf32>
    %495 = arith.subf %494, %488 : vector<8x32xf32>
    %496 = arith.mulf %495, %493 : vector<8x32xf32>
    %497 = arith.mulf %488, %411 : vector<8x32xf32>
    %498 = arith.addf %496, %497 : vector<8x32xf32>
    %cst_164 = arith.constant 0.000000e+00 : f32
    %499 = vector.broadcast %cst_164 : f32 to vector<8x32xf32>
    %500 = arith.maximumf %498, %499 : vector<8x32xf32>
    %c352 = arith.constant 352 : index
    %c0_165 = arith.constant 0 : index
    %501 = vector.load %arg5[%c352, %c0_165] : memref<576x128xbf16, #tpu.memory_space<vmem>>, vector<32x128xbf16>
    %502 = vector.extract_strided_slice %501 {offsets = [0, 0], sizes = [32, 32], strides = [1, 1]} : vector<32x128xbf16> to vector<32x32xbf16>
    %503 = arith.truncf %500 : vector<8x32xf32> to vector<8x32xbf16>
    %cst_166 = arith.constant dense<0.000000e+00> : vector<8x32xf32>
    %504 = tpu.matmul %503, %502, %cst_166 {dimension_numbers = #tpu.dot_dimension_numbers<[1], [0], [0], [1], [0, 0, 1, 1], [], []>} : vector<8x32xbf16>, vector<32x32xbf16>, vector<8x32xf32> -> vector<8x32xf32>
    %c12 = arith.constant 12 : index
    %c0_167 = arith.constant 0 : index
    %505 = vector.load %arg6[%c12, %c0_167] : memref<19x128xf32, #tpu.memory_space<vmem>>, vector<1x128xf32>
    %506 = vector.extract_strided_slice %505 {offsets = [0, 0], sizes = [1, 32], strides = [1, 1]} : vector<1x128xf32> to vector<1x32xf32>
    %507 = vector.broadcast %506 : vector<1x32xf32> to vector<8x32xf32>
    %508 = arith.addf %504, %507 : vector<8x32xf32>
    %c0_168 = arith.constant 0 : index
    %c0_169 = arith.constant 0 : index
    %509 = vector.load %arg4[%c0_168, %c0_169] : memref<8x16xf32, #tpu.memory_space<vmem>>, vector<8x16xf32>
    %c384 = arith.constant 384 : index
    %c0_170 = arith.constant 0 : index
    %510 = vector.load %arg5[%c384, %c0_170] : memref<576x128xbf16, #tpu.memory_space<vmem>>, vector<16x128xbf16>
    %511 = vector.extract_strided_slice %510 {offsets = [0, 0], sizes = [16, 32], strides = [1, 1]} : vector<16x128xbf16> to vector<16x32xbf16>
    %512 = arith.truncf %509 : vector<8x16xf32> to vector<8x16xbf16>
    %cst_171 = arith.constant dense<0.000000e+00> : vector<8x32xf32>
    %513 = tpu.matmul %512, %511, %cst_171 {dimension_numbers = #tpu.dot_dimension_numbers<[1], [0], [0], [1], [0, 0, 1, 1], [], []>} : vector<8x16xbf16>, vector<16x32xbf16>, vector<8x32xf32> -> vector<8x32xf32>
    %c13 = arith.constant 13 : index
    %c0_172 = arith.constant 0 : index
    %514 = vector.load %arg6[%c13, %c0_172] : memref<19x128xf32, #tpu.memory_space<vmem>>, vector<1x128xf32>
    %515 = vector.extract_strided_slice %514 {offsets = [0, 0], sizes = [1, 32], strides = [1, 1]} : vector<1x128xf32> to vector<1x32xf32>
    %516 = vector.broadcast %515 : vector<1x32xf32> to vector<8x32xf32>
    %517 = arith.addf %513, %516 : vector<8x32xf32>
    %518 = arith.negf %517 : vector<8x32xf32>
    %519 = math.exp %518 : vector<8x32xf32>
    %cst_173 = arith.constant 1.000000e+00 : f32
    %520 = vector.broadcast %cst_173 : f32 to vector<8x32xf32>
    %521 = arith.addf %520, %519 : vector<8x32xf32>
    %522 = arith.divf %520, %521 : vector<8x32xf32>
    %523 = arith.mulf %517, %522 : vector<8x32xf32>
    %c400 = arith.constant 400 : index
    %c0_174 = arith.constant 0 : index
    %524 = vector.load %arg5[%c400, %c0_174] : memref<576x128xbf16, #tpu.memory_space<vmem>>, vector<32x128xbf16>
    %525 = vector.extract_strided_slice %524 {offsets = [0, 0], sizes = [32, 32], strides = [1, 1]} : vector<32x128xbf16> to vector<32x32xbf16>
    %526 = arith.truncf %523 : vector<8x32xf32> to vector<8x32xbf16>
    %cst_175 = arith.constant dense<0.000000e+00> : vector<8x32xf32>
    %527 = tpu.matmul %526, %525, %cst_175 {dimension_numbers = #tpu.dot_dimension_numbers<[1], [0], [0], [1], [0, 0, 1, 1], [], []>} : vector<8x32xbf16>, vector<32x32xbf16>, vector<8x32xf32> -> vector<8x32xf32>
    %c14 = arith.constant 14 : index
    %c0_176 = arith.constant 0 : index
    %528 = vector.load %arg6[%c14, %c0_176] : memref<19x128xf32, #tpu.memory_space<vmem>>, vector<1x128xf32>
    %529 = vector.extract_strided_slice %528 {offsets = [0, 0], sizes = [1, 32], strides = [1, 1]} : vector<1x128xf32> to vector<1x32xf32>
    %530 = vector.broadcast %529 : vector<1x32xf32> to vector<8x32xf32>
    %531 = arith.addf %527, %530 : vector<8x32xf32>
    %532 = arith.negf %531 : vector<8x32xf32>
    %533 = math.exp %532 : vector<8x32xf32>
    %cst_177 = arith.constant 1.000000e+00 : f32
    %534 = vector.broadcast %cst_177 : f32 to vector<8x32xf32>
    %535 = arith.addf %534, %533 : vector<8x32xf32>
    %536 = arith.divf %534, %535 : vector<8x32xf32>
    %537 = arith.mulf %531, %536 : vector<8x32xf32>
    %c432 = arith.constant 432 : index
    %c0_178 = arith.constant 0 : index
    %538 = vector.load %arg5[%c432, %c0_178] : memref<576x128xbf16, #tpu.memory_space<vmem>>, vector<64x128xbf16>
    %539 = vector.extract_strided_slice %538 {offsets = [0, 0], sizes = [64, 32], strides = [1, 1]} : vector<64x128xbf16> to vector<64x32xbf16>
    %540 = vector.extract_strided_slice %539 {offsets = [0, 0], sizes = [32, 32], strides = [1, 1]} : vector<64x32xbf16> to vector<32x32xbf16>
    %541 = arith.truncf %508 : vector<8x32xf32> to vector<8x32xbf16>
    %cst_179 = arith.constant dense<0.000000e+00> : vector<8x32xf32>
    %542 = tpu.matmul %541, %540, %cst_179 {dimension_numbers = #tpu.dot_dimension_numbers<[1], [0], [0], [1], [0, 0, 1, 1], [], []>} : vector<8x32xbf16>, vector<32x32xbf16>, vector<8x32xf32> -> vector<8x32xf32>
    %543 = vector.extract_strided_slice %539 {offsets = [32, 0], sizes = [32, 32], strides = [1, 1]} : vector<64x32xbf16> to vector<32x32xbf16>
    %544 = arith.truncf %537 : vector<8x32xf32> to vector<8x32xbf16>
    %cst_180 = arith.constant dense<0.000000e+00> : vector<8x32xf32>
    %545 = tpu.matmul %544, %543, %cst_180 {dimension_numbers = #tpu.dot_dimension_numbers<[1], [0], [0], [1], [0, 0, 1, 1], [], []>} : vector<8x32xbf16>, vector<32x32xbf16>, vector<8x32xf32> -> vector<8x32xf32>
    %546 = arith.addf %542, %545 : vector<8x32xf32>
    %c15 = arith.constant 15 : index
    %c0_181 = arith.constant 0 : index
    %547 = vector.load %arg6[%c15, %c0_181] : memref<19x128xf32, #tpu.memory_space<vmem>>, vector<1x128xf32>
    %548 = vector.extract_strided_slice %547 {offsets = [0, 0], sizes = [1, 32], strides = [1, 1]} : vector<1x128xf32> to vector<1x32xf32>
    %549 = vector.broadcast %548 : vector<1x32xf32> to vector<8x32xf32>
    %550 = arith.addf %546, %549 : vector<8x32xf32>
    %551 = arith.negf %550 : vector<8x32xf32>
    %552 = math.exp %551 : vector<8x32xf32>
    %cst_182 = arith.constant 1.000000e+00 : f32
    %553 = vector.broadcast %cst_182 : f32 to vector<8x32xf32>
    %554 = arith.addf %553, %552 : vector<8x32xf32>
    %555 = arith.divf %553, %554 : vector<8x32xf32>
    %556 = arith.mulf %550, %555 : vector<8x32xf32>
    %c496 = arith.constant 496 : index
    %c0_183 = arith.constant 0 : index
    %557 = vector.load %arg5[%c496, %c0_183] : memref<576x128xbf16, #tpu.memory_space<vmem>>, vector<32x128xbf16>
    %558 = vector.extract_strided_slice %557 {offsets = [0, 0], sizes = [32, 32], strides = [1, 1]} : vector<32x128xbf16> to vector<32x32xbf16>
    %559 = arith.truncf %556 : vector<8x32xf32> to vector<8x32xbf16>
    %cst_184 = arith.constant dense<0.000000e+00> : vector<8x32xf32>
    %560 = tpu.matmul %559, %558, %cst_184 {dimension_numbers = #tpu.dot_dimension_numbers<[1], [0], [0], [1], [0, 0, 1, 1], [], []>} : vector<8x32xbf16>, vector<32x32xbf16>, vector<8x32xf32> -> vector<8x32xf32>
    %c16_185 = arith.constant 16 : index
    %c0_186 = arith.constant 0 : index
    %561 = vector.load %arg6[%c16_185, %c0_186] : memref<19x128xf32, #tpu.memory_space<vmem>>, vector<1x128xf32>
    %562 = vector.extract_strided_slice %561 {offsets = [0, 0], sizes = [1, 32], strides = [1, 1]} : vector<1x128xf32> to vector<1x32xf32>
    %563 = vector.broadcast %562 : vector<1x32xf32> to vector<8x32xf32>
    %564 = arith.addf %560, %563 : vector<8x32xf32>
    %565 = arith.negf %564 : vector<8x32xf32>
    %566 = math.exp %565 : vector<8x32xf32>
    %cst_187 = arith.constant 1.000000e+00 : f32
    %567 = vector.broadcast %cst_187 : f32 to vector<8x32xf32>
    %568 = arith.addf %567, %566 : vector<8x32xf32>
    %569 = arith.divf %567, %568 : vector<8x32xf32>
    %570 = arith.mulf %564, %569 : vector<8x32xf32>
    %c528 = arith.constant 528 : index
    %c0_188 = arith.constant 0 : index
    %571 = vector.load %arg5[%c528, %c0_188] : memref<576x128xbf16, #tpu.memory_space<vmem>>, vector<32x128xbf16>
    %572 = vector.extract_strided_slice %571 {offsets = [0, 0], sizes = [32, 16], strides = [1, 1]} : vector<32x128xbf16> to vector<32x16xbf16>
    %573 = arith.truncf %570 : vector<8x32xf32> to vector<8x32xbf16>
    %cst_189 = arith.constant dense<0.000000e+00> : vector<8x16xf32>
    %574 = tpu.matmul %573, %572, %cst_189 {dimension_numbers = #tpu.dot_dimension_numbers<[1], [0], [0], [1], [0, 0, 1, 1], [], []>} : vector<8x32xbf16>, vector<32x16xbf16>, vector<8x16xf32> -> vector<8x16xf32>
    %c17 = arith.constant 17 : index
    %c0_190 = arith.constant 0 : index
    %575 = vector.load %arg6[%c17, %c0_190] : memref<19x128xf32, #tpu.memory_space<vmem>>, vector<1x128xf32>
    %576 = vector.extract_strided_slice %575 {offsets = [0, 0], sizes = [1, 16], strides = [1, 1]} : vector<1x128xf32> to vector<1x16xf32>
    %577 = vector.broadcast %576 : vector<1x16xf32> to vector<8x16xf32>
    %578 = arith.addf %574, %577 : vector<8x16xf32>
    %579 = arith.negf %578 : vector<8x16xf32>
    %580 = math.exp %579 : vector<8x16xf32>
    %cst_191 = arith.constant 1.000000e+00 : f32
    %581 = vector.broadcast %cst_191 : f32 to vector<8x16xf32>
    %582 = arith.addf %581, %580 : vector<8x16xf32>
    %583 = arith.divf %581, %582 : vector<8x16xf32>
    %584 = arith.mulf %578, %583 : vector<8x16xf32>
    %c560 = arith.constant 560 : index
    %c0_192 = arith.constant 0 : index
    %585 = vector.load %arg5[%c560, %c0_192] : memref<576x128xbf16, #tpu.memory_space<vmem>>, vector<16x128xbf16>
    %586 = arith.truncf %584 : vector<8x16xf32> to vector<8x16xbf16>
    %cst_193 = arith.constant dense<0.000000e+00> : vector<8x128xf32>
    %587 = tpu.matmul %586, %585, %cst_193 {dimension_numbers = #tpu.dot_dimension_numbers<[1], [0], [0], [1], [0, 0, 1, 1], [], []>} : vector<8x16xbf16>, vector<16x128xbf16>, vector<8x128xf32> -> vector<8x128xf32>
    %c18 = arith.constant 18 : index
    %c0_194 = arith.constant 0 : index
    %588 = vector.load %arg6[%c18, %c0_194] : memref<19x128xf32, #tpu.memory_space<vmem>>, vector<1x128xf32>
    %589 = vector.broadcast %588 : vector<1x128xf32> to vector<8x128xf32>
    %590 = arith.addf %587, %589 : vector<8x128xf32>
    %c0_195 = arith.constant 0 : index
    %c0_196 = arith.constant 0 : index
    %591 = vector.load %arg7[%c0_195, %c0_196] : memref<8x128xf32, #tpu.memory_space<vmem>>, vector<8x128xf32>
    tpu.vector_store %arg7[%c0_195, %c0_196], %590 {strides = array<i32>} : memref<8x128xf32, #tpu.memory_space<vmem>>, vector<8x128xf32>,
    return
  }
}

</mosaic_0001>

<llo_original>
// kernel: tpu_custom_call.1
$region0: #{tpu_custom_call.1}
  #allocation0 [shape = 'u32[]', space=smem, size = 0x4, offset = 0x4, fixed_abs, tag = 'smem constant byte address 0x4 - core index']
  #allocation1 [shape = 'u32[144,128]{1,0:T(1,128)}', space=vmem, size = 0x12000, scoped, tag = 'internal scratch']
  %s0 = inlined_call_operand.vmem [shape: bf16[16,8], index: 0, kind: input, shape index: {}]
  %s1 = inlined_call_operand.vmem [shape: f32[16,16], index: 1, kind: input, shape index: {}]
  %s2 = inlined_call_operand.vmem [shape: bf16[256,4], index: 2, kind: input, shape index: {}]
  %s3 = inlined_call_operand.vmem [shape: f32[8,16], index: 3, kind: input, shape index: {}]
  %s4 = inlined_call_operand.vmem [shape: f32[8,16], index: 4, kind: input, shape index: {}]
  %s5 = inlined_call_operand.hbm [shape: bf16[576,128], index: 5, kind: input, shape index: {}]
  %s6 = inlined_call_operand.vmem [shape: f32[19,128], index: 6, kind: input, shape index: {}]
  %s7 = inlined_call_operand.hbm [shape: f32[8,128], index: 7, kind: output, shape index: {}]
  %s8 = sld [smem:[#allocation0]]
  $region42: #{tpu_custom_call.1} parent=0
    _
  %s10 = ssub.s32 1, %s8
  %s11 = scalar_select 0, %s10, %s8
  $region1: #{tpu_custom_call.1} parent=0
    #allocation2 [shape = 'u8[147456]{0}', space=vmem, size = 0x24000, scoped, tag = 'input window, operand 5, single buffered']
    #allocation3 [shape = 's32[1]{0}', space=sflag, size = 0x4, scoped, tag = 'scoped memory for tpu_custom_call.1']
    #allocation4 [shape = 's32[1]{0}', space=sflag, size = 0x4, scoped, tag = 'scoped memory for tpu_custom_call.1']
    #allocation5 [shape = 'u8[4096]{0}', space=vmem, size = 0x1000, scoped, tag = 'output window, operand 0, single buffered']
    %12 = vsyncpa [#allocation3], 0
    %13 = vsyncpa [#allocation4], 0
    // Predicated region
    $region2: #{tpu_custom_call.1} parent=1 // pred_check
      _
    $region3: #{tpu_custom_call.1} parent=1 // pred_check_branch
      %15 = sbr.rel (0) target = $region5
    $region4: #{tpu_custom_call.1} parent=1 // pred_region
      _
    $region5: #{tpu_custom_call.1} parent=1 // pred_fallthru
      _
    // Predicated region
    $region6: #{tpu_custom_call.1} parent=1 // pred_check
      _
    $region7: #{tpu_custom_call.1} parent=1 // pred_check_branch
      %17 = sbr.rel (0) target = $region9
    $region8: #{tpu_custom_call.1} parent=1 // pred_region
      _
    $region9: #{tpu_custom_call.1} parent=1 // pred_fallthru
      _
    // Predicated region
    $region10: #{tpu_custom_call.1} parent=1 // pred_check
      _
    $region11: #{tpu_custom_call.1} parent=1 // pred_check_branch
      %19 = sbr.rel (0) target = $region13
    $region12: #{tpu_custom_call.1} parent=1 // pred_region
      _
    $region13: #{tpu_custom_call.1} parent=1 // pred_fallthru
      _
    // Predicated region
    $region14: #{tpu_custom_call.1} parent=1 // pred_check
      _
    $region15: #{tpu_custom_call.1} parent=1 // pred_check_branch
      %21 = sbr.rel (0) target = $region17
    $region16: #{tpu_custom_call.1} parent=1 // pred_region
      _
    $region17: #{tpu_custom_call.1} parent=1 // pred_fallthru
      _
    // Predicated region
    $region18: #{tpu_custom_call.1} parent=1 // pred_check
      _
    $region19: #{tpu_custom_call.1} parent=1 // pred_check_branch
      %23 = sbr.rel (0) target = $region21
    $region20: #{tpu_custom_call.1} parent=1 // pred_region
      _
    $region21: #{tpu_custom_call.1} parent=1 // pred_fallthru
      _
    // Predicated region
    $region22: #{tpu_custom_call.1} parent=1 // pred_check
      _
    $region23: #{tpu_custom_call.1} parent=1 // pred_check_branch
      %25 = sbr.rel (0) target = $region25
    $region24: #{tpu_custom_call.1} parent=1 // pred_region
      %s27 = ssub.s32 4608, 4608
      %28 = vsyncadd [#allocation3], %s27
      %s29 = sshll.u32 [#allocation2], 4
      %s30 = int_to_ptr.vmem [resolvable:$true] %s29
      %35 = dma.hbm_to_vmem [thread:$0]  %s5, 4608, %s30, [#allocation3], 64, 64, 4
    $region25: #{tpu_custom_call.1} parent=1 // pred_fallthru
      _
    // Predicated region
    $region26: #{tpu_custom_call.1} parent=1 // pred_check
      _
    $region27: #{tpu_custom_call.1} parent=1 // pred_check_branch
      %37 = sbr.rel (0) target = $region29
    $region28: #{tpu_custom_call.1} parent=1 // pred_region
      _
    $region29: #{tpu_custom_call.1} parent=1 // pred_fallthru
      _
    // Predicated region
    $region30: #{tpu_custom_call.1} parent=1 // pred_check
      _
    $region31: #{tpu_custom_call.1} parent=1 // pred_check_branch
      %39 = sbr.rel (0) target = $region33
    $region32: #{tpu_custom_call.1} parent=1 // pred_region
      %40 = dma.done [#allocation3], 4608
    $region33: #{tpu_custom_call.1} parent=1 // pred_fallthru
      _
    %v42 = vld [vmem:[%s1] sm:$0xff]
    %v43 = vld [vmem:[%s1 + $0x8] sm:$0xff]
    %v44 = vld [vmem:[%s3] sm:$0xff]
    %v45 = vld [vmem:[%s0] sm:$0xf]
    %v46 = vld [vmem:[%s0 + $0x4] sm:$0xf]
    %v47 = vld [vmem:[#allocation2] sm:$0xf]
    %v48 = vld [vmem:[%s6] sm:$0x1]
    %v49 = vlaneseq
    %v50 = vshrl.u32 %v49, 7
    %v51 = vsub.s32 0, %v50
    %v52 = vrot.slane %v48, %v51
    %v55 = vunpack.c.l.b16 %v45
    %v56 = vunpack.c.l.b16 %v46
    %v57 = vpack.c.b16 %v56, %v55
    %vm58 = vcmask 64512
    %v60 = vsel %vm58, %v57, 0
    %vm62 = vcmask 1043456
    %v64 = vsel %vm62, %v47, 0
    %66 = vmatprep.subr.bf16.mxu0 0
    %67 = vmatpush1.bf16.msra.mxu0 %v64
    %68 = vmatprep.subr.bf16.mxu0 0
    %69 = vmatpush1.bf16.msra.mxu0 0
    %70 = vmatprep.subr.bf16.mxu0 0
    %71 = vmatpush1.bf16.msra.mxu0 0
    %72 = vmatprep.subr.bf16.mxu0 0
    %73 = vmatpush1.bf16.msra.mxu0 0
    %74 = vmatprep.subr.bf16.mxu0 0
    %75 = vmatpush1.bf16.msra.mxu0 0
    %76 = vmatprep.subr.bf16.mxu0 0
    %77 = vmatpush1.bf16.msra.mxu0 0
    %78 = vmatprep.subr.bf16.mxu0 0
    %79 = vmatpush1.bf16.msra.mxu0 0
    %80 = vmatprep.subr.bf16.mxu0 0
    %81 = vmatpush1.bf16.msra.mxu0 0
    %82 = vmatprep.subr.bf16.mxu0 0
    %83 = vmatpush1.bf16.msra.mxu0 0
    %84 = vmatprep.subr.bf16.mxu0 0
    %85 = vmatpush1.bf16.msra.mxu0 0
    %86 = vmatprep.subr.bf16.mxu0 0
    %87 = vmatpush1.bf16.msra.mxu0 0
    %88 = vmatprep.subr.bf16.mxu0 0
    %89 = vmatpush1.bf16.msra.mxu0 0
    %90 = vmatprep.subr.bf16.mxu0 0
    %91 = vmatpush1.bf16.msra.mxu0 0
    %92 = vmatprep.subr.bf16.mxu0 0
    %93 = vmatpush1.bf16.msra.mxu0 0
    %94 = vmatprep.subr.bf16.mxu0 0
    %95 = vmatpush1.bf16.msra.mxu0 0
    %96 = vmatprep.subr.bf16.mxu0 0
    %97 = vmatpush1.bf16.msra.mxu0 0
    %98 = vmatprep.mubr.bf16.mxu0 0
    %99 = vmatmul.mubr.bf16.gmra.mrb[0].mxu0 %v60
    %v100 = vpop.f32.mrb[0].mxu0
    %v101 = vadd.f32 %v52, %v100
    %v102 = vpop.f32.mrb[0].mxu0
    %v103 = vpop.f32.mrb[0].mxu0
    %v104 = vadd.f32 %v52, %v103
    %v105 = vpop.f32.mrb[0].mxu0
    %106 = vdwg.mxu0
    %vm107 = vcmp.gt.f32.partialorder %v101, 0.0
    %vm108 = vcmp.gt.f32.partialorder %v104, 0.0
    %v109 = vmul.f32 %v101, 0.01
    %v110 = vmul.f32 %v104, 0.01
    %v111 = vsel %vm107, %v101, %v109
    %v112 = vsel %vm108, %v104, %v110
    %v113 = vld [vmem:[#allocation2 + $0x8] sm:$0xf]
    %v114 = vld [vmem:[#allocation2 + $0xc] sm:$0xf]
    %v115 = vld [vmem:[#allocation2 + $0x10] sm:$0xf]
    %v116 = vld [vmem:[#allocation2 + $0x14] sm:$0xf]
    %v117 = vpack.c.bf16 %v112, %v111
    %v122 = vunpack.c.l.b16 %v113
    %v123 = vunpack.c.l.b16 %v114
    %v124 = vunpack.c.l.b16 %v115
    %v125 = vunpack.c.l.b16 %v116
    %v126 = vpack.c.b16 %v123, %v122
    %v127 = vpack.c.b16 %v125, %v124
    %vm130 = vcmask 261120
    %v132 = vsel %vm130, %v117, 0
    %134 = vmatprep.subr.bf16.mxu0 0
    %135 = vmatpush1.bf16.msra.mxu0 %v126
    %136 = vmatprep.subr.bf16.mxu0 0
    %137 = vmatpush1.bf16.msra.mxu0 %v127
    %138 = vmatprep.subr.bf16.mxu0 0
    %139 = vmatpush1.bf16.msra.mxu0 0
    %140 = vmatprep.subr.bf16.mxu0 0
    %141 = vmatpush1.bf16.msra.mxu0 0
    %142 = vmatprep.subr.bf16.mxu0 0
    %143 = vmatpush1.bf16.msra.mxu0 0
    %144 = vmatprep.subr.bf16.mxu0 0
    %145 = vmatpush1.bf16.msra.mxu0 0
    %146 = vmatprep.subr.bf16.mxu0 0
    %147 = vmatpush1.bf16.msra.mxu0 0
    %148 = vmatprep.subr.bf16.mxu0 0
    %149 = vmatpush1.bf16.msra.mxu0 0
    %150 = vmatprep.subr.bf16.mxu0 0
    %151 = vmatpush1.bf16.msra.mxu0 0
    %152 = vmatprep.subr.bf16.mxu0 0
    %153 = vmatpush1.bf16.msra.mxu0 0
    %154 = vmatprep.subr.bf16.mxu0 0
    %155 = vmatpush1.bf16.msra.mxu0 0
    %156 = vmatprep.subr.bf16.mxu0 0
    %157 = vmatpush1.bf16.msra.mxu0 0
    %158 = vmatprep.subr.bf16.mxu0 0
    %159 = vmatpush1.bf16.msra.mxu0 0
    %160 = vmatprep.subr.bf16.mxu0 0
    %161 = vmatpush1.bf16.msra.mxu0 0
    %162 = vmatprep.subr.bf16.mxu0 0
    %163 = vmatpush1.bf16.msra.mxu0 0
    %164 = vmatprep.subr.bf16.mxu0 0
    %165 = vmatpush1.bf16.msra.mxu0 0
    %166 = vmatprep.mubr.bf16.mxu0 0
    %167 = vmatmul.mubr.bf16.gmra.mrb[0].mxu0 %v132
    %v168 = vpop.f32.mrb[0].mxu0
    %v169 = vadd.f32 0.0, %v168
    %v170 = vpop.f32.mrb[0].mxu0
    %v171 = vpop.f32.mrb[0].mxu0
    %v172 = vadd.f32 0.0, %v171
    %v173 = vpop.f32.mrb[0].mxu0
    %174 = vdwg.mxu0
    %v175 = vld [vmem:[%s2] sm:$0xf]
    %v176 = vld [vmem:[%s2 + $0x4] sm:$0xf]
    %v177 = vld [vmem:[%s2 + $0x8] sm:$0xf]
    %v178 = vld [vmem:[%s2 + $0xc] sm:$0xf]
    %v179 = vld [vmem:[%s2 + $0x10] sm:$0xf]
    %v180 = vld [vmem:[%s2 + $0x14] sm:$0xf]
    %v181 = vld [vmem:[%s2 + $0x18] sm:$0xf]
    %v182 = vld [vmem:[%s2 + $0x1c] sm:$0xf]
    %v183 = vld [vmem:[%s2 + $0x20] sm:$0xf]
    %v184 = vld [vmem:[%s2 + $0x24] sm:$0xf]
    %v185 = vld [vmem:[%s2 + $0x28] sm:$0xf]
    %v186 = vld [vmem:[%s2 + $0x2c] sm:$0xf]
    %v187 = vld [vmem:[%s2 + $0x30] sm:$0xf]
    %v188 = vld [vmem:[%s2 + $0x34] sm:$0xf]
    %v189 = vld [vmem:[%s2 + $0x38] sm:$0xf]
    %v190 = vld [vmem:[%s2 + $0x3c] sm:$0xf]
    %v191 = vld [vmem:[%s2 + $0x40] sm:$0xf]
    %v192 = vld [vmem:[%s2 + $0x44] sm:$0xf]
    %v193 = vld [vmem:[%s2 + $0x48] sm:$0xf]
    %v194 = vld [vmem:[%s2 + $0x4c] sm:$0xf]
    %v195 = vld [vmem:[%s2 + $0x50] sm:$0xf]
    %v196 = vld [vmem:[%s2 + $0x54] sm:$0xf]
    %v197 = vld [vmem:[%s2 + $0x58] sm:$0xf]
    %v198 = vld [vmem:[%s2 + $0x5c] sm:$0xf]
    %v199 = vld [vmem:[%s2 + $0x60] sm:$0xf]
    %v200 = vld [vmem:[%s2 + $0x64] sm:$0xf]
    %v201 = vld [vmem:[%s2 + $0x68] sm:$0xf]
    %v202 = vld [vmem:[%s2 + $0x6c] sm:$0xf]
    %v203 = vld [vmem:[%s2 + $0x70] sm:$0xf]
    %v204 = vld [vmem:[%s2 + $0x74] sm:$0xf]
    %v205 = vld [vmem:[%s2 + $0x78] sm:$0xf]
    %v206 = vld [vmem:[%s2 + $0x7c] sm:$0xf]
    %v207 = vld [vmem:[#allocation2 + $0x18] sm:$0x3]
    %v240 = vunpack.c.l.b16 %v175
    %v241 = vunpack.c.l.b16 %v176
    %v242 = vunpack.c.l.b16 %v177
    %v243 = vunpack.c.l.b16 %v178
    %v244 = vunpack.c.l.b16 %v179
    %v245 = vunpack.c.l.b16 %v180
    %v246 = vunpack.c.l.b16 %v181
    %v247 = vunpack.c.l.b16 %v182
    %v248 = vunpack.c.l.b16 %v183
    %v249 = vunpack.c.l.b16 %v184
    %v250 = vunpack.c.l.b16 %v185
    %v251 = vunpack.c.l.b16 %v186
    %v252 = vunpack.c.l.b16 %v187
    %v253 = vunpack.c.l.b16 %v188
    %v254 = vunpack.c.l.b16 %v189
    %v255 = vunpack.c.l.b16 %v190
    %v256 = vunpack.c.l.b16 %v191
    %v257 = vunpack.c.l.b16 %v192
    %v258 = vunpack.c.l.b16 %v193
    %v259 = vunpack.c.l.b16 %v194
    %v260 = vunpack.c.l.b16 %v195
    %v261 = vunpack.c.l.b16 %v196
    %v262 = vunpack.c.l.b16 %v197
    %v263 = vunpack.c.l.b16 %v198
    %v264 = vunpack.c.l.b16 %v199
    %v265 = vunpack.c.l.b16 %v200
    %v266 = vunpack.c.l.b16 %v201
    %v267 = vunpack.c.l.b16 %v202
    %v268 = vunpack.c.l.b16 %v203
    %v269 = vunpack.c.l.b16 %v204
    %v270 = vunpack.c.l.b16 %v205
    %v271 = vunpack.c.l.b16 %v206
    %v272 = vpack.c.b16 %v241, %v240
    %v273 = vpack.c.b16 %v243, %v242
    %v274 = vpack.c.b16 %v245, %v244
    %v275 = vpack.c.b16 %v247, %v246
    %v276 = vpack.c.b16 %v249, %v248
    %v277 = vpack.c.b16 %v251, %v250
    %v278 = vpack.c.b16 %v253, %v252
    %v279 = vpack.c.b16 %v255, %v254
    %v280 = vpack.c.b16 %v257, %v256
    %v281 = vpack.c.b16 %v259, %v258
    %v282 = vpack.c.b16 %v261, %v260
    %v283 = vpack.c.b16 %v263, %v262
    %v284 = vpack.c.b16 %v265, %v264
    %v285 = vpack.c.b16 %v267, %v266
    %v286 = vpack.c.b16 %v269, %v268
    %v287 = vpack.c.b16 %v271, %v270
    %vm288 = vcmask 31744
    %v290 = vsel %vm288, %v272, 0
    %v293 = vsel %vm288, %v273, 0
    %v296 = vsel %vm288, %v274, 0
    %v299 = vsel %vm288, %v275, 0
    %v302 = vsel %vm288, %v276, 0
    %v305 = vsel %vm288, %v277, 0
    %v308 = vsel %vm288, %v278, 0
    %v311 = vsel %vm288, %v279, 0
    %v314 = vsel %vm288, %v280, 0
    %v317 = vsel %vm288, %v281, 0
    %v320 = vsel %vm288, %v282, 0
    %v323 = vsel %vm288, %v283, 0
    %v326 = vsel %vm288, %v284, 0
    %v329 = vsel %vm288, %v285, 0
    %v332 = vsel %vm288, %v286, 0
    %v335 = vsel %vm288, %v287, 0
    %vm337 = vcmask 1041408
    %v339 = vsel %vm337, %v207, 0
    %341 = vmatprep.subr.bf16.mxu0 0
    %342 = vmatpush1.bf16.msra.mxu0 %v339
    %343 = vmatprep.subr.bf16.mxu0 0
    %344 = vmatpush1.bf16.msra.mxu0 0
    %345 = vmatprep.subr.bf16.mxu0 0
    %346 = vmatpush1.bf16.msra.mxu0 0
    %347 = vmatprep.subr.bf16.mxu0 0
    %348 = vmatpush1.bf16.msra.mxu0 0
    %349 = vmatprep.subr.bf16.mxu0 0
    %350 = vmatpush1.bf16.msra.mxu0 0
    %351 = vmatprep.subr.bf16.mxu0 0
    %352 = vmatpush1.bf16.msra.mxu0 0
    %353 = vmatprep.subr.bf16.mxu0 0
    %354 = vmatpush1.bf16.msra.mxu0 0
    %355 = vmatprep.subr.bf16.mxu0 0
    %356 = vmatpush1.bf16.msra.mxu0 0
    %357 = vmatprep.subr.bf16.mxu0 0
    %358 = vmatpush1.bf16.msra.mxu0 0
    %359 = vmatprep.subr.bf16.mxu0 0
    %360 = vmatpush1.bf16.msra.mxu0 0
    %361 = vmatprep.subr.bf16.mxu0 0
    %362 = vmatpush1.bf16.msra.mxu0 0
    %363 = vmatprep.subr.bf16.mxu0 0
    %364 = vmatpush1.bf16.msra.mxu0 0
    %365 = vmatprep.subr.bf16.mxu0 0
    %366 = vmatpush1.bf16.msra.mxu0 0
    %367 = vmatprep.subr.bf16.mxu0 0
    %368 = vmatpush1.bf16.msra.mxu0 0
    %369 = vmatprep.subr.bf16.mxu0 0
    %370 = vmatpush1.bf16.msra.mxu0 0
    %371 = vmatprep.subr.bf16.mxu0 0
    %372 = vmatpush1.bf16.msra.mxu0 0
    %373 = vmatprep.mubr.bf16.mxu0 0
    %374 = vmatmul.mubr.bf16.gmra.mrb[0].mxu0 %v290
    %v375 = vpop.f32.mrb[0].mxu0
    %v376 = vadd.f32 0.0, %v375
    %v377 = vpop.f32.mrb[0].mxu0
    %v378 = vpop.f32.mrb[0].mxu0
    %v379 = vadd.f32 0.0, %v378
    %v380 = vpop.f32.mrb[0].mxu0
    %381 = vmatprep.mubr.bf16.mxu0 0
    %382 = vmatmul.mubr.bf16.gmra.mrb[0].mxu0 %v293
    %v383 = vpop.f32.mrb[0].mxu0
    %v384 = vadd.f32 0.0, %v383
    %v385 = vpop.f32.mrb[0].mxu0
    %v386 = vpop.f32.mrb[0].mxu0
    %v387 = vadd.f32 0.0, %v386
    %v388 = vpop.f32.mrb[0].mxu0
    %389 = vmatprep.mubr.bf16.mxu0 0
    %390 = vmatmul.mubr.bf16.gmra.mrb[0].mxu0 %v296
    %v391 = vpop.f32.mrb[0].mxu0
    %v392 = vadd.f32 0.0, %v391
    %v393 = vpop.f32.mrb[0].mxu0
    %v394 = vpop.f32.mrb[0].mxu0
    %v395 = vadd.f32 0.0, %v394
    %v396 = vpop.f32.mrb[0].mxu0
    %397 = vmatprep.mubr.bf16.mxu0 0
    %398 = vmatmul.mubr.bf16.gmra.mrb[0].mxu0 %v299
    %v399 = vpop.f32.mrb[0].mxu0
    %v400 = vadd.f32 0.0, %v399
    %v401 = vpop.f32.mrb[0].mxu0
    %v402 = vpop.f32.mrb[0].mxu0
    %v403 = vadd.f32 0.0, %v402
    %v404 = vpop.f32.mrb[0].mxu0
    %405 = vmatprep.mubr.bf16.mxu0 0
    %406 = vmatmul.mubr.bf16.gmra.mrb[0].mxu0 %v302
    %v407 = vpop.f32.mrb[0].mxu0
    %v408 = vadd.f32 0.0, %v407
    %v409 = vpop.f32.mrb[0].mxu0
    %v410 = vpop.f32.mrb[0].mxu0
    %v411 = vadd.f32 0.0, %v410
    %v412 = vpop.f32.mrb[0].mxu0
    %413 = vmatprep.mubr.bf16.mxu0 0
    %414 = vmatmul.mubr.bf16.gmra.mrb[0].mxu0 %v305
    %v415 = vpop.f32.mrb[0].mxu0
    %v416 = vadd.f32 0.0, %v415
    %v417 = vpop.f32.mrb[0].mxu0
    %v418 = vpop.f32.mrb[0].mxu0
    %v419 = vadd.f32 0.0, %v418
    %v420 = vpop.f32.mrb[0].mxu0
    %421 = vmatprep.mubr.bf16.mxu0 0
    %422 = vmatmul.mubr.bf16.gmra.mrb[0].mxu0 %v308
    %v423 = vpop.f32.mrb[0].mxu0
    %v424 = vadd.f32 0.0, %v423
    %v425 = vpop.f32.mrb[0].mxu0
    %v426 = vpop.f32.mrb[0].mxu0
    %v427 = vadd.f32 0.0, %v426
    %v428 = vpop.f32.mrb[0].mxu0
    %429 = vmatprep.mubr.bf16.mxu0 0
    %430 = vmatmul.mubr.bf16.gmra.mrb[0].mxu0 %v311
    %v431 = vpop.f32.mrb[0].mxu0
    %v432 = vadd.f32 0.0, %v431
    %v433 = vpop.f32.mrb[0].mxu0
    %v434 = vpop.f32.mrb[0].mxu0
    %v435 = vadd.f32 0.0, %v434
    %v436 = vpop.f32.mrb[0].mxu0
    %437 = vmatprep.mubr.bf16.mxu0 0
    %438 = vmatmul.mubr.bf16.gmra.mrb[0].mxu0 %v314
    %v439 = vpop.f32.mrb[0].mxu0
    %v440 = vadd.f32 0.0, %v439
    %v441 = vpop.f32.mrb[0].mxu0
    %v442 = vpop.f32.mrb[0].mxu0
    %v443 = vadd.f32 0.0, %v442
    %v444 = vpop.f32.mrb[0].mxu0
    %445 = vmatprep.mubr.bf16.mxu0 0
    %446 = vmatmul.mubr.bf16.gmra.mrb[0].mxu0 %v317
    %v447 = vpop.f32.mrb[0].mxu0
    %v448 = vadd.f32 0.0, %v447
    %v449 = vpop.f32.mrb[0].mxu0
    %v450 = vpop.f32.mrb[0].mxu0
    %v451 = vadd.f32 0.0, %v450
    %v452 = vpop.f32.mrb[0].mxu0
    %453 = vmatprep.mubr.bf16.mxu0 0
    %454 = vmatmul.mubr.bf16.gmra.mrb[0].mxu0 %v320
    %v455 = vpop.f32.mrb[0].mxu0
    %v456 = vadd.f32 0.0, %v455
    %v457 = vpop.f32.mrb[0].mxu0
    %v458 = vpop.f32.mrb[0].mxu0
    %v459 = vadd.f32 0.0, %v458
    %v460 = vpop.f32.mrb[0].mxu0
    %461 = vmatprep.mubr.bf16.mxu0 0
    %462 = vmatmul.mubr.bf16.gmra.mrb[0].mxu0 %v323
    %v463 = vpop.f32.mrb[0].mxu0
    %v464 = vadd.f32 0.0, %v463
    %v465 = vpop.f32.mrb[0].mxu0
    %v466 = vpop.f32.mrb[0].mxu0
    %v467 = vadd.f32 0.0, %v466
    %v468 = vpop.f32.mrb[0].mxu0
    %469 = vmatprep.mubr.bf16.mxu0 0
    %470 = vmatmul.mubr.bf16.gmra.mrb[0].mxu0 %v326
    %v471 = vpop.f32.mrb[0].mxu0
    %v472 = vadd.f32 0.0, %v471
    %v473 = vpop.f32.mrb[0].mxu0
    %v474 = vpop.f32.mrb[0].mxu0
    %v475 = vadd.f32 0.0, %v474
    %v476 = vpop.f32.mrb[0].mxu0
    %477 = vmatprep.mubr.bf16.mxu0 0
    %478 = vmatmul.mubr.bf16.gmra.mrb[0].mxu0 %v329
    %v479 = vpop.f32.mrb[0].mxu0
    %v480 = vadd.f32 0.0, %v479
    %v481 = vpop.f32.mrb[0].mxu0
    %v482 = vpop.f32.mrb[0].mxu0
    %v483 = vadd.f32 0.0, %v482
    %v484 = vpop.f32.mrb[0].mxu0
    %485 = vmatprep.mubr.bf16.mxu0 0
    %486 = vmatmul.mubr.bf16.gmra.mrb[0].mxu0 %v332
    %v487 = vpop.f32.mrb[0].mxu0
    %v488 = vadd.f32 0.0, %v487
    %v489 = vpop.f32.mrb[0].mxu0
    %v490 = vpop.f32.mrb[0].mxu0
    %v491 = vadd.f32 0.0, %v490
    %v492 = vpop.f32.mrb[0].mxu0
    %493 = vmatprep.mubr.bf16.mxu0 0
    %494 = vmatmul.mubr.bf16.gmra.mrb[0].mxu0 %v335
    %v495 = vpop.f32.mrb[0].mxu0
    %v496 = vadd.f32 0.0, %v495
    %v497 = vpop.f32.mrb[0].mxu0
    %v498 = vpop.f32.mrb[0].mxu0
    %v499 = vadd.f32 0.0, %v498
    %v500 = vpop.f32.mrb[0].mxu0
    %501 = vdwg.mxu0
    %v502 = vadd.f32 %v376, %v169
    %v503 = vadd.f32 %v379, %v172
    %v504 = vadd.f32 %v384, %v169
    %v505 = vadd.f32 %v387, %v172
    %v506 = vadd.f32 %v392, %v169
    %v507 = vadd.f32 %v395, %v172
    %v508 = vadd.f32 %v400, %v169
    %v509 = vadd.f32 %v403, %v172
    %v510 = vadd.f32 %v408, %v169
    %v511 = vadd.f32 %v411, %v172
    %v512 = vadd.f32 %v416, %v169
    %v513 = vadd.f32 %v419, %v172
    %v514 = vadd.f32 %v424, %v169
    %v515 = vadd.f32 %v427, %v172
    %v516 = vadd.f32 %v432, %v169
    %v517 = vadd.f32 %v435, %v172
    %v518 = vadd.f32 %v440, %v169
    %v519 = vadd.f32 %v443, %v172
    %v520 = vadd.f32 %v448, %v169
    %v521 = vadd.f32 %v451, %v172
    %v522 = vadd.f32 %v456, %v169
    %v523 = vadd.f32 %v459, %v172
    %v524 = vadd.f32 %v464, %v169
    %v525 = vadd.f32 %v467, %v172
    %v526 = vadd.f32 %v472, %v169
    %v527 = vadd.f32 %v475, %v172
    %v528 = vadd.f32 %v480, %v169
    %v529 = vadd.f32 %v483, %v172
    %v530 = vadd.f32 %v488, %v169
    %v531 = vadd.f32 %v491, %v172
    %v532 = vadd.f32 %v496, %v169
    %v533 = vadd.f32 %v499, %v172
    %vm534 = vcmp.gt.f32.partialorder %v502, 0.0
    %vm535 = vcmp.gt.f32.partialorder %v503, 0.0
    %vm536 = vcmp.gt.f32.partialorder %v504, 0.0
    %vm537 = vcmp.gt.f32.partialorder %v505, 0.0
    %vm538 = vcmp.gt.f32.partialorder %v506, 0.0
    %vm539 = vcmp.gt.f32.partialorder %v507, 0.0
    %vm540 = vcmp.gt.f32.partialorder %v508, 0.0
    %vm541 = vcmp.gt.f32.partialorder %v509, 0.0
    %vm542 = vcmp.gt.f32.partialorder %v510, 0.0
    %vm543 = vcmp.gt.f32.partialorder %v511, 0.0
    %vm544 = vcmp.gt.f32.partialorder %v512, 0.0
    %vm545 = vcmp.gt.f32.partialorder %v513, 0.0
    %vm546 = vcmp.gt.f32.partialorder %v514, 0.0
    %vm547 = vcmp.gt.f32.partialorder %v515, 0.0
    %vm548 = vcmp.gt.f32.partialorder %v516, 0.0
    %vm549 = vcmp.gt.f32.partialorder %v517, 0.0
    %vm550 = vcmp.gt.f32.partialorder %v518, 0.0
    %vm551 = vcmp.gt.f32.partialorder %v519, 0.0
    %vm552 = vcmp.gt.f32.partialorder %v520, 0.0
    %vm553 = vcmp.gt.f32.partialorder %v521, 0.0
    %vm554 = vcmp.gt.f32.partialorder %v522, 0.0
    %vm555 = vcmp.gt.f32.partialorder %v523, 0.0
    %vm556 = vcmp.gt.f32.partialorder %v524, 0.0
    %vm557 = vcmp.gt.f32.partialorder %v525, 0.0
    %vm558 = vcmp.gt.f32.partialorder %v526, 0.0
    %vm559 = vcmp.gt.f32.partialorder %v527, 0.0
    %vm560 = vcmp.gt.f32.partialorder %v528, 0.0
    %vm561 = vcmp.gt.f32.partialorder %v529, 0.0
    %vm562 = vcmp.gt.f32.partialorder %v530, 0.0
    %vm563 = vcmp.gt.f32.partialorder %v531, 0.0
    %vm564 = vcmp.gt.f32.partialorder %v532, 0.0
    %vm565 = vcmp.gt.f32.partialorder %v533, 0.0
    %v566 = vmul.f32 %v502, 0.01
    %v567 = vmul.f32 %v503, 0.01
    %v568 = vmul.f32 %v504, 0.01
    %v569 = vmul.f32 %v505, 0.01
    %v570 = vmul.f32 %v506, 0.01
    %v571 = vmul.f32 %v507, 0.01
    %v572 = vmul.f32 %v508, 0.01
    %v573 = vmul.f32 %v509, 0.01
    %v574 = vmul.f32 %v510, 0.01
    %v575 = vmul.f32 %v511, 0.01
    %v576 = vmul.f32 %v512, 0.01
    %v577 = vmul.f32 %v513, 0.01
    %v578 = vmul.f32 %v514, 0.01
    %v579 = vmul.f32 %v515, 0.01
    %v580 = vmul.f32 %v516, 0.01
    %v581 = vmul.f32 %v517, 0.01
    %v582 = vmul.f32 %v518, 0.01
    %v583 = vmul.f32 %v519, 0.01
    %v584 = vmul.f32 %v520, 0.01
    %v585 = vmul.f32 %v521, 0.01
    %v586 = vmul.f32 %v522, 0.01
    %v587 = vmul.f32 %v523, 0.01
    %v588 = vmul.f32 %v524, 0.01
    %v589 = vmul.f32 %v525, 0.01
    %v590 = vmul.f32 %v526, 0.01
    %v591 = vmul.f32 %v527, 0.01
    %v592 = vmul.f32 %v528, 0.01
    %v593 = vmul.f32 %v529, 0.01
    %v594 = vmul.f32 %v530, 0.01
    %v595 = vmul.f32 %v531, 0.01
    %v596 = vmul.f32 %v532, 0.01
    %v597 = vmul.f32 %v533, 0.01
    %v598 = vsel %vm534, %v502, %v566
    %v599 = vsel %vm535, %v503, %v567
    %v600 = vsel %vm536, %v504, %v568
    %v601 = vsel %vm537, %v505, %v569
    %v602 = vsel %vm538, %v506, %v570
    %v603 = vsel %vm539, %v507, %v571
    %v604 = vsel %vm540, %v508, %v572
    %v605 = vsel %vm541, %v509, %v573
    %v606 = vsel %vm542, %v510, %v574
    %v607 = vsel %vm543, %v511, %v575
    %v608 = vsel %vm544, %v512, %v576
    %v609 = vsel %vm545, %v513, %v577
    %v610 = vsel %vm546, %v514, %v578
    %v611 = vsel %vm547, %v515, %v579
    %v612 = vsel %vm548, %v516, %v580
    %v613 = vsel %vm549, %v517, %v581
    %v614 = vsel %vm550, %v518, %v582
    %v615 = vsel %vm551, %v519, %v583
    %v616 = vsel %vm552, %v520, %v584
    %v617 = vsel %vm553, %v521, %v585
    %v618 = vsel %vm554, %v522, %v586
    %v619 = vsel %vm555, %v523, %v587
    %v620 = vsel %vm556, %v524, %v588
    %v621 = vsel %vm557, %v525, %v589
    %v622 = vsel %vm558, %v526, %v590
    %v623 = vsel %vm559, %v527, %v591
    %v624 = vsel %vm560, %v528, %v592
    %v625 = vsel %vm561, %v529, %v593
    %v626 = vsel %vm562, %v530, %v594
    %v627 = vsel %vm563, %v531, %v595
    %v628 = vsel %vm564, %v532, %v596
    %v629 = vsel %vm565, %v533, %v597
    %v630 = vld [vmem:[%s6 + $0x1] sm:$0x1]
    %v631 = vlaneseq
    %v632 = vshrl.u32 %v631, 7
    %v633 = vsub.s32 0, %v632
    %v634 = vrot.slane %v630, %v633
    %v635 = vmul.f32 %v598, %v634
    %v636 = vmul.f32 %v599, %v634
    %v637 = vmul.f32 %v600, %v634
    %v638 = vmul.f32 %v601, %v634
    %v639 = vmul.f32 %v602, %v634
    %v640 = vmul.f32 %v603, %v634
    %v641 = vmul.f32 %v604, %v634
    %v642 = vmul.f32 %v605, %v634
    %v643 = vmul.f32 %v606, %v634
    %v644 = vmul.f32 %v607, %v634
    %v645 = vmul.f32 %v608, %v634
    %v646 = vmul.f32 %v609, %v634
    %v647 = vmul.f32 %v610, %v634
    %v648 = vmul.f32 %v611, %v634
    %v649 = vmul.f32 %v612, %v634
    %v650 = vmul.f32 %v613, %v634
    %v651 = vmul.f32 %v614, %v634
    %v652 = vmul.f32 %v615, %v634
    %v653 = vmul.f32 %v616, %v634
    %v654 = vmul.f32 %v617, %v634
    %v655 = vmul.f32 %v618, %v634
    %v656 = vmul.f32 %v619, %v634
    %v657 = vmul.f32 %v620, %v634
    %v658 = vmul.f32 %v621, %v634
    %v659 = vmul.f32 %v622, %v634
    %v660 = vmul.f32 %v623, %v634
    %v661 = vmul.f32 %v624, %v634
    %v662 = vmul.f32 %v625, %v634
    %v663 = vmul.f32 %v626, %v634
    %v664 = vmul.f32 %v627, %v634
    %v665 = vmul.f32 %v628, %v634
    %v666 = vmul.f32 %v629, %v634
    %v667 = vsel %vm130, %v635, 0.0
    %668 = vadd.xlane.f32.xlu0 %v667
    %v669 = vpop.xlane.xlu0 %668
    %v670 = vsel %vm130, %v636, 0.0
    %671 = vadd.xlane.f32.xlu0 %v670
    %v672 = vpop.xlane.xlu0 %671
    %v673 = vsel %vm130, %v637, 0.0
    %674 = vadd.xlane.f32.xlu0 %v673
    %v675 = vpop.xlane.xlu0 %674
    %v676 = vsel %vm130, %v638, 0.0
    %677 = vadd.xlane.f32.xlu0 %v676
    %v678 = vpop.xlane.xlu0 %677
    %v679 = vsel %vm130, %v639, 0.0
    %680 = vadd.xlane.f32.xlu0 %v679
    %v681 = vpop.xlane.xlu0 %680
    %v682 = vsel %vm130, %v640, 0.0
    %683 = vadd.xlane.f32.xlu0 %v682
    %v684 = vpop.xlane.xlu0 %683
    %v685 = vsel %vm130, %v641, 0.0
    %686 = vadd.xlane.f32.xlu0 %v685
    %v687 = vpop.xlane.xlu0 %686
    %v688 = vsel %vm130, %v642, 0.0
    %689 = vadd.xlane.f32.xlu0 %v688
    %v690 = vpop.xlane.xlu0 %689
    %v691 = vsel %vm130, %v643, 0.0
    %692 = vadd.xlane.f32.xlu0 %v691
    %v693 = vpop.xlane.xlu0 %692
    %v694 = vsel %vm130, %v644, 0.0
    %695 = vadd.xlane.f32.xlu0 %v694
    %v696 = vpop.xlane.xlu0 %695
    %v697 = vsel %vm130, %v645, 0.0
    %698 = vadd.xlane.f32.xlu0 %v697
    %v699 = vpop.xlane.xlu0 %698
    %v700 = vsel %vm130, %v646, 0.0
    %701 = vadd.xlane.f32.xlu0 %v700
    %v702 = vpop.xlane.xlu0 %701
    %v703 = vsel %vm130, %v647, 0.0
    %704 = vadd.xlane.f32.xlu0 %v703
    %v705 = vpop.xlane.xlu0 %704
    %v706 = vsel %vm130, %v648, 0.0
    %707 = vadd.xlane.f32.xlu0 %v706
    %v708 = vpop.xlane.xlu0 %707
    %v709 = vsel %vm130, %v649, 0.0
    %710 = vadd.xlane.f32.xlu0 %v709
    %v711 = vpop.xlane.xlu0 %710
    %v712 = vsel %vm130, %v650, 0.0
    %713 = vadd.xlane.f32.xlu0 %v712
    %v714 = vpop.xlane.xlu0 %713
    %v715 = vsel %vm130, %v651, 0.0
    %716 = vadd.xlane.f32.xlu0 %v715
    %v717 = vpop.xlane.xlu0 %716
    %v718 = vsel %vm130, %v652, 0.0
    %719 = vadd.xlane.f32.xlu0 %v718
    %v720 = vpop.xlane.xlu0 %719
    %v721 = vsel %vm130, %v653, 0.0
    %722 = vadd.xlane.f32.xlu0 %v721
    %v723 = vpop.xlane.xlu0 %722
    %v724 = vsel %vm130, %v654, 0.0
    %725 = vadd.xlane.f32.xlu0 %v724
    %v726 = vpop.xlane.xlu0 %725
    %v727 = vsel %vm130, %v655, 0.0
    %728 = vadd.xlane.f32.xlu0 %v727
    %v729 = vpop.xlane.xlu0 %728
    %v730 = vsel %vm130, %v656, 0.0
    %731 = vadd.xlane.f32.xlu0 %v730
    %v732 = vpop.xlane.xlu0 %731
    %v733 = vsel %vm130, %v657, 0.0
    %734 = vadd.xlane.f32.xlu0 %v733
    %v735 = vpop.xlane.xlu0 %734
    %v736 = vsel %vm130, %v658, 0.0
    %737 = vadd.xlane.f32.xlu0 %v736
    %v738 = vpop.xlane.xlu0 %737
    %v739 = vsel %vm130, %v659, 0.0
    %740 = vadd.xlane.f32.xlu0 %v739
    %v741 = vpop.xlane.xlu0 %740
    %v742 = vsel %vm130, %v660, 0.0
    %743 = vadd.xlane.f32.xlu0 %v742
    %v744 = vpop.xlane.xlu0 %743
    %v745 = vsel %vm130, %v661, 0.0
    %746 = vadd.xlane.f32.xlu0 %v745
    %v747 = vpop.xlane.xlu0 %746
    %v748 = vsel %vm130, %v662, 0.0
    %749 = vadd.xlane.f32.xlu0 %v748
    %v750 = vpop.xlane.xlu0 %749
    %v751 = vsel %vm130, %v663, 0.0
    %752 = vadd.xlane.f32.xlu0 %v751
    %v753 = vpop.xlane.xlu0 %752
    %v754 = vsel %vm130, %v664, 0.0
    %755 = vadd.xlane.f32.xlu0 %v754
    %v756 = vpop.xlane.xlu0 %755
    %v757 = vsel %vm130, %v665, 0.0
    %758 = vadd.xlane.f32.xlu0 %v757
    %v759 = vpop.xlane.xlu0 %758
    %v760 = vsel %vm130, %v666, 0.0
    %761 = vadd.xlane.f32.xlu0 %v760
    %v762 = vpop.xlane.xlu0 %761
    %764 = vset.pattern.permute.xlu0 64
    %765 = vperm.xlu0 %764, %v169
    %v766 = vpop.permute.xlu0 %765
    %768 = vset.pattern.permute.xlu0 64
    %769 = vperm.xlu0 %768, %v172
    %v770 = vpop.permute.xlu0 %769
    %v771 = vlaneseq
    %v772 = vshrl.u32 %v771, 7
    %v773 = vsub.s32 0, %v772
    %v774 = vrot.slane %v766, %v773
    %v775 = vlaneseq
    %v776 = vshrl.u32 %v775, 7
    %v777 = vsub.s32 1, %v776
    %v778 = vrot.slane %v766, %v777
    %v779 = vlaneseq
    %v780 = vshrl.u32 %v779, 7
    %v781 = vsub.s32 2, %v780
    %v782 = vrot.slane %v766, %v781
    %v783 = vlaneseq
    %v784 = vshrl.u32 %v783, 7
    %v785 = vsub.s32 3, %v784
    %v786 = vrot.slane %v766, %v785
    %v787 = vlaneseq
    %v788 = vshrl.u32 %v787, 7
    %v789 = vsub.s32 4, %v788
    %v790 = vrot.slane %v766, %v789
    %v791 = vlaneseq
    %v792 = vshrl.u32 %v791, 7
    %v793 = vsub.s32 5, %v792
    %v794 = vrot.slane %v766, %v793
    %v795 = vlaneseq
    %v796 = vshrl.u32 %v795, 7
    %v797 = vsub.s32 6, %v796
    %v798 = vrot.slane %v766, %v797
    %v799 = vlaneseq
    %v800 = vshrl.u32 %v799, 7
    %v801 = vsub.s32 7, %v800
    %v802 = vrot.slane %v766, %v801
    %v803 = vlaneseq
    %v804 = vshrl.u32 %v803, 7
    %v805 = vsub.s32 0, %v804
    %v806 = vrot.slane %v770, %v805
    %v807 = vlaneseq
    %v808 = vshrl.u32 %v807, 7
    %v809 = vsub.s32 1, %v808
    %v810 = vrot.slane %v770, %v809
    %v811 = vlaneseq
    %v812 = vshrl.u32 %v811, 7
    %v813 = vsub.s32 2, %v812
    %v814 = vrot.slane %v770, %v813
    %v815 = vlaneseq
    %v816 = vshrl.u32 %v815, 7
    %v817 = vsub.s32 3, %v816
    %v818 = vrot.slane %v770, %v817
    %v819 = vlaneseq
    %v820 = vshrl.u32 %v819, 7
    %v821 = vsub.s32 4, %v820
    %v822 = vrot.slane %v770, %v821
    %v823 = vlaneseq
    %v824 = vshrl.u32 %v823, 7
    %v825 = vsub.s32 5, %v824
    %v826 = vrot.slane %v770, %v825
    %v827 = vlaneseq
    %v828 = vshrl.u32 %v827, 7
    %v829 = vsub.s32 6, %v828
    %v830 = vrot.slane %v770, %v829
    %v831 = vlaneseq
    %v832 = vshrl.u32 %v831, 7
    %v833 = vsub.s32 7, %v832
    %v834 = vrot.slane %v770, %v833
    %v851 = vadd.f32 %v669, %v774
    %v852 = vadd.f32 %v672, %v774
    %v853 = vadd.f32 %v675, %v778
    %v854 = vadd.f32 %v678, %v778
    %v855 = vadd.f32 %v681, %v782
    %v856 = vadd.f32 %v684, %v782
    %v857 = vadd.f32 %v687, %v786
    %v858 = vadd.f32 %v690, %v786
    %v859 = vadd.f32 %v693, %v790
    %v860 = vadd.f32 %v696, %v790
    %v861 = vadd.f32 %v699, %v794
    %v862 = vadd.f32 %v702, %v794
    %v863 = vadd.f32 %v705, %v798
    %v864 = vadd.f32 %v708, %v798
    %v865 = vadd.f32 %v711, %v802
    %v866 = vadd.f32 %v714, %v802
    %v867 = vadd.f32 %v717, %v806
    %v868 = vadd.f32 %v720, %v806
    %v869 = vadd.f32 %v723, %v810
    %v870 = vadd.f32 %v726, %v810
    %v871 = vadd.f32 %v729, %v814
    %v872 = vadd.f32 %v732, %v814
    %v873 = vadd.f32 %v735, %v818
    %v874 = vadd.f32 %v738, %v818
    %v875 = vadd.f32 %v741, %v822
    %v876 = vadd.f32 %v744, %v822
    %v877 = vadd.f32 %v747, %v826
    %v878 = vadd.f32 %v750, %v826
    %v879 = vadd.f32 %v753, %v830
    %v880 = vadd.f32 %v756, %v830
    %v881 = vadd.f32 %v759, %v834
    %v882 = vadd.f32 %v762, %v834
    %vm883 = vcmp.gt.f32.partialorder %v851, 0.0
    %vm884 = vcmp.gt.f32.partialorder %v852, 0.0
    %vm885 = vcmp.gt.f32.partialorder %v853, 0.0
    %vm886 = vcmp.gt.f32.partialorder %v854, 0.0
    %vm887 = vcmp.gt.f32.partialorder %v855, 0.0
    %vm888 = vcmp.gt.f32.partialorder %v856, 0.0
    %vm889 = vcmp.gt.f32.partialorder %v857, 0.0
    %vm890 = vcmp.gt.f32.partialorder %v858, 0.0
    %vm891 = vcmp.gt.f32.partialorder %v859, 0.0
    %vm892 = vcmp.gt.f32.partialorder %v860, 0.0
    %vm893 = vcmp.gt.f32.partialorder %v861, 0.0
    %vm894 = vcmp.gt.f32.partialorder %v862, 0.0
    %vm895 = vcmp.gt.f32.partialorder %v863, 0.0
    %vm896 = vcmp.gt.f32.partialorder %v864, 0.0
    %vm897 = vcmp.gt.f32.partialorder %v865, 0.0
    %vm898 = vcmp.gt.f32.partialorder %v866, 0.0
    %vm899 = vcmp.gt.f32.partialorder %v867, 0.0
    %vm900 = vcmp.gt.f32.partialorder %v868, 0.0
    %vm901 = vcmp.gt.f32.partialorder %v869, 0.0
    %vm902 = vcmp.gt.f32.partialorder %v870, 0.0
    %vm903 = vcmp.gt.f32.partialorder %v871, 0.0
    %vm904 = vcmp.gt.f32.partialorder %v872, 0.0
    %vm905 = vcmp.gt.f32.partialorder %v873, 0.0
    %vm906 = vcmp.gt.f32.partialorder %v874, 0.0
    %vm907 = vcmp.gt.f32.partialorder %v875, 0.0
    %vm908 = vcmp.gt.f32.partialorder %v876, 0.0
    %vm909 = vcmp.gt.f32.partialorder %v877, 0.0
    %vm910 = vcmp.gt.f32.partialorder %v878, 0.0
    %vm911 = vcmp.gt.f32.partialorder %v879, 0.0
    %vm912 = vcmp.gt.f32.partialorder %v880, 0.0
    %vm913 = vcmp.gt.f32.partialorder %v881, 0.0
    %vm914 = vcmp.gt.f32.partialorder %v882, 0.0
    %v915 = vmul.f32 %v851, 0.01
    %v916 = vmul.f32 %v852, 0.01
    %v917 = vmul.f32 %v853, 0.01
    %v918 = vmul.f32 %v854, 0.01
    %v919 = vmul.f32 %v855, 0.01
    %v920 = vmul.f32 %v856, 0.01
    %v921 = vmul.f32 %v857, 0.01
    %v922 = vmul.f32 %v858, 0.01
    %v923 = vmul.f32 %v859, 0.01
    %v924 = vmul.f32 %v860, 0.01
    %v925 = vmul.f32 %v861, 0.01
    %v926 = vmul.f32 %v862, 0.01
    %v927 = vmul.f32 %v863, 0.01
    %v928 = vmul.f32 %v864, 0.01
    %v929 = vmul.f32 %v865, 0.01
    %v930 = vmul.f32 %v866, 0.01
    %v931 = vmul.f32 %v867, 0.01
    %v932 = vmul.f32 %v868, 0.01
    %v933 = vmul.f32 %v869, 0.01
    %v934 = vmul.f32 %v870, 0.01
    %v935 = vmul.f32 %v871, 0.01
    %v936 = vmul.f32 %v872, 0.01
    %v937 = vmul.f32 %v873, 0.01
    %v938 = vmul.f32 %v874, 0.01
    %v939 = vmul.f32 %v875, 0.01
    %v940 = vmul.f32 %v876, 0.01
    %v941 = vmul.f32 %v877, 0.01
    %v942 = vmul.f32 %v878, 0.01
    %v943 = vmul.f32 %v879, 0.01
    %v944 = vmul.f32 %v880, 0.01
    %v945 = vmul.f32 %v881, 0.01
    %v946 = vmul.f32 %v882, 0.01
    %v947 = vsel %vm883, %v851, %v915
    %v948 = vsel %vm884, %v852, %v916
    %v949 = vsel %vm885, %v853, %v917
    %v950 = vsel %vm886, %v854, %v918
    %v951 = vsel %vm887, %v855, %v919
    %v952 = vsel %vm888, %v856, %v920
    %v953 = vsel %vm889, %v857, %v921
    %v954 = vsel %vm890, %v858, %v922
    %v955 = vsel %vm891, %v859, %v923
    %v956 = vsel %vm892, %v860, %v924
    %v957 = vsel %vm893, %v861, %v925
    %v958 = vsel %vm894, %v862, %v926
    %v959 = vsel %vm895, %v863, %v927
    %v960 = vsel %vm896, %v864, %v928
    %v961 = vsel %vm897, %v865, %v929
    %v962 = vsel %vm898, %v866, %v930
    %v963 = vsel %vm899, %v867, %v931
    %v964 = vsel %vm900, %v868, %v932
    %v965 = vsel %vm901, %v869, %v933
    %v966 = vsel %vm902, %v870, %v934
    %v967 = vsel %vm903, %v871, %v935
    %v968 = vsel %vm904, %v872, %v936
    %v969 = vsel %vm905, %v873, %v937
    %v970 = vsel %vm906, %v874, %v938
    %v971 = vsel %vm907, %v875, %v939
    %v972 = vsel %vm908, %v876, %v940
    %v973 = vsel %vm909, %v877, %v941
    %v974 = vsel %vm910, %v878, %v942
    %v975 = vsel %vm911, %v879, %v943
    %v976 = vsel %vm912, %v880, %v944
    %v977 = vsel %vm913, %v881, %v945
    %v978 = vsel %vm914, %v882, %v946
    %vm979 = vcmp.gt.f32.partialorder %v42, 0.0
    %vm980 = vcmp.gt.f32.partialorder %v43, 0.0
    %1013 = vset.pattern.permute.xlu0 0
    %1014 = vperm.xlu0 %1013, %v947
    %v1015 = vpop.permute.xlu0 %1014
    %1016 = vset.pattern.permute.xlu0 0
    %1017 = vperm.xlu0 %1016, %v948
    %v1018 = vpop.permute.xlu0 %1017
    %1019 = vset.pattern.permute.xlu0 0
    %1020 = vperm.xlu0 %1019, %v949
    %v1021 = vpop.permute.xlu0 %1020
    %1022 = vset.pattern.permute.xlu0 0
    %1023 = vperm.xlu0 %1022, %v950
    %v1024 = vpop.permute.xlu0 %1023
    %1025 = vset.pattern.permute.xlu0 0
    %1026 = vperm.xlu0 %1025, %v951
    %v1027 = vpop.permute.xlu0 %1026
    %1028 = vset.pattern.permute.xlu0 0
    %1029 = vperm.xlu0 %1028, %v952
    %v1030 = vpop.permute.xlu0 %1029
    %1031 = vset.pattern.permute.xlu0 0
    %1032 = vperm.xlu0 %1031, %v953
    %v1033 = vpop.permute.xlu0 %1032
    %1034 = vset.pattern.permute.xlu0 0
    %1035 = vperm.xlu0 %1034, %v954
    %v1036 = vpop.permute.xlu0 %1035
    %1037 = vset.pattern.permute.xlu0 0
    %1038 = vperm.xlu0 %1037, %v955
    %v1039 = vpop.permute.xlu0 %1038
    %1040 = vset.pattern.permute.xlu0 0
    %1041 = vperm.xlu0 %1040, %v956
    %v1042 = vpop.permute.xlu0 %1041
    %1043 = vset.pattern.permute.xlu0 0
    %1044 = vperm.xlu0 %1043, %v957
    %v1045 = vpop.permute.xlu0 %1044
    %1046 = vset.pattern.permute.xlu0 0
    %1047 = vperm.xlu0 %1046, %v958
    %v1048 = vpop.permute.xlu0 %1047
    %1049 = vset.pattern.permute.xlu0 0
    %1050 = vperm.xlu0 %1049, %v959
    %v1051 = vpop.permute.xlu0 %1050
    %1052 = vset.pattern.permute.xlu0 0
    %1053 = vperm.xlu0 %1052, %v960
    %v1054 = vpop.permute.xlu0 %1053
    %1055 = vset.pattern.permute.xlu0 0
    %1056 = vperm.xlu0 %1055, %v961
    %v1057 = vpop.permute.xlu0 %1056
    %1058 = vset.pattern.permute.xlu0 0
    %1059 = vperm.xlu0 %1058, %v962
    %v1060 = vpop.permute.xlu0 %1059
    %1061 = vset.pattern.permute.xlu0 0
    %1062 = vperm.xlu0 %1061, %v963
    %v1063 = vpop.permute.xlu0 %1062
    %1064 = vset.pattern.permute.xlu0 0
    %1065 = vperm.xlu0 %1064, %v964
    %v1066 = vpop.permute.xlu0 %1065
    %1067 = vset.pattern.permute.xlu0 0
    %1068 = vperm.xlu0 %1067, %v965
    %v1069 = vpop.permute.xlu0 %1068
    %1070 = vset.pattern.permute.xlu0 0
    %1071 = vperm.xlu0 %1070, %v966
    %v1072 = vpop.permute.xlu0 %1071
    %1073 = vset.pattern.permute.xlu0 0
    %1074 = vperm.xlu0 %1073, %v967
    %v1075 = vpop.permute.xlu0 %1074
    %1076 = vset.pattern.permute.xlu0 0
    %1077 = vperm.xlu0 %1076, %v968
    %v1078 = vpop.permute.xlu0 %1077
    %1079 = vset.pattern.permute.xlu0 0
    %1080 = vperm.xlu0 %1079, %v969
    %v1081 = vpop.permute.xlu0 %1080
    %1082 = vset.pattern.permute.xlu0 0
    %1083 = vperm.xlu0 %1082, %v970
    %v1084 = vpop.permute.xlu0 %1083
    %1085 = vset.pattern.permute.xlu0 0
    %1086 = vperm.xlu0 %1085, %v971
    %v1087 = vpop.permute.xlu0 %1086
    %1088 = vset.pattern.permute.xlu0 0
    %1089 = vperm.xlu0 %1088, %v972
    %v1090 = vpop.permute.xlu0 %1089
    %1091 = vset.pattern.permute.xlu0 0
    %1092 = vperm.xlu0 %1091, %v973
    %v1093 = vpop.permute.xlu0 %1092
    %1094 = vset.pattern.permute.xlu0 0
    %1095 = vperm.xlu0 %1094, %v974
    %v1096 = vpop.permute.xlu0 %1095
    %1097 = vset.pattern.permute.xlu0 0
    %1098 = vperm.xlu0 %1097, %v975
    %v1099 = vpop.permute.xlu0 %1098
    %1100 = vset.pattern.permute.xlu0 0
    %1101 = vperm.xlu0 %1100, %v976
    %v1102 = vpop.permute.xlu0 %1101
    %1103 = vset.pattern.permute.xlu0 0
    %1104 = vperm.xlu0 %1103, %v977
    %v1105 = vpop.permute.xlu0 %1104
    %1106 = vset.pattern.permute.xlu0 0
    %1107 = vperm.xlu0 %1106, %v978
    %v1108 = vpop.permute.xlu0 %1107
    %v1109 = vlaneseq
    %v1110 = vand.u32 %v1109, 127
    %v1111 = vlaneseq
    %v1112 = vshrl.u32 %v1111, 7
    %v1113 = vsub.s32 %v1110, %v1112
    %v1114 = vrot.slane %v1015, %v1113
    %v1115 = vadd.s32 %v1110, 4294967288
    %v1116 = vlaneseq
    %v1117 = vshrl.u32 %v1116, 7
    %v1118 = vsub.s32 %v1115, %v1117
    %v1119 = vrot.slane %v1018, %v1118
    %vm1120 = vcmask 130112
    %v1121 = vsel %vm1120, %v1119, %v1114
    %v1122 = vlaneseq
    %v1123 = vshrl.u32 %v1122, 7
    %v1124 = vsub.s32 %v1110, %v1123
    %v1125 = vrot.slane %v1021, %v1124
    %v1126 = vlaneseq
    %v1127 = vshrl.u32 %v1126, 7
    %v1128 = vsub.s32 %v1115, %v1127
    %v1129 = vrot.slane %v1024, %v1128
    %v1130 = vsel %vm1120, %v1129, %v1125
    %v1131 = vlaneseq
    %v1132 = vshrl.u32 %v1131, 7
    %v1133 = vsub.s32 %v1110, %v1132
    %v1134 = vrot.slane %v1027, %v1133
    %v1135 = vlaneseq
    %v1136 = vshrl.u32 %v1135, 7
    %v1137 = vsub.s32 %v1115, %v1136
    %v1138 = vrot.slane %v1030, %v1137
    %v1139 = vsel %vm1120, %v1138, %v1134
    %v1140 = vlaneseq
    %v1141 = vshrl.u32 %v1140, 7
    %v1142 = vsub.s32 %v1110, %v1141
    %v1143 = vrot.slane %v1033, %v1142
    %v1144 = vlaneseq
    %v1145 = vshrl.u32 %v1144, 7
    %v1146 = vsub.s32 %v1115, %v1145
    %v1147 = vrot.slane %v1036, %v1146
    %v1148 = vsel %vm1120, %v1147, %v1143
    %v1149 = vlaneseq
    %v1150 = vshrl.u32 %v1149, 7
    %v1151 = vsub.s32 %v1110, %v1150
    %v1152 = vrot.slane %v1039, %v1151
    %v1153 = vlaneseq
    %v1154 = vshrl.u32 %v1153, 7
    %v1155 = vsub.s32 %v1115, %v1154
    %v1156 = vrot.slane %v1042, %v1155
    %v1157 = vsel %vm1120, %v1156, %v1152
    %v1158 = vlaneseq
    %v1159 = vshrl.u32 %v1158, 7
    %v1160 = vsub.s32 %v1110, %v1159
    %v1161 = vrot.slane %v1045, %v1160
    %v1162 = vlaneseq
    %v1163 = vshrl.u32 %v1162, 7
    %v1164 = vsub.s32 %v1115, %v1163
    %v1165 = vrot.slane %v1048, %v1164
    %v1166 = vsel %vm1120, %v1165, %v1161
    %v1167 = vlaneseq
    %v1168 = vshrl.u32 %v1167, 7
    %v1169 = vsub.s32 %v1110, %v1168
    %v1170 = vrot.slane %v1051, %v1169
    %v1171 = vlaneseq
    %v1172 = vshrl.u32 %v1171, 7
    %v1173 = vsub.s32 %v1115, %v1172
    %v1174 = vrot.slane %v1054, %v1173
    %v1175 = vsel %vm1120, %v1174, %v1170
    %v1176 = vlaneseq
    %v1177 = vshrl.u32 %v1176, 7
    %v1178 = vsub.s32 %v1110, %v1177
    %v1179 = vrot.slane %v1057, %v1178
    %v1180 = vlaneseq
    %v1181 = vshrl.u32 %v1180, 7
    %v1182 = vsub.s32 %v1115, %v1181
    %v1183 = vrot.slane %v1060, %v1182
    %v1184 = vsel %vm1120, %v1183, %v1179
    %v1185 = vlaneseq
    %v1186 = vshrl.u32 %v1185, 7
    %v1187 = vsub.s32 %v1110, %v1186
    %v1188 = vrot.slane %v1063, %v1187
    %v1189 = vlaneseq
    %v1190 = vshrl.u32 %v1189, 7
    %v1191 = vsub.s32 %v1115, %v1190
    %v1192 = vrot.slane %v1066, %v1191
    %v1193 = vsel %vm1120, %v1192, %v1188
    %v1194 = vlaneseq
    %v1195 = vshrl.u32 %v1194, 7
    %v1196 = vsub.s32 %v1110, %v1195
    %v1197 = vrot.slane %v1069, %v1196
    %v1198 = vlaneseq
    %v1199 = vshrl.u32 %v1198, 7
    %v1200 = vsub.s32 %v1115, %v1199
    %v1201 = vrot.slane %v1072, %v1200
    %v1202 = vsel %vm1120, %v1201, %v1197
    %v1203 = vlaneseq
    %v1204 = vshrl.u32 %v1203, 7
    %v1205 = vsub.s32 %v1110, %v1204
    %v1206 = vrot.slane %v1075, %v1205
    %v1207 = vlaneseq
    %v1208 = vshrl.u32 %v1207, 7
    %v1209 = vsub.s32 %v1115, %v1208
    %v1210 = vrot.slane %v1078, %v1209
    %v1211 = vsel %vm1120, %v1210, %v1206
    %v1212 = vlaneseq
    %v1213 = vshrl.u32 %v1212, 7
    %v1214 = vsub.s32 %v1110, %v1213
    %v1215 = vrot.slane %v1081, %v1214
    %v1216 = vlaneseq
    %v1217 = vshrl.u32 %v1216, 7
    %v1218 = vsub.s32 %v1115, %v1217
    %v1219 = vrot.slane %v1084, %v1218
    %v1220 = vsel %vm1120, %v1219, %v1215
    %v1221 = vlaneseq
    %v1222 = vshrl.u32 %v1221, 7
    %v1223 = vsub.s32 %v1110, %v1222
    %v1224 = vrot.slane %v1087, %v1223
    %v1225 = vlaneseq
    %v1226 = vshrl.u32 %v1225, 7
    %v1227 = vsub.s32 %v1115, %v1226
    %v1228 = vrot.slane %v1090, %v1227
    %v1229 = vsel %vm1120, %v1228, %v1224
    %v1230 = vlaneseq
    %v1231 = vshrl.u32 %v1230, 7
    %v1232 = vsub.s32 %v1110, %v1231
    %v1233 = vrot.slane %v1093, %v1232
    %v1234 = vlaneseq
    %v1235 = vshrl.u32 %v1234, 7
    %v1236 = vsub.s32 %v1115, %v1235
    %v1237 = vrot.slane %v1096, %v1236
    %v1238 = vsel %vm1120, %v1237, %v1233
    %v1239 = vlaneseq
    %v1240 = vshrl.u32 %v1239, 7
    %v1241 = vsub.s32 %v1110, %v1240
    %v1242 = vrot.slane %v1099, %v1241
    %v1243 = vlaneseq
    %v1244 = vshrl.u32 %v1243, 7
    %v1245 = vsub.s32 %v1115, %v1244
    %v1246 = vrot.slane %v1102, %v1245
    %v1247 = vsel %vm1120, %v1246, %v1242
    %v1248 = vlaneseq
    %v1249 = vshrl.u32 %v1248, 7
    %v1250 = vsub.s32 %v1110, %v1249
    %v1251 = vrot.slane %v1105, %v1250
    %v1252 = vlaneseq
    %v1253 = vshrl.u32 %v1252, 7
    %v1254 = vsub.s32 %v1115, %v1253
    %v1255 = vrot.slane %v1108, %v1254
    %v1256 = vsel %vm1120, %v1255, %v1251
    %vm1257 = vcmask 1041409
    %v1258 = vsel %vm1257, %v1130, %v1121
    %vm1259 = vcmask 1042434
    %v1260 = vsel %vm1259, %v1139, %v1258
    %vm1261 = vcmask 1043459
    %v1262 = vsel %vm1261, %v1148, %v1260
    %vm1263 = vcmask 1044484
    %v1264 = vsel %vm1263, %v1157, %v1262
    %vm1265 = vcmask 1045509
    %v1266 = vsel %vm1265, %v1166, %v1264
    %vm1267 = vcmask 1046534
    %v1268 = vsel %vm1267, %v1175, %v1266
    %vm1269 = vcmask 1047559
    %v1270 = vsel %vm1269, %v1184, %v1268
    %v1271 = vsel %vm1257, %v1202, %v1193
    %v1272 = vsel %vm1259, %v1211, %v1271
    %v1273 = vsel %vm1261, %v1220, %v1272
    %v1274 = vsel %vm1263, %v1229, %v1273
    %v1275 = vsel %vm1265, %v1238, %v1274
    %v1276 = vsel %vm1267, %v1247, %v1275
    %v1277 = vsel %vm1269, %v1256, %v1276
    %v1280 = vsel %vm979, %v1270, -1e+30
    %v1281 = vsel %vm980, %v1277, -1e+30
    %vm1282 = vcmask 130048
    %v1283 = vsel %vm1282, %v1280, -inf
    %1284 = vmax.xlane.f32.xlu0 %v1283
    %v1285 = vpop.xlane.xlu0 %1284
    %v1286 = vsel %vm1282, %v1281, -inf
    %1287 = vmax.xlane.f32.xlu0 %v1286
    %v1288 = vpop.xlane.xlu0 %1287
    %v1289 = vsub.f32 %v1280, %v1285
    %v1290 = vsub.f32 %v1281, %v1288
    %v1291 = vmul.f32 %v1289, 1.442695
    %v1292 = vpow.pop %v1291
    %v1293 = vmul.f32 %v1290, 1.442695
    %v1294 = vpow.pop %v1293
    %v1295 = vsel %vm979, %v1292, 0.0
    %v1296 = vsel %vm980, %v1294, 0.0
    %v1297 = vsel %vm1282, %v1295, 0.0
    %1298 = vadd.xlane.f32.xlu0 %v1297
    %v1299 = vpop.xlane.xlu0 %1298
    %v1300 = vsel %vm1282, %v1296, 0.0
    %1301 = vadd.xlane.f32.xlu0 %v1300
    %v1302 = vpop.xlane.xlu0 %1301
    %v1303 = vmax.f32 %v1299, 1e-12
    %v1304 = vmax.f32 %v1302, 1e-12
    %v1305 = vrcp.pop %v1303
    %v1306 = vmul.f32 %v1295, %v1305
    %v1307 = vrcp.pop %v1304
    %v1308 = vmul.f32 %v1296, %v1307
    %v1309 = vpack.c.bf16 %v1308, %v1306
    %v1310 = vld [vmem:[%s6 + $0x2] sm:$0x1]
    %v1311 = vlaneseq
    %v1312 = vshrl.u32 %v1311, 7
    %v1313 = vsub.s32 0, %v1312
    %v1314 = vrot.slane %v1310, %v1313
    %1315 = vrot.lane.b32.xlu0 %v169, 96
    %v1316 = vpop.permute.xlu0 %1315
    %1317 = vrot.lane.b32.xlu0 %v172, 96
    %v1318 = vpop.permute.xlu0 %1317
    %v1322 = vsel %vm1282, %v1309, 0
    %1324 = vmatprep.subr.mxu0 0.0
    %1325 = vmatpush1.msra.mxu0 %v1316
    %1326 = vmatprep.subr.mxu0 0.0
    %1327 = vmatpush1.msra.mxu0 %v1318
    %1328 = vmatprep.subr.mxu0 0.0
    %1329 = vmatpush1.msra.mxu0 0.0
    %1330 = vmatprep.subr.mxu0 0.0
    %1331 = vmatpush1.msra.mxu0 0.0
    %1332 = vmatprep.subr.mxu0 0.0
    %1333 = vmatpush1.msra.mxu0 0.0
    %1334 = vmatprep.subr.mxu0 0.0
    %1335 = vmatpush1.msra.mxu0 0.0
    %1336 = vmatprep.subr.mxu0 0.0
    %1337 = vmatpush1.msra.mxu0 0.0
    %1338 = vmatprep.subr.mxu0 0.0
    %1339 = vmatpush1.msra.mxu0 0.0
    %1340 = vmatprep.subr.mxu0 0.0
    %1341 = vmatpush1.msra.mxu0 0.0
    %1342 = vmatprep.subr.mxu0 0.0
    %1343 = vmatpush1.msra.mxu0 0.0
    %1344 = vmatprep.subr.mxu0 0.0
    %1345 = vmatpush1.msra.mxu0 0.0
    %1346 = vmatprep.subr.mxu0 0.0
    %1347 = vmatpush1.msra.mxu0 0.0
    %1348 = vmatprep.subr.mxu0 0.0
    %1349 = vmatpush1.msra.mxu0 0.0
    %1350 = vmatprep.subr.mxu0 0.0
    %1351 = vmatpush1.msra.mxu0 0.0
    %1352 = vmatprep.subr.mxu0 0.0
    %1353 = vmatpush1.msra.mxu0 0.0
    %1354 = vmatprep.subr.mxu0 0.0
    %1355 = vmatpush1.msra.mxu0 0.0
    %1356 = vmatprep.subr.mxu0 0.0
    %1357 = vmatpush1.msra.mxu0 0.0
    %1358 = vmatprep.subr.mxu0 0.0
    %1359 = vmatpush1.msra.mxu0 0.0
    %1360 = vmatprep.subr.mxu0 0.0
    %1361 = vmatpush1.msra.mxu0 0.0
    %1362 = vmatprep.subr.mxu0 0.0
    %1363 = vmatpush1.msra.mxu0 0.0
    %1364 = vmatprep.subr.mxu0 0.0
    %1365 = vmatpush1.msra.mxu0 0.0
    %1366 = vmatprep.subr.mxu0 0.0
    %1367 = vmatpush1.msra.mxu0 0.0
    %1368 = vmatprep.subr.mxu0 0.0
    %1369 = vmatpush1.msra.mxu0 0.0
    %1370 = vmatprep.subr.mxu0 0.0
    %1371 = vmatpush1.msra.mxu0 0.0
    %1372 = vmatprep.subr.mxu0 0.0
    %1373 = vmatpush1.msra.mxu0 0.0
    %1374 = vmatprep.subr.mxu0 0.0
    %1375 = vmatpush1.msra.mxu0 0.0
    %1376 = vmatprep.subr.mxu0 0.0
    %1377 = vmatpush1.msra.mxu0 0.0
    %1378 = vmatprep.subr.mxu0 0.0
    %1379 = vmatpush1.msra.mxu0 0.0
    %1380 = vmatprep.subr.mxu0 0.0
    %1381 = vmatpush1.msra.mxu0 0.0
    %1382 = vmatprep.subr.mxu0 0.0
    %1383 = vmatpush1.msra.mxu0 0.0
    %1384 = vmatprep.subr.mxu0 0.0
    %1385 = vmatpush1.msra.mxu0 0.0
    %1386 = vmatprep.subr.mxu0 0.0
    %1387 = vmatpush1.msra.mxu0 0.0
    %1388 = vmatprep.mubr.bf16.mxu0 0
    %1389 = vmatmul.mubr.bf16.gmra.mrb[0].mxu0 %v1322
    %v1390 = vpop.f32.mrb[0].mxu0
    %v1391 = vadd.f32 %v1314, %v1390
    %v1392 = vpop.f32.mrb[0].mxu0
    %v1393 = vpop.f32.mrb[0].mxu0
    %v1394 = vadd.f32 %v1314, %v1393
    %v1395 = vpop.f32.mrb[0].mxu0
    %1396 = vdwg.mxu0
    %vm1397 = vcmp.gt.f32.partialorder %v1391, 0.0
    %vm1398 = vcmp.gt.f32.partialorder %v1394, 0.0
    %v1399 = vmin.f32 %v1391, 0.0
    %v1400 = vmin.f32 %v1394, 0.0
    %v1401 = vmul.f32 %v1399, 1.442695
    %v1402 = vpow.pop %v1401
    %v1403 = vmul.f32 %v1400, 1.442695
    %v1404 = vpow.pop %v1403
    %v1405 = vsub.f32 %v1402, 1.0
    %v1406 = vsub.f32 %v1404, 1.0
    %v1407 = vsel %vm1397, %v1391, %v1405
    %v1408 = vsel %vm1398, %v1394, %v1406
    %v1409 = vld [vmem:[#allocation2 + $0x20] sm:$0xf]
    %v1410 = vld [vmem:[#allocation2 + $0x24] sm:$0xf]
    %v1411 = vld [vmem:[#allocation2 + $0x28] sm:$0xf]
    %v1412 = vld [vmem:[#allocation2 + $0x2c] sm:$0xf]
    %v1413 = vpack.c.bf16 %v1408, %v1407
    %v1414 = vld [vmem:[%s6 + $0x3] sm:$0x1]
    %v1415 = vlaneseq
    %v1416 = vshrl.u32 %v1415, 7
    %v1417 = vsub.s32 0, %v1416
    %v1418 = vrot.slane %v1414, %v1417
    %v1423 = vunpack.c.l.b16 %v1409
    %v1424 = vunpack.c.l.b16 %v1410
    %v1425 = vunpack.c.l.b16 %v1411
    %v1426 = vunpack.c.l.b16 %v1412
    %v1427 = vpack.c.b16 %v1424, %v1423
    %v1428 = vpack.c.b16 %v1426, %v1425
    %v1432 = vsel %vm130, %v1413, 0
    %1434 = vmatprep.subr.bf16.mxu0 0
    %1435 = vmatpush1.bf16.msra.mxu0 %v1427
    %1436 = vmatprep.subr.bf16.mxu0 0
    %1437 = vmatpush1.bf16.msra.mxu0 %v1428
    %1438 = vmatprep.subr.bf16.mxu0 0
    %1439 = vmatpush1.bf16.msra.mxu0 0
    %1440 = vmatprep.subr.bf16.mxu0 0
    %1441 = vmatpush1.bf16.msra.mxu0 0
    %1442 = vmatprep.subr.bf16.mxu0 0
    %1443 = vmatpush1.bf16.msra.mxu0 0
    %1444 = vmatprep.subr.bf16.mxu0 0
    %1445 = vmatpush1.bf16.msra.mxu0 0
    %1446 = vmatprep.subr.bf16.mxu0 0
    %1447 = vmatpush1.bf16.msra.mxu0 0
    %1448 = vmatprep.subr.bf16.mxu0 0
    %1449 = vmatpush1.bf16.msra.mxu0 0
    %1450 = vmatprep.subr.bf16.mxu0 0
    %1451 = vmatpush1.bf16.msra.mxu0 0
    %1452 = vmatprep.subr.bf16.mxu0 0
    %1453 = vmatpush1.bf16.msra.mxu0 0
    %1454 = vmatprep.subr.bf16.mxu0 0
    %1455 = vmatpush1.bf16.msra.mxu0 0
    %1456 = vmatprep.subr.bf16.mxu0 0
    %1457 = vmatpush1.bf16.msra.mxu0 0
    %1458 = vmatprep.subr.bf16.mxu0 0
    %1459 = vmatpush1.bf16.msra.mxu0 0
    %1460 = vmatprep.subr.bf16.mxu0 0
    %1461 = vmatpush1.bf16.msra.mxu0 0
    %1462 = vmatprep.subr.bf16.mxu0 0
    %1463 = vmatpush1.bf16.msra.mxu0 0
    %1464 = vmatprep.subr.bf16.mxu0 0
    %1465 = vmatpush1.bf16.msra.mxu0 0
    %1466 = vmatprep.mubr.bf16.mxu0 0
    %1467 = vmatmul.mubr.bf16.gmra.mrb[0].mxu0 %v1432
    %v1468 = vpop.f32.mrb[0].mxu0
    %v1469 = vadd.f32 %v1418, %v1468
    %v1470 = vpop.f32.mrb[0].mxu0
    %v1471 = vpop.f32.mrb[0].mxu0
    %v1472 = vadd.f32 %v1418, %v1471
    %v1473 = vpop.f32.mrb[0].mxu0
    %1474 = vdwg.mxu0
    %v1475 = vld [vmem:[#allocation2 + $0x30] sm:$0xf]
    %v1476 = vld [vmem:[#allocation2 + $0x34] sm:$0xf]
    %v1477 = vld [vmem:[#allocation2 + $0x38] sm:$0xf]
    %v1478 = vld [vmem:[#allocation2 + $0x3c] sm:$0xf]
    %v1479 = vld [vmem:[%s6 + $0x4] sm:$0x1]
    %v1480 = vlaneseq
    %v1481 = vshrl.u32 %v1480, 7
    %v1482 = vsub.s32 0, %v1481
    %v1483 = vrot.slane %v1479, %v1482
    %v1488 = vunpack.c.l.b16 %v1475
    %v1489 = vunpack.c.l.b16 %v1476
    %v1490 = vunpack.c.l.b16 %v1477
    %v1491 = vunpack.c.l.b16 %v1478
    %v1492 = vpack.c.b16 %v1489, %v1488
    %v1493 = vpack.c.b16 %v1491, %v1490
    %1496 = vmatprep.subr.bf16.mxu0 0
    %1497 = vmatpush1.bf16.msra.mxu0 %v1492
    %1498 = vmatprep.subr.bf16.mxu0 0
    %1499 = vmatpush1.bf16.msra.mxu0 %v1493
    %1500 = vmatprep.subr.bf16.mxu0 0
    %1501 = vmatpush1.bf16.msra.mxu0 0
    %1502 = vmatprep.subr.bf16.mxu0 0
    %1503 = vmatpush1.bf16.msra.mxu0 0
    %1504 = vmatprep.subr.bf16.mxu0 0
    %1505 = vmatpush1.bf16.msra.mxu0 0
    %1506 = vmatprep.subr.bf16.mxu0 0
    %1507 = vmatpush1.bf16.msra.mxu0 0
    %1508 = vmatprep.subr.bf16.mxu0 0
    %1509 = vmatpush1.bf16.msra.mxu0 0
    %1510 = vmatprep.subr.bf16.mxu0 0
    %1511 = vmatpush1.bf16.msra.mxu0 0
    %1512 = vmatprep.subr.bf16.mxu0 0
    %1513 = vmatpush1.bf16.msra.mxu0 0
    %1514 = vmatprep.subr.bf16.mxu0 0
    %1515 = vmatpush1.bf16.msra.mxu0 0
    %1516 = vmatprep.subr.bf16.mxu0 0
    %1517 = vmatpush1.bf16.msra.mxu0 0
    %1518 = vmatprep.subr.bf16.mxu0 0
    %1519 = vmatpush1.bf16.msra.mxu0 0
    %1520 = vmatprep.subr.bf16.mxu0 0
    %1521 = vmatpush1.bf16.msra.mxu0 0
    %1522 = vmatprep.subr.bf16.mxu0 0
    %1523 = vmatpush1.bf16.msra.mxu0 0
    %1524 = vmatprep.subr.bf16.mxu0 0
    %1525 = vmatpush1.bf16.msra.mxu0 0
    %1526 = vmatprep.subr.bf16.mxu0 0
    %1527 = vmatpush1.bf16.msra.mxu0 0
    %1528 = vmatprep.mubr.bf16.mxu0 0
    %1529 = vmatmul.mubr.bf16.gmra.mrb[0].mxu0 %v132
    %v1530 = vpop.f32.mrb[0].mxu0
    %v1531 = vadd.f32 %v1483, %v1530
    %v1532 = vpop.f32.mrb[0].mxu0
    %v1533 = vpop.f32.mrb[0].mxu0
    %v1534 = vadd.f32 %v1483, %v1533
    %v1535 = vpop.f32.mrb[0].mxu0
    %1536 = vdwg.mxu0
    %v1537 = vadd.f32 %v1469, %v1531
    %v1538 = vadd.f32 %v1472, %v1534
    %v1539 = vxor.u32 %v1537, 2147483648
    %v1540 = vxor.u32 %v1538, 2147483648
    %v1541 = vmul.f32 %v1539, 1.442695
    %v1542 = vpow.pop %v1541
    %v1543 = vmul.f32 %v1540, 1.442695
    %v1544 = vpow.pop %v1543
    %v1545 = vadd.f32 %v1542, 1.0
    %v1546 = vadd.f32 %v1544, 1.0
    %v1547 = vrcp.pop %v1545
    %v1548 = vmul.f32 1.0, %v1547
    %v1549 = vrcp.pop %v1546
    %v1550 = vmul.f32 1.0, %v1549
    %1553 = vrot.lane.b32.xlu0 %v1531, 64
    %v1554 = vpop.permute.xlu0 %1553
    %1555 = vrot.lane.b32.xlu0 %v1534, 64
    %v1556 = vpop.permute.xlu0 %1555
    %v1559 = vmul.f32 %v1548, %v1554
    %v1560 = vmul.f32 %v1550, %v1556
    %1563 = vrot.lane.b32.xlu0 %v1559, 64
    %v1564 = vpop.permute.xlu0 %1563
    %1565 = vrot.lane.b32.xlu0 %v1560, 64
    %v1566 = vpop.permute.xlu0 %1565
    %v1569 = vadd.f32 %v1469, %v1564
    %v1570 = vadd.f32 %v1472, %v1566
    %v1571 = vtanh.pop %v1569
    %v1572 = vtanh.pop %v1570
    %v1573 = vsub.f32 1.0, %v1548
    %v1574 = vsub.f32 1.0, %v1550
    %1577 = vrot.lane.b32.xlu0 %v1571, 96
    %v1578 = vpop.permute.xlu0 %1577
    %1579 = vrot.lane.b32.xlu0 %v1572, 96
    %v1580 = vpop.permute.xlu0 %1579
    %v1583 = vmul.f32 %v1573, %v1578
    %v1584 = vmul.f32 %v1574, %v1580
    %1587 = vrot.lane.b32.xlu0 %v111, 32
    %v1588 = vpop.permute.xlu0 %1587
    %1589 = vrot.lane.b32.xlu0 %v112, 32
    %v1590 = vpop.permute.xlu0 %1589
    %v1593 = vmul.f32 %v1548, %v1588
    %v1594 = vmul.f32 %v1550, %v1590
    %v1595 = vadd.f32 %v1583, %v1593
    %v1596 = vadd.f32 %v1584, %v1594
    %v1597 = vmax.f32 %v1595, 0.0
    %v1598 = vmax.f32 %v1596, 0.0
    %v1599 = vld [vmem:[#allocation2 + $0x40] sm:$0xf]
    %v1600 = vld [vmem:[#allocation2 + $0x44] sm:$0xf]
    %v1601 = vld [vmem:[#allocation2 + $0x48] sm:$0xf]
    %v1602 = vld [vmem:[#allocation2 + $0x4c] sm:$0xf]
    %v1603 = vpack.c.bf16 %v1598, %v1597
    %1605 = vrot.lane.b32.xlu0 %v1603, 96
    %v1606 = vpop.permute.xlu0 %1605
    %v1611 = vunpack.c.l.b16 %v1599
    %v1612 = vunpack.c.l.b16 %v1600
    %v1613 = vunpack.c.l.b16 %v1601
    %v1614 = vunpack.c.l.b16 %v1602
    %v1615 = vpack.c.b16 %v1612, %v1611
    %v1616 = vpack.c.b16 %v1614, %v1613
    %v1620 = vsel %vm130, %v1606, 0
    %1622 = vmatprep.subr.bf16.mxu0 0
    %1623 = vmatpush1.bf16.msra.mxu0 %v1615
    %1624 = vmatprep.subr.bf16.mxu0 0
    %1625 = vmatpush1.bf16.msra.mxu0 %v1616
    %1626 = vmatprep.subr.bf16.mxu0 0
    %1627 = vmatpush1.bf16.msra.mxu0 0
    %1628 = vmatprep.subr.bf16.mxu0 0
    %1629 = vmatpush1.bf16.msra.mxu0 0
    %1630 = vmatprep.subr.bf16.mxu0 0
    %1631 = vmatpush1.bf16.msra.mxu0 0
    %1632 = vmatprep.subr.bf16.mxu0 0
    %1633 = vmatpush1.bf16.msra.mxu0 0
    %1634 = vmatprep.subr.bf16.mxu0 0
    %1635 = vmatpush1.bf16.msra.mxu0 0
    %1636 = vmatprep.subr.bf16.mxu0 0
    %1637 = vmatpush1.bf16.msra.mxu0 0
    %1638 = vmatprep.subr.bf16.mxu0 0
    %1639 = vmatpush1.bf16.msra.mxu0 0
    %1640 = vmatprep.subr.bf16.mxu0 0
    %1641 = vmatpush1.bf16.msra.mxu0 0
    %1642 = vmatprep.subr.bf16.mxu0 0
    %1643 = vmatpush1.bf16.msra.mxu0 0
    %1644 = vmatprep.subr.bf16.mxu0 0
    %1645 = vmatpush1.bf16.msra.mxu0 0
    %1646 = vmatprep.subr.bf16.mxu0 0
    %1647 = vmatpush1.bf16.msra.mxu0 0
    %1648 = vmatprep.subr.bf16.mxu0 0
    %1649 = vmatpush1.bf16.msra.mxu0 0
    %1650 = vmatprep.subr.bf16.mxu0 0
    %1651 = vmatpush1.bf16.msra.mxu0 0
    %1652 = vmatprep.subr.bf16.mxu0 0
    %1653 = vmatpush1.bf16.msra.mxu0 0
    %1654 = vmatprep.mubr.bf16.mxu0 0
    %1655 = vmatmul.mubr.bf16.gmra.mrb[0].mxu0 %v1620
    %v1656 = vpop.f32.mrb[0].mxu0
    %v1657 = vadd.f32 0.0, %v1656
    %v1658 = vpop.f32.mrb[0].mxu0
    %v1659 = vpop.f32.mrb[0].mxu0
    %v1660 = vadd.f32 0.0, %v1659
    %v1661 = vpop.f32.mrb[0].mxu0
    %1662 = vdwg.mxu0
    %v1663 = vld [vmem:[#allocation2 + $0x50] sm:$0x1]
    %v1664 = vpack.c.bf16 %v1660, %v1657
    %v1666 = vsel %vm130, %v1663, 0
    %v1669 = vsel %vm130, %v1664, 0
    %1671 = vmatprep.subr.bf16.mxu0 0
    %1672 = vmatpush1.bf16.xpose.msra.mxu0 %v1669
    %1673 = vmatprep.subr.bf16.mxu0 0
    %1674 = vmatpush1.bf16.xpose.msra.mxu0 0
    %1675 = vmatprep.subr.bf16.mxu0 0
    %1676 = vmatpush1.bf16.xpose.msra.mxu0 0
    %1677 = vmatprep.subr.bf16.mxu0 0
    %1678 = vmatpush1.bf16.xpose.msra.mxu0 0
    %1679 = vmatprep.subr.bf16.mxu0 0
    %1680 = vmatpush1.bf16.xpose.msra.mxu0 0
    %1681 = vmatprep.subr.bf16.mxu0 0
    %1682 = vmatpush1.bf16.xpose.msra.mxu0 0
    %1683 = vmatprep.subr.bf16.mxu0 0
    %1684 = vmatpush1.bf16.xpose.msra.mxu0 0
    %1685 = vmatprep.subr.bf16.mxu0 0
    %1686 = vmatpush1.bf16.xpose.msra.mxu0 0
    %1687 = vmatprep.subr.bf16.mxu0 0
    %1688 = vmatpush1.bf16.xpose.msra.mxu0 0
    %1689 = vmatprep.subr.bf16.mxu0 0
    %1690 = vmatpush1.bf16.xpose.msra.mxu0 0
    %1691 = vmatprep.subr.bf16.mxu0 0
    %1692 = vmatpush1.bf16.xpose.msra.mxu0 0
    %1693 = vmatprep.subr.bf16.mxu0 0
    %1694 = vmatpush1.bf16.xpose.msra.mxu0 0
    %1695 = vmatprep.subr.bf16.mxu0 0
    %1696 = vmatpush1.bf16.xpose.msra.mxu0 0
    %1697 = vmatprep.subr.bf16.mxu0 0
    %1698 = vmatpush1.bf16.xpose.msra.mxu0 0
    %1699 = vmatprep.subr.bf16.mxu0 0
    %1700 = vmatpush1.bf16.xpose.msra.mxu0 0
    %1701 = vmatprep.subr.bf16.mxu0 0
    %1702 = vmatpush1.bf16.xpose.msra.mxu0 0
    %1703 = vmatprep.mubr.bf16.mxu0 0
    %1704 = vmatmul.mubr.bf16.gmra.mrb[0].mxu0 %v1666
    %v1705 = vpop.f32.mrb[0].mxu0
    %v1706 = vadd.f32 0.0, %v1705
    %v1707 = vpop.f32.mrb[0].mxu0
    %v1708 = vpop.f32.mrb[0].mxu0
    %v1709 = vpop.f32.mrb[0].mxu0
    %1710 = vdwg.mxu0
    %1712 = vset.pattern.permute.xlu0 32
    %1713 = vperm.xlu0 %1712, %v1657
    %v1714 = vpop.permute.xlu0 %1713
    %1717 = vset.pattern.permute.xlu0 32
    %1718 = vperm.xlu0 %1717, %v1660
    %v1719 = vpop.permute.xlu0 %1718
    %v1721 = vlaneseq
    %v1722 = vshrl.u32 %v1721, 7
    %v1723 = vsub.s32 0, %v1722
    %v1724 = vrot.slane %v1706, %v1723
    %v1725 = vadd.f32 %v1714, %v1724
    %v1726 = vadd.f32 %v1719, %v1724
    %vm1727 = vcmp.gt.f32.partialorder %v1725, 0.0
    %vm1728 = vcmp.gt.f32.partialorder %v1726, 0.0
    %v1729 = vmul.f32 %v1725, 0.01
    %v1730 = vmul.f32 %v1726, 0.01
    %v1731 = vsel %vm1727, %v1725, %v1729
    %v1732 = vsel %vm1728, %v1726, %v1730
    %v1733 = vsel %vm979, %v1731, -1e+30
    %v1734 = vsel %vm980, %v1732, -1e+30
    %v1735 = vsel %vm1282, %v1733, -inf
    %1736 = vmax.xlane.f32.xlu0 %v1735
    %v1737 = vpop.xlane.xlu0 %1736
    %v1738 = vsel %vm1282, %v1734, -inf
    %1739 = vmax.xlane.f32.xlu0 %v1738
    %v1740 = vpop.xlane.xlu0 %1739
    %v1741 = vsub.f32 %v1733, %v1737
    %v1742 = vsub.f32 %v1734, %v1740
    %v1743 = vmul.f32 %v1741, 1.442695
    %v1744 = vpow.pop %v1743
    %v1745 = vmul.f32 %v1742, 1.442695
    %v1746 = vpow.pop %v1745
    %v1747 = vsel %vm979, %v1744, 0.0
    %v1748 = vsel %vm980, %v1746, 0.0
    %v1749 = vsel %vm1282, %v1747, 0.0
    %1750 = vadd.xlane.f32.xlu0 %v1749
    %v1751 = vpop.xlane.xlu0 %1750
    %v1752 = vsel %vm1282, %v1748, 0.0
    %1753 = vadd.xlane.f32.xlu0 %v1752
    %v1754 = vpop.xlane.xlu0 %1753
    %v1755 = vmax.f32 %v1751, 1e-12
    %v1756 = vmax.f32 %v1754, 1e-12
    %v1757 = vrcp.pop %v1755
    %v1758 = vmul.f32 %v1747, %v1757
    %v1759 = vrcp.pop %v1756
    %v1760 = vmul.f32 %v1748, %v1759
    %v1761 = vpack.c.bf16 %v1760, %v1758
    %v1762 = vld [vmem:[%s6 + $0x5] sm:$0x1]
    %v1763 = vlaneseq
    %v1764 = vshrl.u32 %v1763, 7
    %v1765 = vsub.s32 0, %v1764
    %v1766 = vrot.slane %v1762, %v1765
    %v1768 = vsel %vm1282, %v1761, 0
    %1770 = vmatprep.subr.mxu0 0.0
    %1771 = vmatpush1.msra.mxu0 %v1657
    %1772 = vmatprep.subr.mxu0 0.0
    %1773 = vmatpush1.msra.mxu0 %v1660
    %1774 = vmatprep.subr.mxu0 0.0
    %1775 = vmatpush1.msra.mxu0 0.0
    %1776 = vmatprep.subr.mxu0 0.0
    %1777 = vmatpush1.msra.mxu0 0.0
    %1778 = vmatprep.subr.mxu0 0.0
    %1779 = vmatpush1.msra.mxu0 0.0
    %1780 = vmatprep.subr.mxu0 0.0
    %1781 = vmatpush1.msra.mxu0 0.0
    %1782 = vmatprep.subr.mxu0 0.0
    %1783 = vmatpush1.msra.mxu0 0.0
    %1784 = vmatprep.subr.mxu0 0.0
    %1785 = vmatpush1.msra.mxu0 0.0
    %1786 = vmatprep.subr.mxu0 0.0
    %1787 = vmatpush1.msra.mxu0 0.0
    %1788 = vmatprep.subr.mxu0 0.0
    %1789 = vmatpush1.msra.mxu0 0.0
    %1790 = vmatprep.subr.mxu0 0.0
    %1791 = vmatpush1.msra.mxu0 0.0
    %1792 = vmatprep.subr.mxu0 0.0
    %1793 = vmatpush1.msra.mxu0 0.0
    %1794 = vmatprep.subr.mxu0 0.0
    %1795 = vmatpush1.msra.mxu0 0.0
    %1796 = vmatprep.subr.mxu0 0.0
    %1797 = vmatpush1.msra.mxu0 0.0
    %1798 = vmatprep.subr.mxu0 0.0
    %1799 = vmatpush1.msra.mxu0 0.0
    %1800 = vmatprep.subr.mxu0 0.0
    %1801 = vmatpush1.msra.mxu0 0.0
    %1802 = vmatprep.subr.mxu0 0.0
    %1803 = vmatpush1.msra.mxu0 0.0
    %1804 = vmatprep.subr.mxu0 0.0
    %1805 = vmatpush1.msra.mxu0 0.0
    %1806 = vmatprep.subr.mxu0 0.0
    %1807 = vmatpush1.msra.mxu0 0.0
    %1808 = vmatprep.subr.mxu0 0.0
    %1809 = vmatpush1.msra.mxu0 0.0
    %1810 = vmatprep.subr.mxu0 0.0
    %1811 = vmatpush1.msra.mxu0 0.0
    %1812 = vmatprep.subr.mxu0 0.0
    %1813 = vmatpush1.msra.mxu0 0.0
    %1814 = vmatprep.subr.mxu0 0.0
    %1815 = vmatpush1.msra.mxu0 0.0
    %1816 = vmatprep.subr.mxu0 0.0
    %1817 = vmatpush1.msra.mxu0 0.0
    %1818 = vmatprep.subr.mxu0 0.0
    %1819 = vmatpush1.msra.mxu0 0.0
    %1820 = vmatprep.subr.mxu0 0.0
    %1821 = vmatpush1.msra.mxu0 0.0
    %1822 = vmatprep.subr.mxu0 0.0
    %1823 = vmatpush1.msra.mxu0 0.0
    %1824 = vmatprep.subr.mxu0 0.0
    %1825 = vmatpush1.msra.mxu0 0.0
    %1826 = vmatprep.subr.mxu0 0.0
    %1827 = vmatpush1.msra.mxu0 0.0
    %1828 = vmatprep.subr.mxu0 0.0
    %1829 = vmatpush1.msra.mxu0 0.0
    %1830 = vmatprep.subr.mxu0 0.0
    %1831 = vmatpush1.msra.mxu0 0.0
    %1832 = vmatprep.subr.mxu0 0.0
    %1833 = vmatpush1.msra.mxu0 0.0
    %1834 = vmatprep.mubr.bf16.mxu0 0
    %1835 = vmatmul.mubr.bf16.gmra.mrb[0].mxu0 %v1768
    %v1836 = vpop.f32.mrb[0].mxu0
    %v1837 = vadd.f32 %v1766, %v1836
    %v1838 = vpop.f32.mrb[0].mxu0
    %v1839 = vpop.f32.mrb[0].mxu0
    %v1840 = vadd.f32 %v1766, %v1839
    %v1841 = vpop.f32.mrb[0].mxu0
    %1842 = vdwg.mxu0
    %vm1843 = vcmp.gt.f32.partialorder %v1837, 0.0
    %vm1844 = vcmp.gt.f32.partialorder %v1840, 0.0
    %v1845 = vmin.f32 %v1837, 0.0
    %v1846 = vmin.f32 %v1840, 0.0
    %v1847 = vmul.f32 %v1845, 1.442695
    %v1848 = vpow.pop %v1847
    %v1849 = vmul.f32 %v1846, 1.442695
    %v1850 = vpow.pop %v1849
    %v1851 = vsub.f32 %v1848, 1.0
    %v1852 = vsub.f32 %v1850, 1.0
    %v1853 = vsel %vm1843, %v1837, %v1851
    %v1854 = vsel %vm1844, %v1840, %v1852
    %v1855 = vld [vmem:[#allocation2 + $0x58] sm:$0xf]
    %v1856 = vld [vmem:[#allocation2 + $0x5c] sm:$0xf]
    %v1857 = vld [vmem:[#allocation2 + $0x60] sm:$0xf]
    %v1858 = vld [vmem:[#allocation2 + $0x64] sm:$0xf]
    %v1859 = vpack.c.bf16 %v1854, %v1853
    %v1860 = vld [vmem:[%s6 + $0x6] sm:$0x1]
    %v1861 = vlaneseq
    %v1862 = vshrl.u32 %v1861, 7
    %v1863 = vsub.s32 0, %v1862
    %v1864 = vrot.slane %v1860, %v1863
    %v1869 = vunpack.c.l.b16 %v1855
    %v1870 = vunpack.c.l.b16 %v1856
    %v1871 = vunpack.c.l.b16 %v1857
    %v1872 = vunpack.c.l.b16 %v1858
    %v1873 = vpack.c.b16 %v1870, %v1869
    %v1874 = vpack.c.b16 %v1872, %v1871
    %v1878 = vsel %vm130, %v1859, 0
    %1880 = vmatprep.subr.bf16.mxu0 0
    %1881 = vmatpush1.bf16.msra.mxu0 %v1873
    %1882 = vmatprep.subr.bf16.mxu0 0
    %1883 = vmatpush1.bf16.msra.mxu0 %v1874
    %1884 = vmatprep.subr.bf16.mxu0 0
    %1885 = vmatpush1.bf16.msra.mxu0 0
    %1886 = vmatprep.subr.bf16.mxu0 0
    %1887 = vmatpush1.bf16.msra.mxu0 0
    %1888 = vmatprep.subr.bf16.mxu0 0
    %1889 = vmatpush1.bf16.msra.mxu0 0
    %1890 = vmatprep.subr.bf16.mxu0 0
    %1891 = vmatpush1.bf16.msra.mxu0 0
    %1892 = vmatprep.subr.bf16.mxu0 0
    %1893 = vmatpush1.bf16.msra.mxu0 0
    %1894 = vmatprep.subr.bf16.mxu0 0
    %1895 = vmatpush1.bf16.msra.mxu0 0
    %1896 = vmatprep.subr.bf16.mxu0 0
    %1897 = vmatpush1.bf16.msra.mxu0 0
    %1898 = vmatprep.subr.bf16.mxu0 0
    %1899 = vmatpush1.bf16.msra.mxu0 0
    %1900 = vmatprep.subr.bf16.mxu0 0
    %1901 = vmatpush1.bf16.msra.mxu0 0
    %1902 = vmatprep.subr.bf16.mxu0 0
    %1903 = vmatpush1.bf16.msra.mxu0 0
    %1904 = vmatprep.subr.bf16.mxu0 0
    %1905 = vmatpush1.bf16.msra.mxu0 0
    %1906 = vmatprep.subr.bf16.mxu0 0
    %1907 = vmatpush1.bf16.msra.mxu0 0
    %1908 = vmatprep.subr.bf16.mxu0 0
    %1909 = vmatpush1.bf16.msra.mxu0 0
    %1910 = vmatprep.subr.bf16.mxu0 0
    %1911 = vmatpush1.bf16.msra.mxu0 0
    %1912 = vmatprep.mubr.bf16.mxu0 0
    %1913 = vmatmul.mubr.bf16.gmra.mrb[0].mxu0 %v1878
    %v1914 = vpop.f32.mrb[0].mxu0
    %v1915 = vadd.f32 %v1864, %v1914
    %v1916 = vpop.f32.mrb[0].mxu0
    %v1917 = vpop.f32.mrb[0].mxu0
    %v1918 = vadd.f32 %v1864, %v1917
    %v1919 = vpop.f32.mrb[0].mxu0
    %1920 = vdwg.mxu0
    %v1921 = vld [vmem:[#allocation2 + $0x68] sm:$0xf]
    %v1922 = vld [vmem:[#allocation2 + $0x6c] sm:$0xf]
    %v1923 = vld [vmem:[#allocation2 + $0x70] sm:$0xf]
    %v1924 = vld [vmem:[#allocation2 + $0x74] sm:$0xf]
    %v1925 = vld [vmem:[%s6 + $0x7] sm:$0x1]
    %v1926 = vlaneseq
    %v1927 = vshrl.u32 %v1926, 7
    %v1928 = vsub.s32 0, %v1927
    %v1929 = vrot.slane %v1925, %v1928
    %v1934 = vunpack.c.l.b16 %v1921
    %v1935 = vunpack.c.l.b16 %v1922
    %v1936 = vunpack.c.l.b16 %v1923
    %v1937 = vunpack.c.l.b16 %v1924
    %v1938 = vpack.c.b16 %v1935, %v1934
    %v1939 = vpack.c.b16 %v1937, %v1936
    %1942 = vmatprep.subr.bf16.mxu0 0
    %1943 = vmatpush1.bf16.msra.mxu0 %v1938
    %1944 = vmatprep.subr.bf16.mxu0 0
    %1945 = vmatpush1.bf16.msra.mxu0 %v1939
    %1946 = vmatprep.subr.bf16.mxu0 0
    %1947 = vmatpush1.bf16.msra.mxu0 0
    %1948 = vmatprep.subr.bf16.mxu0 0
    %1949 = vmatpush1.bf16.msra.mxu0 0
    %1950 = vmatprep.subr.bf16.mxu0 0
    %1951 = vmatpush1.bf16.msra.mxu0 0
    %1952 = vmatprep.subr.bf16.mxu0 0
    %1953 = vmatpush1.bf16.msra.mxu0 0
    %1954 = vmatprep.subr.bf16.mxu0 0
    %1955 = vmatpush1.bf16.msra.mxu0 0
    %1956 = vmatprep.subr.bf16.mxu0 0
    %1957 = vmatpush1.bf16.msra.mxu0 0
    %1958 = vmatprep.subr.bf16.mxu0 0
    %1959 = vmatpush1.bf16.msra.mxu0 0
    %1960 = vmatprep.subr.bf16.mxu0 0
    %1961 = vmatpush1.bf16.msra.mxu0 0
    %1962 = vmatprep.subr.bf16.mxu0 0
    %1963 = vmatpush1.bf16.msra.mxu0 0
    %1964 = vmatprep.subr.bf16.mxu0 0
    %1965 = vmatpush1.bf16.msra.mxu0 0
    %1966 = vmatprep.subr.bf16.mxu0 0
    %1967 = vmatpush1.bf16.msra.mxu0 0
    %1968 = vmatprep.subr.bf16.mxu0 0
    %1969 = vmatpush1.bf16.msra.mxu0 0
    %1970 = vmatprep.subr.bf16.mxu0 0
    %1971 = vmatpush1.bf16.msra.mxu0 0
    %1972 = vmatprep.subr.bf16.mxu0 0
    %1973 = vmatpush1.bf16.msra.mxu0 0
    %1974 = vmatprep.mubr.bf16.mxu0 0
    %1975 = vmatmul.mubr.bf16.gmra.mrb[0].mxu0 %v1620
    %v1976 = vpop.f32.mrb[0].mxu0
    %v1977 = vadd.f32 %v1929, %v1976
    %v1978 = vpop.f32.mrb[0].mxu0
    %v1979 = vpop.f32.mrb[0].mxu0
    %v1980 = vadd.f32 %v1929, %v1979
    %v1981 = vpop.f32.mrb[0].mxu0
    %1982 = vdwg.mxu0
    %v1983 = vadd.f32 %v1915, %v1977
    %v1984 = vadd.f32 %v1918, %v1980
    %v1985 = vxor.u32 %v1983, 2147483648
    %v1986 = vxor.u32 %v1984, 2147483648
    %v1987 = vmul.f32 %v1985, 1.442695
    %v1988 = vpow.pop %v1987
    %v1989 = vmul.f32 %v1986, 1.442695
    %v1990 = vpow.pop %v1989
    %v1991 = vadd.f32 %v1988, 1.0
    %v1992 = vadd.f32 %v1990, 1.0
    %v1993 = vrcp.pop %v1991
    %v1994 = vmul.f32 1.0, %v1993
    %v1995 = vrcp.pop %v1992
    %v1996 = vmul.f32 1.0, %v1995
    %1999 = vrot.lane.b32.xlu0 %v1977, 64
    %v2000 = vpop.permute.xlu0 %1999
    %2001 = vrot.lane.b32.xlu0 %v1980, 64
    %v2002 = vpop.permute.xlu0 %2001
    %v2005 = vmul.f32 %v1994, %v2000
    %v2006 = vmul.f32 %v1996, %v2002
    %2009 = vrot.lane.b32.xlu0 %v2005, 64
    %v2010 = vpop.permute.xlu0 %2009
    %2011 = vrot.lane.b32.xlu0 %v2006, 64
    %v2012 = vpop.permute.xlu0 %2011
    %v2015 = vadd.f32 %v1915, %v2010
    %v2016 = vadd.f32 %v1918, %v2012
    %v2017 = vtanh.pop %v2015
    %v2018 = vtanh.pop %v2016
    %v2019 = vsub.f32 1.0, %v1994
    %v2020 = vsub.f32 1.0, %v1996
    %2023 = vrot.lane.b32.xlu0 %v2017, 96
    %v2024 = vpop.permute.xlu0 %2023
    %2025 = vrot.lane.b32.xlu0 %v2018, 96
    %v2026 = vpop.permute.xlu0 %2025
    %v2029 = vmul.f32 %v2019, %v2024
    %v2030 = vmul.f32 %v2020, %v2026
    %v2031 = vmul.f32 %v1994, %v1597
    %v2032 = vmul.f32 %v1996, %v1598
    %v2033 = vadd.f32 %v2029, %v2031
    %v2034 = vadd.f32 %v2030, %v2032
    %v2035 = vmax.f32 %v2033, 0.0
    %v2036 = vmax.f32 %v2034, 0.0
    %v2037 = vpack.c.bf16 %v44, %v44
    %2040 = vrot.lane.b32.xlu0 %v2035, 96
    %v2041 = vpop.permute.xlu0 %2040
    %2042 = vrot.lane.b32.xlu0 %v2036, 96
    %v2043 = vpop.permute.xlu0 %2042
    %v2047 = vsel %vm1282, %v2037, 0
    %2049 = vmatprep.subr.mxu0 0.0
    %2050 = vmatpush1.msra.mxu0 %v2041
    %2051 = vmatprep.subr.mxu0 0.0
    %2052 = vmatpush1.msra.mxu0 %v2043
    %2053 = vmatprep.subr.mxu0 0.0
    %2054 = vmatpush1.msra.mxu0 0.0
    %2055 = vmatprep.subr.mxu0 0.0
    %2056 = vmatpush1.msra.mxu0 0.0
    %2057 = vmatprep.subr.mxu0 0.0
    %2058 = vmatpush1.msra.mxu0 0.0
    %2059 = vmatprep.subr.mxu0 0.0
    %2060 = vmatpush1.msra.mxu0 0.0
    %2061 = vmatprep.subr.mxu0 0.0
    %2062 = vmatpush1.msra.mxu0 0.0
    %2063 = vmatprep.subr.mxu0 0.0
    %2064 = vmatpush1.msra.mxu0 0.0
    %2065 = vmatprep.subr.mxu0 0.0
    %2066 = vmatpush1.msra.mxu0 0.0
    %2067 = vmatprep.subr.mxu0 0.0
    %2068 = vmatpush1.msra.mxu0 0.0
    %2069 = vmatprep.subr.mxu0 0.0
    %2070 = vmatpush1.msra.mxu0 0.0
    %2071 = vmatprep.subr.mxu0 0.0
    %2072 = vmatpush1.msra.mxu0 0.0
    %2073 = vmatprep.subr.mxu0 0.0
    %2074 = vmatpush1.msra.mxu0 0.0
    %2075 = vmatprep.subr.mxu0 0.0
    %2076 = vmatpush1.msra.mxu0 0.0
    %2077 = vmatprep.subr.mxu0 0.0
    %2078 = vmatpush1.msra.mxu0 0.0
    %2079 = vmatprep.subr.mxu0 0.0
    %2080 = vmatpush1.msra.mxu0 0.0
    %2081 = vmatprep.subr.mxu0 0.0
    %2082 = vmatpush1.msra.mxu0 0.0
    %2083 = vmatprep.subr.mxu0 0.0
    %2084 = vmatpush1.msra.mxu0 0.0
    %2085 = vmatprep.subr.mxu0 0.0
    %2086 = vmatpush1.msra.mxu0 0.0
    %2087 = vmatprep.subr.mxu0 0.0
    %2088 = vmatpush1.msra.mxu0 0.0
    %2089 = vmatprep.subr.mxu0 0.0
    %2090 = vmatpush1.msra.mxu0 0.0
    %2091 = vmatprep.subr.mxu0 0.0
    %2092 = vmatpush1.msra.mxu0 0.0
    %2093 = vmatprep.subr.mxu0 0.0
    %2094 = vmatpush1.msra.mxu0 0.0
    %2095 = vmatprep.subr.mxu0 0.0
    %2096 = vmatpush1.msra.mxu0 0.0
    %2097 = vmatprep.subr.mxu0 0.0
    %2098 = vmatpush1.msra.mxu0 0.0
    %2099 = vmatprep.subr.mxu0 0.0
    %2100 = vmatpush1.msra.mxu0 0.0
    %2101 = vmatprep.subr.mxu0 0.0
    %2102 = vmatpush1.msra.mxu0 0.0
    %2103 = vmatprep.subr.mxu0 0.0
    %2104 = vmatpush1.msra.mxu0 0.0
    %2105 = vmatprep.subr.mxu0 0.0
    %2106 = vmatpush1.msra.mxu0 0.0
    %2107 = vmatprep.subr.mxu0 0.0
    %2108 = vmatpush1.msra.mxu0 0.0
    %2109 = vmatprep.subr.mxu0 0.0
    %2110 = vmatpush1.msra.mxu0 0.0
    %2111 = vmatprep.subr.mxu0 0.0
    %2112 = vmatpush1.msra.mxu0 0.0
    %2113 = vmatprep.mubr.bf16.mxu0 0
    %2114 = vmatmul.mubr.bf16.gmra.mrb[0].mxu0 %v2047
    %v2115 = vpop.f32.mrb[0].mxu0
    %v2116 = vadd.f32 0.0, %v2115
    %v2117 = vpop.f32.mrb[0].mxu0
    %v2118 = vpop.f32.mrb[0].mxu0
    %v2119 = vpop.f32.mrb[0].mxu0
    %2120 = vdwg.mxu0
    %v2121 = vmax.f32 %v2116, 0.0
    %v2122 = vld [vmem:[#allocation2 + $0x78] sm:$0xf]
    %v2123 = vld [vmem:[#allocation2 + $0x7c] sm:$0xf]
    %v2124 = vld [vmem:[#allocation2 + $0x80] sm:$0xf]
    %v2125 = vld [vmem:[#allocation2 + $0x84] sm:$0xf]
    %v2126 = vpack.c.bf16 %v2036, %v2035
    %2128 = vrot.lane.b32.xlu0 %v2126, 96
    %v2129 = vpop.permute.xlu0 %2128
    %v2134 = vunpack.c.l.b16 %v2122
    %v2135 = vunpack.c.l.b16 %v2123
    %v2136 = vunpack.c.l.b16 %v2124
    %v2137 = vunpack.c.l.b16 %v2125
    %v2138 = vpack.c.b16 %v2135, %v2134
    %v2139 = vpack.c.b16 %v2137, %v2136
    %v2143 = vsel %vm130, %v2129, 0
    %2145 = vmatprep.subr.bf16.mxu0 0
    %2146 = vmatpush1.bf16.msra.mxu0 %v2138
    %2147 = vmatprep.subr.bf16.mxu0 0
    %2148 = vmatpush1.bf16.msra.mxu0 %v2139
    %2149 = vmatprep.subr.bf16.mxu0 0
    %2150 = vmatpush1.bf16.msra.mxu0 0
    %2151 = vmatprep.subr.bf16.mxu0 0
    %2152 = vmatpush1.bf16.msra.mxu0 0
    %2153 = vmatprep.subr.bf16.mxu0 0
    %2154 = vmatpush1.bf16.msra.mxu0 0
    %2155 = vmatprep.subr.bf16.mxu0 0
    %2156 = vmatpush1.bf16.msra.mxu0 0
    %2157 = vmatprep.subr.bf16.mxu0 0
    %2158 = vmatpush1.bf16.msra.mxu0 0
    %2159 = vmatprep.subr.bf16.mxu0 0
    %2160 = vmatpush1.bf16.msra.mxu0 0
    %2161 = vmatprep.subr.bf16.mxu0 0
    %2162 = vmatpush1.bf16.msra.mxu0 0
    %2163 = vmatprep.subr.bf16.mxu0 0
    %2164 = vmatpush1.bf16.msra.mxu0 0
    %2165 = vmatprep.subr.bf16.mxu0 0
    %2166 = vmatpush1.bf16.msra.mxu0 0
    %2167 = vmatprep.subr.bf16.mxu0 0
    %2168 = vmatpush1.bf16.msra.mxu0 0
    %2169 = vmatprep.subr.bf16.mxu0 0
    %2170 = vmatpush1.bf16.msra.mxu0 0
    %2171 = vmatprep.subr.bf16.mxu0 0
    %2172 = vmatpush1.bf16.msra.mxu0 0
    %2173 = vmatprep.subr.bf16.mxu0 0
    %2174 = vmatpush1.bf16.msra.mxu0 0
    %2175 = vmatprep.subr.bf16.mxu0 0
    %2176 = vmatpush1.bf16.msra.mxu0 0
    %2177 = vmatprep.mubr.bf16.mxu0 0
    %2178 = vmatmul.mubr.bf16.gmra.mrb[0].mxu0 %v2143
    %v2179 = vpop.f32.mrb[0].mxu0
    %v2180 = vadd.f32 0.0, %v2179
    %v2181 = vpop.f32.mrb[0].mxu0
    %v2182 = vpop.f32.mrb[0].mxu0
    %v2183 = vadd.f32 0.0, %v2182
    %v2184 = vpop.f32.mrb[0].mxu0
    %2185 = vdwg.mxu0
    %v2186 = vld [vmem:[#allocation2 + $0x88] sm:$0x1]
    %v2187 = vpack.c.bf16 %v2183, %v2180
    %v2189 = vsel %vm130, %v2186, 0
    %v2192 = vsel %vm130, %v2187, 0
    %2194 = vmatprep.subr.bf16.mxu0 0
    %2195 = vmatpush1.bf16.xpose.msra.mxu0 %v2192
    %2196 = vmatprep.subr.bf16.mxu0 0
    %2197 = vmatpush1.bf16.xpose.msra.mxu0 0
    %2198 = vmatprep.subr.bf16.mxu0 0
    %2199 = vmatpush1.bf16.xpose.msra.mxu0 0
    %2200 = vmatprep.subr.bf16.mxu0 0
    %2201 = vmatpush1.bf16.xpose.msra.mxu0 0
    %2202 = vmatprep.subr.bf16.mxu0 0
    %2203 = vmatpush1.bf16.xpose.msra.mxu0 0
    %2204 = vmatprep.subr.bf16.mxu0 0
    %2205 = vmatpush1.bf16.xpose.msra.mxu0 0
    %2206 = vmatprep.subr.bf16.mxu0 0
    %2207 = vmatpush1.bf16.xpose.msra.mxu0 0
    %2208 = vmatprep.subr.bf16.mxu0 0
    %2209 = vmatpush1.bf16.xpose.msra.mxu0 0
    %2210 = vmatprep.subr.bf16.mxu0 0
    %2211 = vmatpush1.bf16.xpose.msra.mxu0 0
    %2212 = vmatprep.subr.bf16.mxu0 0
    %2213 = vmatpush1.bf16.xpose.msra.mxu0 0
    %2214 = vmatprep.subr.bf16.mxu0 0
    %2215 = vmatpush1.bf16.xpose.msra.mxu0 0
    %2216 = vmatprep.subr.bf16.mxu0 0
    %2217 = vmatpush1.bf16.xpose.msra.mxu0 0
    %2218 = vmatprep.subr.bf16.mxu0 0
    %2219 = vmatpush1.bf16.xpose.msra.mxu0 0
    %2220 = vmatprep.subr.bf16.mxu0 0
    %2221 = vmatpush1.bf16.xpose.msra.mxu0 0
    %2222 = vmatprep.subr.bf16.mxu0 0
    %2223 = vmatpush1.bf16.xpose.msra.mxu0 0
    %2224 = vmatprep.subr.bf16.mxu0 0
    %2225 = vmatpush1.bf16.xpose.msra.mxu0 0
    %2226 = vmatprep.mubr.bf16.mxu0 0
    %2227 = vmatmul.mubr.bf16.gmra.mrb[0].mxu0 %v2189
    %v2228 = vpop.f32.mrb[0].mxu0
    %v2229 = vadd.f32 0.0, %v2228
    %v2230 = vpop.f32.mrb[0].mxu0
    %v2231 = vpop.f32.mrb[0].mxu0
    %v2232 = vpop.f32.mrb[0].mxu0
    %2233 = vdwg.mxu0
    %v2234 = vld [vmem:[%s6 + $0x9] sm:$0x1]
    %v2235 = vlaneseq
    %v2236 = vshrl.u32 %v2235, 7
    %v2237 = vsub.s32 0, %v2236
    %v2238 = vrot.slane %v2234, %v2237
    %v2239 = vmul.f32 %v2121, %v2238
    %v2240 = vsel %vm130, %v2239, 0.0
    %2241 = vadd.xlane.f32.xlu0 %v2240
    %v2242 = vpop.xlane.xlu0 %2241
    %v2243 = vlaneseq
    %v2244 = vshrl.u32 %v2243, 7
    %v2245 = vsub.s32 0, %v2244
    %v2246 = vrot.slane %v2229, %v2245
    %v2247 = vadd.f32 %v2242, %v2246
    %vm2248 = vcmp.gt.f32.partialorder %v2247, 0.0
    %v2249 = vmul.f32 %v2247, 0.01
    %v2250 = vsel %vm2248, %v2247, %v2249
    %vm2251 = vcmp.gt.f32.partialorder %v44, 0.0
    %v2252 = vsel %vm2251, %v2250, -1e+30
    %v2253 = vsel %vm1282, %v2252, -inf
    %2254 = vmax.xlane.f32.xlu0 %v2253
    %v2255 = vpop.xlane.xlu0 %2254
    %v2256 = vsub.f32 %v2252, %v2255
    %v2257 = vmul.f32 %v2256, 1.442695
    %v2258 = vpow.pop %v2257
    %v2259 = vsel %vm2251, %v2258, 0.0
    %v2260 = vsel %vm1282, %v2259, 0.0
    %2261 = vadd.xlane.f32.xlu0 %v2260
    %v2262 = vpop.xlane.xlu0 %2261
    %v2263 = vmax.f32 %v2262, 1e-12
    %v2264 = vrcp.pop %v2263
    %v2265 = vmul.f32 %v2259, %v2264
    %v2266 = vpack.c.bf16 %v2265, %v2265
    %v2267 = vld [vmem:[%s6 + $0x8] sm:$0x1]
    %v2268 = vlaneseq
    %v2269 = vshrl.u32 %v2268, 7
    %v2270 = vsub.s32 0, %v2269
    %v2271 = vrot.slane %v2267, %v2270
    %v2273 = vsel %vm1282, %v2266, 0
    %2275 = vmatprep.subr.mxu0 0.0
    %2276 = vmatpush1.msra.mxu0 %v2180
    %2277 = vmatprep.subr.mxu0 0.0
    %2278 = vmatpush1.msra.mxu0 %v2183
    %2279 = vmatprep.subr.mxu0 0.0
    %2280 = vmatpush1.msra.mxu0 0.0
    %2281 = vmatprep.subr.mxu0 0.0
    %2282 = vmatpush1.msra.mxu0 0.0
    %2283 = vmatprep.subr.mxu0 0.0
    %2284 = vmatpush1.msra.mxu0 0.0
    %2285 = vmatprep.subr.mxu0 0.0
    %2286 = vmatpush1.msra.mxu0 0.0
    %2287 = vmatprep.subr.mxu0 0.0
    %2288 = vmatpush1.msra.mxu0 0.0
    %2289 = vmatprep.subr.mxu0 0.0
    %2290 = vmatpush1.msra.mxu0 0.0
    %2291 = vmatprep.subr.mxu0 0.0
    %2292 = vmatpush1.msra.mxu0 0.0
    %2293 = vmatprep.subr.mxu0 0.0
    %2294 = vmatpush1.msra.mxu0 0.0
    %2295 = vmatprep.subr.mxu0 0.0
    %2296 = vmatpush1.msra.mxu0 0.0
    %2297 = vmatprep.subr.mxu0 0.0
    %2298 = vmatpush1.msra.mxu0 0.0
    %2299 = vmatprep.subr.mxu0 0.0
    %2300 = vmatpush1.msra.mxu0 0.0
    %2301 = vmatprep.subr.mxu0 0.0
    %2302 = vmatpush1.msra.mxu0 0.0
    %2303 = vmatprep.subr.mxu0 0.0
    %2304 = vmatpush1.msra.mxu0 0.0
    %2305 = vmatprep.subr.mxu0 0.0
    %2306 = vmatpush1.msra.mxu0 0.0
    %2307 = vmatprep.subr.mxu0 0.0
    %2308 = vmatpush1.msra.mxu0 0.0
    %2309 = vmatprep.subr.mxu0 0.0
    %2310 = vmatpush1.msra.mxu0 0.0
    %2311 = vmatprep.subr.mxu0 0.0
    %2312 = vmatpush1.msra.mxu0 0.0
    %2313 = vmatprep.subr.mxu0 0.0
    %2314 = vmatpush1.msra.mxu0 0.0
    %2315 = vmatprep.subr.mxu0 0.0
    %2316 = vmatpush1.msra.mxu0 0.0
    %2317 = vmatprep.subr.mxu0 0.0
    %2318 = vmatpush1.msra.mxu0 0.0
    %2319 = vmatprep.subr.mxu0 0.0
    %2320 = vmatpush1.msra.mxu0 0.0
    %2321 = vmatprep.subr.mxu0 0.0
    %2322 = vmatpush1.msra.mxu0 0.0
    %2323 = vmatprep.subr.mxu0 0.0
    %2324 = vmatpush1.msra.mxu0 0.0
    %2325 = vmatprep.subr.mxu0 0.0
    %2326 = vmatpush1.msra.mxu0 0.0
    %2327 = vmatprep.subr.mxu0 0.0
    %2328 = vmatpush1.msra.mxu0 0.0
    %2329 = vmatprep.subr.mxu0 0.0
    %2330 = vmatpush1.msra.mxu0 0.0
    %2331 = vmatprep.subr.mxu0 0.0
    %2332 = vmatpush1.msra.mxu0 0.0
    %2333 = vmatprep.subr.mxu0 0.0
    %2334 = vmatpush1.msra.mxu0 0.0
    %2335 = vmatprep.subr.mxu0 0.0
    %2336 = vmatpush1.msra.mxu0 0.0
    %2337 = vmatprep.subr.mxu0 0.0
    %2338 = vmatpush1.msra.mxu0 0.0
    %2339 = vmatprep.mubr.bf16.mxu0 0
    %2340 = vmatmul.mubr.bf16.gmra.mrb[0].mxu0 %v2273
    %v2341 = vpop.f32.mrb[0].mxu0
    %v2342 = vadd.f32 %v2271, %v2341
    %v2343 = vpop.f32.mrb[0].mxu0
    %v2344 = vpop.f32.mrb[0].mxu0
    %v2345 = vpop.f32.mrb[0].mxu0
    %2346 = vdwg.mxu0
    %vm2347 = vcmp.gt.f32.partialorder %v2342, 0.0
    %v2348 = vmin.f32 %v2342, 0.0
    %v2349 = vmul.f32 %v2348, 1.442695
    %v2350 = vpow.pop %v2349
    %v2351 = vsub.f32 %v2350, 1.0
    %v2352 = vsel %vm2347, %v2342, %v2351
    %v2353 = vld [vmem:[#allocation2 + $0x90] sm:$0xf]
    %v2354 = vld [vmem:[#allocation2 + $0x94] sm:$0xf]
    %v2355 = vld [vmem:[#allocation2 + $0x98] sm:$0xf]
    %v2356 = vld [vmem:[#allocation2 + $0x9c] sm:$0xf]
    %v2357 = vpack.c.bf16 %v2352, %v2352
    %v2358 = vld [vmem:[%s6 + $0xa] sm:$0x1]
    %v2359 = vlaneseq
    %v2360 = vshrl.u32 %v2359, 7
    %v2361 = vsub.s32 0, %v2360
    %v2362 = vrot.slane %v2358, %v2361
    %v2367 = vunpack.c.l.b16 %v2353
    %v2368 = vunpack.c.l.b16 %v2354
    %v2369 = vunpack.c.l.b16 %v2355
    %v2370 = vunpack.c.l.b16 %v2356
    %v2371 = vpack.c.b16 %v2368, %v2367
    %v2372 = vpack.c.b16 %v2370, %v2369
    %v2376 = vsel %vm130, %v2357, 0
    %2378 = vmatprep.subr.bf16.mxu0 0
    %2379 = vmatpush1.bf16.msra.mxu0 %v2371
    %2380 = vmatprep.subr.bf16.mxu0 0
    %2381 = vmatpush1.bf16.msra.mxu0 %v2372
    %2382 = vmatprep.subr.bf16.mxu0 0
    %2383 = vmatpush1.bf16.msra.mxu0 0
    %2384 = vmatprep.subr.bf16.mxu0 0
    %2385 = vmatpush1.bf16.msra.mxu0 0
    %2386 = vmatprep.subr.bf16.mxu0 0
    %2387 = vmatpush1.bf16.msra.mxu0 0
    %2388 = vmatprep.subr.bf16.mxu0 0
    %2389 = vmatpush1.bf16.msra.mxu0 0
    %2390 = vmatprep.subr.bf16.mxu0 0
    %2391 = vmatpush1.bf16.msra.mxu0 0
    %2392 = vmatprep.subr.bf16.mxu0 0
    %2393 = vmatpush1.bf16.msra.mxu0 0
    %2394 = vmatprep.subr.bf16.mxu0 0
    %2395 = vmatpush1.bf16.msra.mxu0 0
    %2396 = vmatprep.subr.bf16.mxu0 0
    %2397 = vmatpush1.bf16.msra.mxu0 0
    %2398 = vmatprep.subr.bf16.mxu0 0
    %2399 = vmatpush1.bf16.msra.mxu0 0
    %2400 = vmatprep.subr.bf16.mxu0 0
    %2401 = vmatpush1.bf16.msra.mxu0 0
    %2402 = vmatprep.subr.bf16.mxu0 0
    %2403 = vmatpush1.bf16.msra.mxu0 0
    %2404 = vmatprep.subr.bf16.mxu0 0
    %2405 = vmatpush1.bf16.msra.mxu0 0
    %2406 = vmatprep.subr.bf16.mxu0 0
    %2407 = vmatpush1.bf16.msra.mxu0 0
    %2408 = vmatprep.subr.bf16.mxu0 0
    %2409 = vmatpush1.bf16.msra.mxu0 0
    %2410 = vmatprep.mubr.bf16.mxu0 0
    %2411 = vmatmul.mubr.bf16.gmra.mrb[0].mxu0 %v2376
    %v2412 = vpop.f32.mrb[0].mxu0
    %v2413 = vadd.f32 %v2362, %v2412
    %v2414 = vpop.f32.mrb[0].mxu0
    %v2415 = vpop.f32.mrb[0].mxu0
    %v2416 = vpop.f32.mrb[0].mxu0
    %2417 = vdwg.mxu0
    %v2418 = vld [vmem:[#allocation2 + $0xa0] sm:$0xf]
    %v2419 = vld [vmem:[#allocation2 + $0xa4] sm:$0xf]
    %v2420 = vld [vmem:[#allocation2 + $0xa8] sm:$0xf]
    %v2421 = vld [vmem:[#allocation2 + $0xac] sm:$0xf]
    %v2422 = vpack.c.bf16 %v2121, %v2121
    %v2423 = vld [vmem:[%s6 + $0xb] sm:$0x1]
    %v2424 = vlaneseq
    %v2425 = vshrl.u32 %v2424, 7
    %v2426 = vsub.s32 0, %v2425
    %v2427 = vrot.slane %v2423, %v2426
    %v2432 = vunpack.c.l.b16 %v2418
    %v2433 = vunpack.c.l.b16 %v2419
    %v2434 = vunpack.c.l.b16 %v2420
    %v2435 = vunpack.c.l.b16 %v2421
    %v2436 = vpack.c.b16 %v2433, %v2432
    %v2437 = vpack.c.b16 %v2435, %v2434
    %v2441 = vsel %vm130, %v2422, 0
    %2443 = vmatprep.subr.bf16.mxu0 0
    %2444 = vmatpush1.bf16.msra.mxu0 %v2436
    %2445 = vmatprep.subr.bf16.mxu0 0
    %2446 = vmatpush1.bf16.msra.mxu0 %v2437
    %2447 = vmatprep.subr.bf16.mxu0 0
    %2448 = vmatpush1.bf16.msra.mxu0 0
    %2449 = vmatprep.subr.bf16.mxu0 0
    %2450 = vmatpush1.bf16.msra.mxu0 0
    %2451 = vmatprep.subr.bf16.mxu0 0
    %2452 = vmatpush1.bf16.msra.mxu0 0
    %2453 = vmatprep.subr.bf16.mxu0 0
    %2454 = vmatpush1.bf16.msra.mxu0 0
    %2455 = vmatprep.subr.bf16.mxu0 0
    %2456 = vmatpush1.bf16.msra.mxu0 0
    %2457 = vmatprep.subr.bf16.mxu0 0
    %2458 = vmatpush1.bf16.msra.mxu0 0
    %2459 = vmatprep.subr.bf16.mxu0 0
    %2460 = vmatpush1.bf16.msra.mxu0 0
    %2461 = vmatprep.subr.bf16.mxu0 0
    %2462 = vmatpush1.bf16.msra.mxu0 0
    %2463 = vmatprep.subr.bf16.mxu0 0
    %2464 = vmatpush1.bf16.msra.mxu0 0
    %2465 = vmatprep.subr.bf16.mxu0 0
    %2466 = vmatpush1.bf16.msra.mxu0 0
    %2467 = vmatprep.subr.bf16.mxu0 0
    %2468 = vmatpush1.bf16.msra.mxu0 0
    %2469 = vmatprep.subr.bf16.mxu0 0
    %2470 = vmatpush1.bf16.msra.mxu0 0
    %2471 = vmatprep.subr.bf16.mxu0 0
    %2472 = vmatpush1.bf16.msra.mxu0 0
    %2473 = vmatprep.subr.bf16.mxu0 0
    %2474 = vmatpush1.bf16.msra.mxu0 0
    %2475 = vmatprep.mubr.bf16.mxu0 0
    %2476 = vmatmul.mubr.bf16.gmra.mrb[0].mxu0 %v2441
    %v2477 = vpop.f32.mrb[0].mxu0
    %v2478 = vadd.f32 %v2427, %v2477
    %v2479 = vpop.f32.mrb[0].mxu0
    %v2480 = vpop.f32.mrb[0].mxu0
    %v2481 = vpop.f32.mrb[0].mxu0
    %2482 = vdwg.mxu0
    %v2483 = vadd.f32 %v2413, %v2478
    %v2484 = vxor.u32 %v2483, 2147483648
    %v2485 = vmul.f32 %v2484, 1.442695
    %v2486 = vpow.pop %v2485
    %v2487 = vadd.f32 %v2486, 1.0
    %v2488 = vrcp.pop %v2487
    %v2489 = vmul.f32 1.0, %v2488
    %2491 = vrot.lane.b32.xlu0 %v2478, 64
    %v2492 = vpop.permute.xlu0 %2491
    %v2494 = vmul.f32 %v2489, %v2492
    %2496 = vrot.lane.b32.xlu0 %v2494, 64
    %v2497 = vpop.permute.xlu0 %2496
    %v2499 = vadd.f32 %v2413, %v2497
    %v2500 = vtanh.pop %v2499
    %v2501 = vsub.f32 1.0, %v2489
    %2503 = vrot.lane.b32.xlu0 %v2500, 96
    %v2504 = vpop.permute.xlu0 %2503
    %v2506 = vmul.f32 %v2501, %v2504
    %2508 = vrot.lane.b32.xlu0 %v2121, 32
    %v2509 = vpop.permute.xlu0 %2508
    %v2511 = vmul.f32 %v2489, %v2509
    %v2512 = vadd.f32 %v2506, %v2511
    %v2513 = vmax.f32 %v2512, 0.0
    %2515 = vrot.lane.b32.xlu0 %v2238, 32
    %v2516 = vpop.permute.xlu0 %2515
    %v2518 = vmul.f32 %v2513, %v2516
    %2520 = vrot.lane.b32.xlu0 %v2518, 96
    %v2521 = vpop.permute.xlu0 %2520
    %v2523 = vsel %vm130, %v2521, 0.0
    %2524 = vadd.xlane.f32.xlu0 %v2523
    %v2525 = vpop.xlane.xlu0 %2524
    %v2526 = vadd.f32 %v2525, %v2246
    %vm2527 = vcmp.gt.f32.partialorder %v2526, 0.0
    %v2528 = vmul.f32 %v2526, 0.01
    %v2529 = vsel %vm2527, %v2526, %v2528
    %v2530 = vsel %vm2251, %v2529, -1e+30
    %v2531 = vsel %vm1282, %v2530, -inf
    %2532 = vmax.xlane.f32.xlu0 %v2531
    %v2533 = vpop.xlane.xlu0 %2532
    %v2534 = vsub.f32 %v2530, %v2533
    %v2535 = vmul.f32 %v2534, 1.442695
    %v2536 = vpow.pop %v2535
    %v2537 = vsel %vm2251, %v2536, 0.0
    %v2538 = vsel %vm1282, %v2537, 0.0
    %2539 = vadd.xlane.f32.xlu0 %v2538
    %v2540 = vpop.xlane.xlu0 %2539
    %v2541 = vmax.f32 %v2540, 1e-12
    %v2542 = vrcp.pop %v2541
    %v2543 = vmul.f32 %v2537, %v2542
    %v2544 = vpack.c.bf16 %v2543, %v2543
    %v2546 = vsel %vm1282, %v2544, 0
    %2548 = vmatprep.subr.mxu0 0.0
    %2549 = vmatpush1.msra.mxu0 %v2180
    %2550 = vmatprep.subr.mxu0 0.0
    %2551 = vmatpush1.msra.mxu0 %v2183
    %2552 = vmatprep.subr.mxu0 0.0
    %2553 = vmatpush1.msra.mxu0 0.0
    %2554 = vmatprep.subr.mxu0 0.0
    %2555 = vmatpush1.msra.mxu0 0.0
    %2556 = vmatprep.subr.mxu0 0.0
    %2557 = vmatpush1.msra.mxu0 0.0
    %2558 = vmatprep.subr.mxu0 0.0
    %2559 = vmatpush1.msra.mxu0 0.0
    %2560 = vmatprep.subr.mxu0 0.0
    %2561 = vmatpush1.msra.mxu0 0.0
    %2562 = vmatprep.subr.mxu0 0.0
    %2563 = vmatpush1.msra.mxu0 0.0
    %2564 = vmatprep.subr.mxu0 0.0
    %2565 = vmatpush1.msra.mxu0 0.0
    %2566 = vmatprep.subr.mxu0 0.0
    %2567 = vmatpush1.msra.mxu0 0.0
    %2568 = vmatprep.subr.mxu0 0.0
    %2569 = vmatpush1.msra.mxu0 0.0
    %2570 = vmatprep.subr.mxu0 0.0
    %2571 = vmatpush1.msra.mxu0 0.0
    %2572 = vmatprep.subr.mxu0 0.0
    %2573 = vmatpush1.msra.mxu0 0.0
    %2574 = vmatprep.subr.mxu0 0.0
    %2575 = vmatpush1.msra.mxu0 0.0
    %2576 = vmatprep.subr.mxu0 0.0
    %2577 = vmatpush1.msra.mxu0 0.0
    %2578 = vmatprep.subr.mxu0 0.0
    %2579 = vmatpush1.msra.mxu0 0.0
    %2580 = vmatprep.subr.mxu0 0.0
    %2581 = vmatpush1.msra.mxu0 0.0
    %2582 = vmatprep.subr.mxu0 0.0
    %2583 = vmatpush1.msra.mxu0 0.0
    %2584 = vmatprep.subr.mxu0 0.0
    %2585 = vmatpush1.msra.mxu0 0.0
    %2586 = vmatprep.subr.mxu0 0.0
    %2587 = vmatpush1.msra.mxu0 0.0
    %2588 = vmatprep.subr.mxu0 0.0
    %2589 = vmatpush1.msra.mxu0 0.0
    %2590 = vmatprep.subr.mxu0 0.0
    %2591 = vmatpush1.msra.mxu0 0.0
    %2592 = vmatprep.subr.mxu0 0.0
    %2593 = vmatpush1.msra.mxu0 0.0
    %2594 = vmatprep.subr.mxu0 0.0
    %2595 = vmatpush1.msra.mxu0 0.0
    %2596 = vmatprep.subr.mxu0 0.0
    %2597 = vmatpush1.msra.mxu0 0.0
    %2598 = vmatprep.subr.mxu0 0.0
    %2599 = vmatpush1.msra.mxu0 0.0
    %2600 = vmatprep.subr.mxu0 0.0
    %2601 = vmatpush1.msra.mxu0 0.0
    %2602 = vmatprep.subr.mxu0 0.0
    %2603 = vmatpush1.msra.mxu0 0.0
    %2604 = vmatprep.subr.mxu0 0.0
    %2605 = vmatpush1.msra.mxu0 0.0
    %2606 = vmatprep.subr.mxu0 0.0
    %2607 = vmatpush1.msra.mxu0 0.0
    %2608 = vmatprep.subr.mxu0 0.0
    %2609 = vmatpush1.msra.mxu0 0.0
    %2610 = vmatprep.subr.mxu0 0.0
    %2611 = vmatpush1.msra.mxu0 0.0
    %2612 = vmatprep.mubr.bf16.mxu0 0
    %2613 = vmatmul.mubr.bf16.gmra.mrb[0].mxu0 %v2546
    %v2614 = vpop.f32.mrb[0].mxu0
    %v2615 = vadd.f32 %v2271, %v2614
    %v2616 = vpop.f32.mrb[0].mxu0
    %v2617 = vpop.f32.mrb[0].mxu0
    %v2618 = vpop.f32.mrb[0].mxu0
    %2619 = vdwg.mxu0
    %vm2620 = vcmp.gt.f32.partialorder %v2615, 0.0
    %v2621 = vmin.f32 %v2615, 0.0
    %v2622 = vmul.f32 %v2621, 1.442695
    %v2623 = vpow.pop %v2622
    %v2624 = vsub.f32 %v2623, 1.0
    %v2625 = vsel %vm2620, %v2615, %v2624
    %v2626 = vpack.c.bf16 %v2625, %v2625
    %v2628 = vsel %vm130, %v2626, 0
    %2630 = vmatprep.subr.bf16.mxu0 0
    %2631 = vmatpush1.bf16.msra.mxu0 %v2371
    %2632 = vmatprep.subr.bf16.mxu0 0
    %2633 = vmatpush1.bf16.msra.mxu0 %v2372
    %2634 = vmatprep.subr.bf16.mxu0 0
    %2635 = vmatpush1.bf16.msra.mxu0 0
    %2636 = vmatprep.subr.bf16.mxu0 0
    %2637 = vmatpush1.bf16.msra.mxu0 0
    %2638 = vmatprep.subr.bf16.mxu0 0
    %2639 = vmatpush1.bf16.msra.mxu0 0
    %2640 = vmatprep.subr.bf16.mxu0 0
    %2641 = vmatpush1.bf16.msra.mxu0 0
    %2642 = vmatprep.subr.bf16.mxu0 0
    %2643 = vmatpush1.bf16.msra.mxu0 0
    %2644 = vmatprep.subr.bf16.mxu0 0
    %2645 = vmatpush1.bf16.msra.mxu0 0
    %2646 = vmatprep.subr.bf16.mxu0 0
    %2647 = vmatpush1.bf16.msra.mxu0 0
    %2648 = vmatprep.subr.bf16.mxu0 0
    %2649 = vmatpush1.bf16.msra.mxu0 0
    %2650 = vmatprep.subr.bf16.mxu0 0
    %2651 = vmatpush1.bf16.msra.mxu0 0
    %2652 = vmatprep.subr.bf16.mxu0 0
    %2653 = vmatpush1.bf16.msra.mxu0 0
    %2654 = vmatprep.subr.bf16.mxu0 0
    %2655 = vmatpush1.bf16.msra.mxu0 0
    %2656 = vmatprep.subr.bf16.mxu0 0
    %2657 = vmatpush1.bf16.msra.mxu0 0
    %2658 = vmatprep.subr.bf16.mxu0 0
    %2659 = vmatpush1.bf16.msra.mxu0 0
    %2660 = vmatprep.subr.bf16.mxu0 0
    %2661 = vmatpush1.bf16.msra.mxu0 0
    %2662 = vmatprep.mubr.bf16.mxu0 0
    %2663 = vmatmul.mubr.bf16.gmra.mrb[0].mxu0 %v2628
    %v2664 = vpop.f32.mrb[0].mxu0
    %v2665 = vadd.f32 %v2362, %v2664
    %v2666 = vpop.f32.mrb[0].mxu0
    %v2667 = vpop.f32.mrb[0].mxu0
    %v2668 = vpop.f32.mrb[0].mxu0
    %2669 = vdwg.mxu0
    %v2670 = vpack.c.bf16 %v2513, %v2513
    %2672 = vrot.lane.b32.xlu0 %v2670, 96
    %v2673 = vpop.permute.xlu0 %2672
    %v2675 = vsel %vm130, %v2673, 0
    %2677 = vmatprep.subr.bf16.mxu0 0
    %2678 = vmatpush1.bf16.msra.mxu0 %v2436
    %2679 = vmatprep.subr.bf16.mxu0 0
    %2680 = vmatpush1.bf16.msra.mxu0 %v2437
    %2681 = vmatprep.subr.bf16.mxu0 0
    %2682 = vmatpush1.bf16.msra.mxu0 0
    %2683 = vmatprep.subr.bf16.mxu0 0
    %2684 = vmatpush1.bf16.msra.mxu0 0
    %2685 = vmatprep.subr.bf16.mxu0 0
    %2686 = vmatpush1.bf16.msra.mxu0 0
    %2687 = vmatprep.subr.bf16.mxu0 0
    %2688 = vmatpush1.bf16.msra.mxu0 0
    %2689 = vmatprep.subr.bf16.mxu0 0
    %2690 = vmatpush1.bf16.msra.mxu0 0
    %2691 = vmatprep.subr.bf16.mxu0 0
    %2692 = vmatpush1.bf16.msra.mxu0 0
    %2693 = vmatprep.subr.bf16.mxu0 0
    %2694 = vmatpush1.bf16.msra.mxu0 0
    %2695 = vmatprep.subr.bf16.mxu0 0
    %2696 = vmatpush1.bf16.msra.mxu0 0
    %2697 = vmatprep.subr.bf16.mxu0 0
    %2698 = vmatpush1.bf16.msra.mxu0 0
    %2699 = vmatprep.subr.bf16.mxu0 0
    %2700 = vmatpush1.bf16.msra.mxu0 0
    %2701 = vmatprep.subr.bf16.mxu0 0
    %2702 = vmatpush1.bf16.msra.mxu0 0
    %2703 = vmatprep.subr.bf16.mxu0 0
    %2704 = vmatpush1.bf16.msra.mxu0 0
    %2705 = vmatprep.subr.bf16.mxu0 0
    %2706 = vmatpush1.bf16.msra.mxu0 0
    %2707 = vmatprep.subr.bf16.mxu0 0
    %2708 = vmatpush1.bf16.msra.mxu0 0
    %2709 = vmatprep.mubr.bf16.mxu0 0
    %2710 = vmatmul.mubr.bf16.gmra.mrb[0].mxu0 %v2675
    %v2711 = vpop.f32.mrb[0].mxu0
    %v2712 = vadd.f32 %v2427, %v2711
    %v2713 = vpop.f32.mrb[0].mxu0
    %v2714 = vpop.f32.mrb[0].mxu0
    %v2715 = vpop.f32.mrb[0].mxu0
    %2716 = vdwg.mxu0
    %v2717 = vadd.f32 %v2665, %v2712
    %v2718 = vxor.u32 %v2717, 2147483648
    %v2719 = vmul.f32 %v2718, 1.442695
    %v2720 = vpow.pop %v2719
    %v2721 = vadd.f32 %v2720, 1.0
    %v2722 = vrcp.pop %v2721
    %v2723 = vmul.f32 1.0, %v2722
    %2725 = vrot.lane.b32.xlu0 %v2712, 64
    %v2726 = vpop.permute.xlu0 %2725
    %v2728 = vmul.f32 %v2723, %v2726
    %2730 = vrot.lane.b32.xlu0 %v2728, 64
    %v2731 = vpop.permute.xlu0 %2730
    %v2733 = vadd.f32 %v2665, %v2731
    %v2734 = vtanh.pop %v2733
    %v2735 = vsub.f32 1.0, %v2723
    %2737 = vrot.lane.b32.xlu0 %v2734, 96
    %v2738 = vpop.permute.xlu0 %2737
    %v2740 = vmul.f32 %v2735, %v2738
    %v2741 = vmul.f32 %v2723, %v2513
    %v2742 = vadd.f32 %v2740, %v2741
    %v2743 = vmax.f32 %v2742, 0.0
    %v2744 = vmul.f32 %v2743, %v2516
    %2746 = vrot.lane.b32.xlu0 %v2744, 96
    %v2747 = vpop.permute.xlu0 %2746
    %v2749 = vsel %vm130, %v2747, 0.0
    %2750 = vadd.xlane.f32.xlu0 %v2749
    %v2751 = vpop.xlane.xlu0 %2750
    %v2752 = vadd.f32 %v2751, %v2246
    %vm2753 = vcmp.gt.f32.partialorder %v2752, 0.0
    %v2754 = vmul.f32 %v2752, 0.01
    %v2755 = vsel %vm2753, %v2752, %v2754
    %v2756 = vsel %vm2251, %v2755, -1e+30
    %v2757 = vsel %vm1282, %v2756, -inf
    %2758 = vmax.xlane.f32.xlu0 %v2757
    %v2759 = vpop.xlane.xlu0 %2758
    %v2760 = vsub.f32 %v2756, %v2759
    %v2761 = vmul.f32 %v2760, 1.442695
    %v2762 = vpow.pop %v2761
    %v2763 = vsel %vm2251, %v2762, 0.0
    %v2764 = vsel %vm1282, %v2763, 0.0
    %2765 = vadd.xlane.f32.xlu0 %v2764
    %v2766 = vpop.xlane.xlu0 %2765
    %v2767 = vmax.f32 %v2766, 1e-12
    %v2768 = vrcp.pop %v2767
    %v2769 = vmul.f32 %v2763, %v2768
    %v2770 = vpack.c.bf16 %v2769, %v2769
    %v2772 = vsel %vm1282, %v2770, 0
    %2774 = vmatprep.subr.mxu0 0.0
    %2775 = vmatpush1.msra.mxu0 %v2180
    %2776 = vmatprep.subr.mxu0 0.0
    %2777 = vmatpush1.msra.mxu0 %v2183
    %2778 = vmatprep.subr.mxu0 0.0
    %2779 = vmatpush1.msra.mxu0 0.0
    %2780 = vmatprep.subr.mxu0 0.0
    %2781 = vmatpush1.msra.mxu0 0.0
    %2782 = vmatprep.subr.mxu0 0.0
    %2783 = vmatpush1.msra.mxu0 0.0
    %2784 = vmatprep.subr.mxu0 0.0
    %2785 = vmatpush1.msra.mxu0 0.0
    %2786 = vmatprep.subr.mxu0 0.0
    %2787 = vmatpush1.msra.mxu0 0.0
    %2788 = vmatprep.subr.mxu0 0.0
    %2789 = vmatpush1.msra.mxu0 0.0
    %2790 = vmatprep.subr.mxu0 0.0
    %2791 = vmatpush1.msra.mxu0 0.0
    %2792 = vmatprep.subr.mxu0 0.0
    %2793 = vmatpush1.msra.mxu0 0.0
    %2794 = vmatprep.subr.mxu0 0.0
    %2795 = vmatpush1.msra.mxu0 0.0
    %2796 = vmatprep.subr.mxu0 0.0
    %2797 = vmatpush1.msra.mxu0 0.0
    %2798 = vmatprep.subr.mxu0 0.0
    %2799 = vmatpush1.msra.mxu0 0.0
    %2800 = vmatprep.subr.mxu0 0.0
    %2801 = vmatpush1.msra.mxu0 0.0
    %2802 = vmatprep.subr.mxu0 0.0
    %2803 = vmatpush1.msra.mxu0 0.0
    %2804 = vmatprep.subr.mxu0 0.0
    %2805 = vmatpush1.msra.mxu0 0.0
    %2806 = vmatprep.subr.mxu0 0.0
    %2807 = vmatpush1.msra.mxu0 0.0
    %2808 = vmatprep.subr.mxu0 0.0
    %2809 = vmatpush1.msra.mxu0 0.0
    %2810 = vmatprep.subr.mxu0 0.0
    %2811 = vmatpush1.msra.mxu0 0.0
    %2812 = vmatprep.subr.mxu0 0.0
    %2813 = vmatpush1.msra.mxu0 0.0
    %2814 = vmatprep.subr.mxu0 0.0
    %2815 = vmatpush1.msra.mxu0 0.0
    %2816 = vmatprep.subr.mxu0 0.0
    %2817 = vmatpush1.msra.mxu0 0.0
    %2818 = vmatprep.subr.mxu0 0.0
    %2819 = vmatpush1.msra.mxu0 0.0
    %2820 = vmatprep.subr.mxu0 0.0
    %2821 = vmatpush1.msra.mxu0 0.0
    %2822 = vmatprep.subr.mxu0 0.0
    %2823 = vmatpush1.msra.mxu0 0.0
    %2824 = vmatprep.subr.mxu0 0.0
    %2825 = vmatpush1.msra.mxu0 0.0
    %2826 = vmatprep.subr.mxu0 0.0
    %2827 = vmatpush1.msra.mxu0 0.0
    %2828 = vmatprep.subr.mxu0 0.0
    %2829 = vmatpush1.msra.mxu0 0.0
    %2830 = vmatprep.subr.mxu0 0.0
    %2831 = vmatpush1.msra.mxu0 0.0
    %2832 = vmatprep.subr.mxu0 0.0
    %2833 = vmatpush1.msra.mxu0 0.0
    %2834 = vmatprep.subr.mxu0 0.0
    %2835 = vmatpush1.msra.mxu0 0.0
    %2836 = vmatprep.subr.mxu0 0.0
    %2837 = vmatpush1.msra.mxu0 0.0
    %2838 = vmatprep.mubr.bf16.mxu0 0
    %2839 = vmatmul.mubr.bf16.gmra.mrb[0].mxu0 %v2772
    %v2840 = vpop.f32.mrb[0].mxu0
    %v2841 = vadd.f32 %v2271, %v2840
    %v2842 = vpop.f32.mrb[0].mxu0
    %v2843 = vpop.f32.mrb[0].mxu0
    %v2844 = vpop.f32.mrb[0].mxu0
    %2845 = vdwg.mxu0
    %vm2846 = vcmp.gt.f32.partialorder %v2841, 0.0
    %v2847 = vmin.f32 %v2841, 0.0
    %v2848 = vmul.f32 %v2847, 1.442695
    %v2849 = vpow.pop %v2848
    %v2850 = vsub.f32 %v2849, 1.0
    %v2851 = vsel %vm2846, %v2841, %v2850
    %v2852 = vpack.c.bf16 %v2851, %v2851
    %v2854 = vsel %vm130, %v2852, 0
    %2856 = vmatprep.subr.bf16.mxu0 0
    %2857 = vmatpush1.bf16.msra.mxu0 %v2371
    %2858 = vmatprep.subr.bf16.mxu0 0
    %2859 = vmatpush1.bf16.msra.mxu0 %v2372
    %2860 = vmatprep.subr.bf16.mxu0 0
    %2861 = vmatpush1.bf16.msra.mxu0 0
    %2862 = vmatprep.subr.bf16.mxu0 0
    %2863 = vmatpush1.bf16.msra.mxu0 0
    %2864 = vmatprep.subr.bf16.mxu0 0
    %2865 = vmatpush1.bf16.msra.mxu0 0
    %2866 = vmatprep.subr.bf16.mxu0 0
    %2867 = vmatpush1.bf16.msra.mxu0 0
    %2868 = vmatprep.subr.bf16.mxu0 0
    %2869 = vmatpush1.bf16.msra.mxu0 0
    %2870 = vmatprep.subr.bf16.mxu0 0
    %2871 = vmatpush1.bf16.msra.mxu0 0
    %2872 = vmatprep.subr.bf16.mxu0 0
    %2873 = vmatpush1.bf16.msra.mxu0 0
    %2874 = vmatprep.subr.bf16.mxu0 0
    %2875 = vmatpush1.bf16.msra.mxu0 0
    %2876 = vmatprep.subr.bf16.mxu0 0
    %2877 = vmatpush1.bf16.msra.mxu0 0
    %2878 = vmatprep.subr.bf16.mxu0 0
    %2879 = vmatpush1.bf16.msra.mxu0 0
    %2880 = vmatprep.subr.bf16.mxu0 0
    %2881 = vmatpush1.bf16.msra.mxu0 0
    %2882 = vmatprep.subr.bf16.mxu0 0
    %2883 = vmatpush1.bf16.msra.mxu0 0
    %2884 = vmatprep.subr.bf16.mxu0 0
    %2885 = vmatpush1.bf16.msra.mxu0 0
    %2886 = vmatprep.subr.bf16.mxu0 0
    %2887 = vmatpush1.bf16.msra.mxu0 0
    %2888 = vmatprep.mubr.bf16.mxu0 0
    %2889 = vmatmul.mubr.bf16.gmra.mrb[0].mxu0 %v2854
    %v2890 = vpop.f32.mrb[0].mxu0
    %v2891 = vadd.f32 %v2362, %v2890
    %v2892 = vpop.f32.mrb[0].mxu0
    %v2893 = vpop.f32.mrb[0].mxu0
    %v2894 = vpop.f32.mrb[0].mxu0
    %2895 = vdwg.mxu0
    %v2896 = vpack.c.bf16 %v2743, %v2743
    %2898 = vrot.lane.b32.xlu0 %v2896, 96
    %v2899 = vpop.permute.xlu0 %2898
    %v2901 = vsel %vm130, %v2899, 0
    %2903 = vmatprep.subr.bf16.mxu0 0
    %2904 = vmatpush1.bf16.msra.mxu0 %v2436
    %2905 = vmatprep.subr.bf16.mxu0 0
    %2906 = vmatpush1.bf16.msra.mxu0 %v2437
    %2907 = vmatprep.subr.bf16.mxu0 0
    %2908 = vmatpush1.bf16.msra.mxu0 0
    %2909 = vmatprep.subr.bf16.mxu0 0
    %2910 = vmatpush1.bf16.msra.mxu0 0
    %2911 = vmatprep.subr.bf16.mxu0 0
    %2912 = vmatpush1.bf16.msra.mxu0 0
    %2913 = vmatprep.subr.bf16.mxu0 0
    %2914 = vmatpush1.bf16.msra.mxu0 0
    %2915 = vmatprep.subr.bf16.mxu0 0
    %2916 = vmatpush1.bf16.msra.mxu0 0
    %2917 = vmatprep.subr.bf16.mxu0 0
    %2918 = vmatpush1.bf16.msra.mxu0 0
    %2919 = vmatprep.subr.bf16.mxu0 0
    %2920 = vmatpush1.bf16.msra.mxu0 0
    %2921 = vmatprep.subr.bf16.mxu0 0
    %2922 = vmatpush1.bf16.msra.mxu0 0
    %2923 = vmatprep.subr.bf16.mxu0 0
    %2924 = vmatpush1.bf16.msra.mxu0 0
    %2925 = vmatprep.subr.bf16.mxu0 0
    %2926 = vmatpush1.bf16.msra.mxu0 0
    %2927 = vmatprep.subr.bf16.mxu0 0
    %2928 = vmatpush1.bf16.msra.mxu0 0
    %2929 = vmatprep.subr.bf16.mxu0 0
    %2930 = vmatpush1.bf16.msra.mxu0 0
    %2931 = vmatprep.subr.bf16.mxu0 0
    %2932 = vmatpush1.bf16.msra.mxu0 0
    %2933 = vmatprep.subr.bf16.mxu0 0
    %2934 = vmatpush1.bf16.msra.mxu0 0
    %2935 = vmatprep.mubr.bf16.mxu0 0
    %2936 = vmatmul.mubr.bf16.gmra.mrb[0].mxu0 %v2901
    %v2937 = vpop.f32.mrb[0].mxu0
    %v2938 = vadd.f32 %v2427, %v2937
    %v2939 = vpop.f32.mrb[0].mxu0
    %v2940 = vpop.f32.mrb[0].mxu0
    %v2941 = vpop.f32.mrb[0].mxu0
    %2942 = vdwg.mxu0
    %v2943 = vadd.f32 %v2891, %v2938
    %v2944 = vxor.u32 %v2943, 2147483648
    %v2945 = vmul.f32 %v2944, 1.442695
    %v2946 = vpow.pop %v2945
    %v2947 = vadd.f32 %v2946, 1.0
    %v2948 = vrcp.pop %v2947
    %v2949 = vmul.f32 1.0, %v2948
    %2951 = vrot.lane.b32.xlu0 %v2938, 64
    %v2952 = vpop.permute.xlu0 %2951
    %v2954 = vmul.f32 %v2949, %v2952
    %2956 = vrot.lane.b32.xlu0 %v2954, 64
    %v2957 = vpop.permute.xlu0 %2956
    %v2959 = vadd.f32 %v2891, %v2957
    %v2960 = vtanh.pop %v2959
    %v2961 = vsub.f32 1.0, %v2949
    %2963 = vrot.lane.b32.xlu0 %v2960, 96
    %v2964 = vpop.permute.xlu0 %2963
    %v2966 = vmul.f32 %v2961, %v2964
    %v2967 = vmul.f32 %v2949, %v2743
    %v2968 = vadd.f32 %v2966, %v2967
    %v2969 = vmax.f32 %v2968, 0.0
    %v2970 = vld [vmem:[#allocation2 + $0xb0] sm:$0xf]
    %v2971 = vld [vmem:[#allocation2 + $0xb4] sm:$0xf]
    %v2972 = vld [vmem:[#allocation2 + $0xb8] sm:$0xf]
    %v2973 = vld [vmem:[#allocation2 + $0xbc] sm:$0xf]
    %v2974 = vpack.c.bf16 %v2969, %v2969
    %v2975 = vld [vmem:[%s6 + $0xc] sm:$0x1]
    %v2976 = vlaneseq
    %v2977 = vshrl.u32 %v2976, 7
    %v2978 = vsub.s32 0, %v2977
    %v2979 = vrot.slane %v2975, %v2978
    %2981 = vrot.lane.b32.xlu0 %v2974, 96
    %v2982 = vpop.permute.xlu0 %2981
    %v2987 = vunpack.c.l.b16 %v2970
    %v2988 = vunpack.c.l.b16 %v2971
    %v2989 = vunpack.c.l.b16 %v2972
    %v2990 = vunpack.c.l.b16 %v2973
    %v2991 = vpack.c.b16 %v2988, %v2987
    %v2992 = vpack.c.b16 %v2990, %v2989
    %v2996 = vsel %vm130, %v2982, 0
    %2998 = vmatprep.subr.bf16.mxu0 0
    %2999 = vmatpush1.bf16.msra.mxu0 %v2991
    %3000 = vmatprep.subr.bf16.mxu0 0
    %3001 = vmatpush1.bf16.msra.mxu0 %v2992
    %3002 = vmatprep.subr.bf16.mxu0 0
    %3003 = vmatpush1.bf16.msra.mxu0 0
    %3004 = vmatprep.subr.bf16.mxu0 0
    %3005 = vmatpush1.bf16.msra.mxu0 0
    %3006 = vmatprep.subr.bf16.mxu0 0
    %3007 = vmatpush1.bf16.msra.mxu0 0
    %3008 = vmatprep.subr.bf16.mxu0 0
    %3009 = vmatpush1.bf16.msra.mxu0 0
    %3010 = vmatprep.subr.bf16.mxu0 0
    %3011 = vmatpush1.bf16.msra.mxu0 0
    %3012 = vmatprep.subr.bf16.mxu0 0
    %3013 = vmatpush1.bf16.msra.mxu0 0
    %3014 = vmatprep.subr.bf16.mxu0 0
    %3015 = vmatpush1.bf16.msra.mxu0 0
    %3016 = vmatprep.subr.bf16.mxu0 0
    %3017 = vmatpush1.bf16.msra.mxu0 0
    %3018 = vmatprep.subr.bf16.mxu0 0
    %3019 = vmatpush1.bf16.msra.mxu0 0
    %3020 = vmatprep.subr.bf16.mxu0 0
    %3021 = vmatpush1.bf16.msra.mxu0 0
    %3022 = vmatprep.subr.bf16.mxu0 0
    %3023 = vmatpush1.bf16.msra.mxu0 0
    %3024 = vmatprep.subr.bf16.mxu0 0
    %3025 = vmatpush1.bf16.msra.mxu0 0
    %3026 = vmatprep.subr.bf16.mxu0 0
    %3027 = vmatpush1.bf16.msra.mxu0 0
    %3028 = vmatprep.subr.bf16.mxu0 0
    %3029 = vmatpush1.bf16.msra.mxu0 0
    %3030 = vmatprep.mubr.bf16.mxu0 0
    %3031 = vmatmul.mubr.bf16.gmra.mrb[0].mxu0 %v2996
    %v3032 = vpop.f32.mrb[0].mxu0
    %v3033 = vadd.f32 %v2979, %v3032
    %v3034 = vpop.f32.mrb[0].mxu0
    %v3035 = vpop.f32.mrb[0].mxu0
    %v3036 = vpop.f32.mrb[0].mxu0
    %3037 = vdwg.mxu0
    %v3038 = vld [vmem:[%s4] sm:$0xff]
    %v3039 = vld [vmem:[#allocation2 + $0xc0] sm:$0xf]
    %v3040 = vld [vmem:[#allocation2 + $0xc4] sm:$0xf]
    %v3041 = vpack.c.bf16 %v3038, %v3038
    %v3042 = vld [vmem:[%s6 + $0xd] sm:$0x1]
    %v3043 = vlaneseq
    %v3044 = vshrl.u32 %v3043, 7
    %v3045 = vsub.s32 0, %v3044
    %v3046 = vrot.slane %v3042, %v3045
    %v3049 = vunpack.c.l.b16 %v3039
    %v3050 = vunpack.c.l.b16 %v3040
    %v3051 = vpack.c.b16 %v3050, %v3049
    %v3054 = vsel %vm1282, %v3041, 0
    %3056 = vmatprep.subr.bf16.mxu0 0
    %3057 = vmatpush1.bf16.msra.mxu0 %v3051
    %3058 = vmatprep.subr.bf16.mxu0 0
    %3059 = vmatpush1.bf16.msra.mxu0 0
    %3060 = vmatprep.subr.bf16.mxu0 0
    %3061 = vmatpush1.bf16.msra.mxu0 0
    %3062 = vmatprep.subr.bf16.mxu0 0
    %3063 = vmatpush1.bf16.msra.mxu0 0
    %3064 = vmatprep.subr.bf16.mxu0 0
    %3065 = vmatpush1.bf16.msra.mxu0 0
    %3066 = vmatprep.subr.bf16.mxu0 0
    %3067 = vmatpush1.bf16.msra.mxu0 0
    %3068 = vmatprep.subr.bf16.mxu0 0
    %3069 = vmatpush1.bf16.msra.mxu0 0
    %3070 = vmatprep.subr.bf16.mxu0 0
    %3071 = vmatpush1.bf16.msra.mxu0 0
    %3072 = vmatprep.subr.bf16.mxu0 0
    %3073 = vmatpush1.bf16.msra.mxu0 0
    %3074 = vmatprep.subr.bf16.mxu0 0
    %3075 = vmatpush1.bf16.msra.mxu0 0
    %3076 = vmatprep.subr.bf16.mxu0 0
    %3077 = vmatpush1.bf16.msra.mxu0 0
    %3078 = vmatprep.subr.bf16.mxu0 0
    %3079 = vmatpush1.bf16.msra.mxu0 0
    %3080 = vmatprep.subr.bf16.mxu0 0
    %3081 = vmatpush1.bf16.msra.mxu0 0
    %3082 = vmatprep.subr.bf16.mxu0 0
    %3083 = vmatpush1.bf16.msra.mxu0 0
    %3084 = vmatprep.subr.bf16.mxu0 0
    %3085 = vmatpush1.bf16.msra.mxu0 0
    %3086 = vmatprep.subr.bf16.mxu0 0
    %3087 = vmatpush1.bf16.msra.mxu0 0
    %3088 = vmatprep.mubr.bf16.mxu0 0
    %3089 = vmatmul.mubr.bf16.gmra.mrb[0].mxu0 %v3054
    %v3090 = vpop.f32.mrb[0].mxu0
    %v3091 = vadd.f32 %v3046, %v3090
    %v3092 = vpop.f32.mrb[0].mxu0
    %v3093 = vpop.f32.mrb[0].mxu0
    %v3094 = vpop.f32.mrb[0].mxu0
    %3095 = vdwg.mxu0
    %v3096 = vxor.u32 %v3091, 2147483648
    %v3097 = vmul.f32 %v3096, 1.442695
    %v3098 = vpow.pop %v3097
    %v3099 = vadd.f32 %v3098, 1.0
    %v3100 = vrcp.pop %v3099
    %v3101 = vmul.f32 1.0, %v3100
    %v3102 = vmul.f32 %v3091, %v3101
    %v3103 = vld [vmem:[#allocation2 + $0xc8] sm:$0xf]
    %v3104 = vld [vmem:[#allocation2 + $0xcc] sm:$0xf]
    %v3105 = vld [vmem:[#allocation2 + $0xd0] sm:$0xf]
    %v3106 = vld [vmem:[#allocation2 + $0xd4] sm:$0xf]
    %v3107 = vpack.c.bf16 %v3102, %v3102
    %v3108 = vld [vmem:[%s6 + $0xe] sm:$0x1]
    %v3109 = vlaneseq
    %v3110 = vshrl.u32 %v3109, 7
    %v3111 = vsub.s32 0, %v3110
    %v3112 = vrot.slane %v3108, %v3111
    %v3117 = vunpack.c.l.b16 %v3103
    %v3118 = vunpack.c.l.b16 %v3104
    %v3119 = vunpack.c.l.b16 %v3105
    %v3120 = vunpack.c.l.b16 %v3106
    %v3121 = vpack.c.b16 %v3118, %v3117
    %v3122 = vpack.c.b16 %v3120, %v3119
    %v3126 = vsel %vm130, %v3107, 0
    %3128 = vmatprep.subr.bf16.mxu0 0
    %3129 = vmatpush1.bf16.msra.mxu0 %v3121
    %3130 = vmatprep.subr.bf16.mxu0 0
    %3131 = vmatpush1.bf16.msra.mxu0 %v3122
    %3132 = vmatprep.subr.bf16.mxu0 0
    %3133 = vmatpush1.bf16.msra.mxu0 0
    %3134 = vmatprep.subr.bf16.mxu0 0
    %3135 = vmatpush1.bf16.msra.mxu0 0
    %3136 = vmatprep.subr.bf16.mxu0 0
    %3137 = vmatpush1.bf16.msra.mxu0 0
    %3138 = vmatprep.subr.bf16.mxu0 0
    %3139 = vmatpush1.bf16.msra.mxu0 0
    %3140 = vmatprep.subr.bf16.mxu0 0
    %3141 = vmatpush1.bf16.msra.mxu0 0
    %3142 = vmatprep.subr.bf16.mxu0 0
    %3143 = vmatpush1.bf16.msra.mxu0 0
    %3144 = vmatprep.subr.bf16.mxu0 0
    %3145 = vmatpush1.bf16.msra.mxu0 0
    %3146 = vmatprep.subr.bf16.mxu0 0
    %3147 = vmatpush1.bf16.msra.mxu0 0
    %3148 = vmatprep.subr.bf16.mxu0 0
    %3149 = vmatpush1.bf16.msra.mxu0 0
    %3150 = vmatprep.subr.bf16.mxu0 0
    %3151 = vmatpush1.bf16.msra.mxu0 0
    %3152 = vmatprep.subr.bf16.mxu0 0
    %3153 = vmatpush1.bf16.msra.mxu0 0
    %3154 = vmatprep.subr.bf16.mxu0 0
    %3155 = vmatpush1.bf16.msra.mxu0 0
    %3156 = vmatprep.subr.bf16.mxu0 0
    %3157 = vmatpush1.bf16.msra.mxu0 0
    %3158 = vmatprep.subr.bf16.mxu0 0
    %3159 = vmatpush1.bf16.msra.mxu0 0
    %3160 = vmatprep.mubr.bf16.mxu0 0
    %3161 = vmatmul.mubr.bf16.gmra.mrb[0].mxu0 %v3126
    %v3162 = vpop.f32.mrb[0].mxu0
    %v3163 = vadd.f32 %v3112, %v3162
    %v3164 = vpop.f32.mrb[0].mxu0
    %v3165 = vpop.f32.mrb[0].mxu0
    %v3166 = vpop.f32.mrb[0].mxu0
    %3167 = vdwg.mxu0
    %v3168 = vxor.u32 %v3163, 2147483648
    %v3169 = vmul.f32 %v3168, 1.442695
    %v3170 = vpow.pop %v3169
    %v3171 = vadd.f32 %v3170, 1.0
    %v3172 = vrcp.pop %v3171
    %v3173 = vmul.f32 1.0, %v3172
    %v3174 = vmul.f32 %v3163, %v3173
    %v3175 = vld [vmem:[#allocation2 + $0xd8] sm:$0xf]
    %v3176 = vld [vmem:[#allocation2 + $0xdc] sm:$0xf]
    %v3177 = vld [vmem:[#allocation2 + $0xe0] sm:$0xf]
    %v3178 = vld [vmem:[#allocation2 + $0xe4] sm:$0xf]
    %v3179 = vld [vmem:[#allocation2 + $0xe8] sm:$0xf]
    %v3180 = vld [vmem:[#allocation2 + $0xec] sm:$0xf]
    %v3181 = vld [vmem:[#allocation2 + $0xf0] sm:$0xf]
    %v3182 = vld [vmem:[#allocation2 + $0xf4] sm:$0xf]
    %v3183 = vpack.c.bf16 %v3033, %v3033
    %v3184 = vpack.c.bf16 %v3174, %v3174
    %v3189 = vunpack.c.l.b16 %v3179
    %v3190 = vunpack.c.l.b16 %v3180
    %v3191 = vunpack.c.l.b16 %v3181
    %v3192 = vunpack.c.l.b16 %v3182
    %v3193 = vpack.c.b16 %v3190, %v3189
    %v3194 = vpack.c.b16 %v3192, %v3191
    %v3198 = vsel %vm130, %v3184, 0
    %3200 = vmatprep.subr.bf16.mxu0 0
    %3201 = vmatpush1.bf16.msra.mxu0 %v3193
    %3202 = vmatprep.subr.bf16.mxu0 0
    %3203 = vmatpush1.bf16.msra.mxu0 %v3194
    %3204 = vmatprep.subr.bf16.mxu0 0
    %3205 = vmatpush1.bf16.msra.mxu0 0
    %3206 = vmatprep.subr.bf16.mxu0 0
    %3207 = vmatpush1.bf16.msra.mxu0 0
    %3208 = vmatprep.subr.bf16.mxu0 0
    %3209 = vmatpush1.bf16.msra.mxu0 0
    %3210 = vmatprep.subr.bf16.mxu0 0
    %3211 = vmatpush1.bf16.msra.mxu0 0
    %3212 = vmatprep.subr.bf16.mxu0 0
    %3213 = vmatpush1.bf16.msra.mxu0 0
    %3214 = vmatprep.subr.bf16.mxu0 0
    %3215 = vmatpush1.bf16.msra.mxu0 0
    %3216 = vmatprep.subr.bf16.mxu0 0
    %3217 = vmatpush1.bf16.msra.mxu0 0
    %3218 = vmatprep.subr.bf16.mxu0 0
    %3219 = vmatpush1.bf16.msra.mxu0 0
    %3220 = vmatprep.subr.bf16.mxu0 0
    %3221 = vmatpush1.bf16.msra.mxu0 0
    %3222 = vmatprep.subr.bf16.mxu0 0
    %3223 = vmatpush1.bf16.msra.mxu0 0
    %3224 = vmatprep.subr.bf16.mxu0 0
    %3225 = vmatpush1.bf16.msra.mxu0 0
    %3226 = vmatprep.subr.bf16.mxu0 0
    %3227 = vmatpush1.bf16.msra.mxu0 0
    %3228 = vmatprep.subr.bf16.mxu0 0
    %3229 = vmatpush1.bf16.msra.mxu0 0
    %3230 = vmatprep.subr.bf16.mxu0 0
    %3231 = vmatpush1.bf16.msra.mxu0 0
    %3232 = vmatprep.mubr.bf16.mxu0 0
    %3233 = vmatmul.mubr.bf16.gmra.mrb[0].mxu0 %v3198
    %v3234 = vpop.f32.mrb[0].mxu0
    %v3235 = vadd.f32 0.0, %v3234
    %v3236 = vpop.f32.mrb[0].mxu0
    %v3237 = vpop.f32.mrb[0].mxu0
    %v3238 = vpop.f32.mrb[0].mxu0
    %3239 = vdwg.mxu0
    %v3244 = vunpack.c.l.b16 %v3175
    %v3245 = vunpack.c.l.b16 %v3176
    %v3246 = vunpack.c.l.b16 %v3177
    %v3247 = vunpack.c.l.b16 %v3178
    %v3248 = vpack.c.b16 %v3245, %v3244
    %v3249 = vpack.c.b16 %v3247, %v3246
    %v3253 = vsel %vm130, %v3183, 0
    %3255 = vmatprep.subr.bf16.mxu0 0
    %3256 = vmatpush1.bf16.msra.mxu0 %v3248
    %3257 = vmatprep.subr.bf16.mxu0 0
    %3258 = vmatpush1.bf16.msra.mxu0 %v3249
    %3259 = vmatprep.subr.bf16.mxu0 0
    %3260 = vmatpush1.bf16.msra.mxu0 0
    %3261 = vmatprep.subr.bf16.mxu0 0
    %3262 = vmatpush1.bf16.msra.mxu0 0
    %3263 = vmatprep.subr.bf16.mxu0 0
    %3264 = vmatpush1.bf16.msra.mxu0 0
    %3265 = vmatprep.subr.bf16.mxu0 0
    %3266 = vmatpush1.bf16.msra.mxu0 0
    %3267 = vmatprep.subr.bf16.mxu0 0
    %3268 = vmatpush1.bf16.msra.mxu0 0
    %3269 = vmatprep.subr.bf16.mxu0 0
    %3270 = vmatpush1.bf16.msra.mxu0 0
    %3271 = vmatprep.subr.bf16.mxu0 0
    %3272 = vmatpush1.bf16.msra.mxu0 0
    %3273 = vmatprep.subr.bf16.mxu0 0
    %3274 = vmatpush1.bf16.msra.mxu0 0
    %3275 = vmatprep.subr.bf16.mxu0 0
    %3276 = vmatpush1.bf16.msra.mxu0 0
    %3277 = vmatprep.subr.bf16.mxu0 0
    %3278 = vmatpush1.bf16.msra.mxu0 0
    %3279 = vmatprep.subr.bf16.mxu0 0
    %3280 = vmatpush1.bf16.msra.mxu0 0
    %3281 = vmatprep.subr.bf16.mxu0 0
    %3282 = vmatpush1.bf16.msra.mxu0 0
    %3283 = vmatprep.subr.bf16.mxu0 0
    %3284 = vmatpush1.bf16.msra.mxu0 0
    %3285 = vmatprep.subr.bf16.mxu0 0
    %3286 = vmatpush1.bf16.msra.mxu0 0
    %3287 = vmatprep.mubr.bf16.mxu0 0
    %3288 = vmatmul.mubr.bf16.gmra.mrb[0].mxu0 %v3253
    %v3289 = vpop.f32.mrb[0].mxu0
    %v3290 = vadd.f32 %v3235, %v3289
    %v3291 = vpop.f32.mrb[0].mxu0
    %v3292 = vpop.f32.mrb[0].mxu0
    %v3293 = vpop.f32.mrb[0].mxu0
    %3294 = vdwg.mxu0
    %v3295 = vld [vmem:[%s6 + $0xf] sm:$0x1]
    %v3296 = vlaneseq
    %v3297 = vshrl.u32 %v3296, 7
    %v3298 = vsub.s32 0, %v3297
    %v3299 = vrot.slane %v3295, %v3298
    %v3300 = vadd.f32 %v3290, %v3299
    %v3301 = vxor.u32 %v3300, 2147483648
    %v3302 = vmul.f32 %v3301, 1.442695
    %v3303 = vpow.pop %v3302
    %v3304 = vadd.f32 %v3303, 1.0
    %v3305 = vrcp.pop %v3304
    %v3306 = vmul.f32 1.0, %v3305
    %v3307 = vmul.f32 %v3300, %v3306
    %v3308 = vld [vmem:[#allocation2 + $0xf8] sm:$0xf]
    %v3309 = vld [vmem:[#allocation2 + $0xfc] sm:$0xf]
    %v3310 = vld [vmem:[#allocation2 + $0x100] sm:$0xf]
    %v3311 = vld [vmem:[#allocation2 + $0x104] sm:$0xf]
    %v3312 = vpack.c.bf16 %v3307, %v3307
    %v3313 = vld [vmem:[%s6 + $0x10] sm:$0x1]
    %v3314 = vlaneseq
    %v3315 = vshrl.u32 %v3314, 7
    %v3316 = vsub.s32 0, %v3315
    %v3317 = vrot.slane %v3313, %v3316
    %v3322 = vunpack.c.l.b16 %v3308
    %v3323 = vunpack.c.l.b16 %v3309
    %v3324 = vunpack.c.l.b16 %v3310
    %v3325 = vunpack.c.l.b16 %v3311
    %v3326 = vpack.c.b16 %v3323, %v3322
    %v3327 = vpack.c.b16 %v3325, %v3324
    %v3331 = vsel %vm130, %v3312, 0
    %3333 = vmatprep.subr.bf16.mxu0 0
    %3334 = vmatpush1.bf16.msra.mxu0 %v3326
    %3335 = vmatprep.subr.bf16.mxu0 0
    %3336 = vmatpush1.bf16.msra.mxu0 %v3327
    %3337 = vmatprep.subr.bf16.mxu0 0
    %3338 = vmatpush1.bf16.msra.mxu0 0
    %3339 = vmatprep.subr.bf16.mxu0 0
    %3340 = vmatpush1.bf16.msra.mxu0 0
    %3341 = vmatprep.subr.bf16.mxu0 0
    %3342 = vmatpush1.bf16.msra.mxu0 0
    %3343 = vmatprep.subr.bf16.mxu0 0
    %3344 = vmatpush1.bf16.msra.mxu0 0
    %3345 = vmatprep.subr.bf16.mxu0 0
    %3346 = vmatpush1.bf16.msra.mxu0 0
    %3347 = vmatprep.subr.bf16.mxu0 0
    %3348 = vmatpush1.bf16.msra.mxu0 0
    %3349 = vmatprep.subr.bf16.mxu0 0
    %3350 = vmatpush1.bf16.msra.mxu0 0
    %3351 = vmatprep.subr.bf16.mxu0 0
    %3352 = vmatpush1.bf16.msra.mxu0 0
    %3353 = vmatprep.subr.bf16.mxu0 0
    %3354 = vmatpush1.bf16.msra.mxu0 0
    %3355 = vmatprep.subr.bf16.mxu0 0
    %3356 = vmatpush1.bf16.msra.mxu0 0
    %3357 = vmatprep.subr.bf16.mxu0 0
    %3358 = vmatpush1.bf16.msra.mxu0 0
    %3359 = vmatprep.subr.bf16.mxu0 0
    %3360 = vmatpush1.bf16.msra.mxu0 0
    %3361 = vmatprep.subr.bf16.mxu0 0
    %3362 = vmatpush1.bf16.msra.mxu0 0
    %3363 = vmatprep.subr.bf16.mxu0 0
    %3364 = vmatpush1.bf16.msra.mxu0 0
    %3365 = vmatprep.mubr.bf16.mxu0 0
    %3366 = vmatmul.mubr.bf16.gmra.mrb[0].mxu0 %v3331
    %v3367 = vpop.f32.mrb[0].mxu0
    %v3368 = vadd.f32 %v3317, %v3367
    %v3369 = vpop.f32.mrb[0].mxu0
    %v3370 = vpop.f32.mrb[0].mxu0
    %v3371 = vpop.f32.mrb[0].mxu0
    %3372 = vdwg.mxu0
    %v3373 = vxor.u32 %v3368, 2147483648
    %v3374 = vmul.f32 %v3373, 1.442695
    %v3375 = vpow.pop %v3374
    %v3376 = vadd.f32 %v3375, 1.0
    %v3377 = vrcp.pop %v3376
    %v3378 = vmul.f32 1.0, %v3377
    %v3379 = vmul.f32 %v3368, %v3378
    %v3380 = vld [vmem:[#allocation2 + $0x108] sm:$0xf]
    %v3381 = vld [vmem:[#allocation2 + $0x10c] sm:$0xf]
    %v3382 = vld [vmem:[#allocation2 + $0x110] sm:$0xf]
    %v3383 = vld [vmem:[#allocation2 + $0x114] sm:$0xf]
    %v3384 = vpack.c.bf16 %v3379, %v3379
    %v3385 = vld [vmem:[%s6 + $0x11] sm:$0x1]
    %v3386 = vlaneseq
    %v3387 = vshrl.u32 %v3386, 7
    %v3388 = vsub.s32 0, %v3387
    %v3389 = vrot.slane %v3385, %v3388
    %v3394 = vunpack.c.l.b16 %v3380
    %v3395 = vunpack.c.l.b16 %v3381
    %v3396 = vunpack.c.l.b16 %v3382
    %v3397 = vunpack.c.l.b16 %v3383
    %v3398 = vpack.c.b16 %v3395, %v3394
    %v3399 = vpack.c.b16 %v3397, %v3396
    %v3403 = vsel %vm130, %v3384, 0
    %3405 = vmatprep.subr.bf16.mxu0 0
    %3406 = vmatpush1.bf16.msra.mxu0 %v3398
    %3407 = vmatprep.subr.bf16.mxu0 0
    %3408 = vmatpush1.bf16.msra.mxu0 %v3399
    %3409 = vmatprep.subr.bf16.mxu0 0
    %3410 = vmatpush1.bf16.msra.mxu0 0
    %3411 = vmatprep.subr.bf16.mxu0 0
    %3412 = vmatpush1.bf16.msra.mxu0 0
    %3413 = vmatprep.subr.bf16.mxu0 0
    %3414 = vmatpush1.bf16.msra.mxu0 0
    %3415 = vmatprep.subr.bf16.mxu0 0
    %3416 = vmatpush1.bf16.msra.mxu0 0
    %3417 = vmatprep.subr.bf16.mxu0 0
    %3418 = vmatpush1.bf16.msra.mxu0 0
    %3419 = vmatprep.subr.bf16.mxu0 0
    %3420 = vmatpush1.bf16.msra.mxu0 0
    %3421 = vmatprep.subr.bf16.mxu0 0
    %3422 = vmatpush1.bf16.msra.mxu0 0
    %3423 = vmatprep.subr.bf16.mxu0 0
    %3424 = vmatpush1.bf16.msra.mxu0 0
    %3425 = vmatprep.subr.bf16.mxu0 0
    %3426 = vmatpush1.bf16.msra.mxu0 0
    %3427 = vmatprep.subr.bf16.mxu0 0
    %3428 = vmatpush1.bf16.msra.mxu0 0
    %3429 = vmatprep.subr.bf16.mxu0 0
    %3430 = vmatpush1.bf16.msra.mxu0 0
    %3431 = vmatprep.subr.bf16.mxu0 0
    %3432 = vmatpush1.bf16.msra.mxu0 0
    %3433 = vmatprep.subr.bf16.mxu0 0
    %3434 = vmatpush1.bf16.msra.mxu0 0
    %3435 = vmatprep.subr.bf16.mxu0 0
    %3436 = vmatpush1.bf16.msra.mxu0 0
    %3437 = vmatprep.mubr.bf16.mxu0 0
    %3438 = vmatmul.mubr.bf16.gmra.mrb[0].mxu0 %v3403
    %v3439 = vpop.f32.mrb[0].mxu0
    %v3440 = vadd.f32 %v3389, %v3439
    %v3441 = vpop.f32.mrb[0].mxu0
    %v3442 = vpop.f32.mrb[0].mxu0
    %v3443 = vpop.f32.mrb[0].mxu0
    %3444 = vdwg.mxu0
    %v3445 = vxor.u32 %v3440, 2147483648
    %v3446 = vmul.f32 %v3445, 1.442695
    %v3447 = vpow.pop %v3446
    %v3448 = vadd.f32 %v3447, 1.0
    %v3449 = vrcp.pop %v3448
    %v3450 = vmul.f32 1.0, %v3449
    %v3451 = vmul.f32 %v3440, %v3450
    %v3452 = vld [vmem:[#allocation2 + $0x118] sm:$0xf]
    %v3453 = vld [vmem:[#allocation2 + $0x11c] sm:$0xf]
    %v3454 = vpack.c.bf16 %v3451, %v3451
    %v3455 = vld [vmem:[%s6 + $0x12] sm:$0x1]
    %v3456 = vlaneseq
    %v3457 = vshrl.u32 %v3456, 7
    %v3458 = vsub.s32 0, %v3457
    %v3459 = vrot.slane %v3455, %v3458
    %v3462 = vunpack.c.l.b16 %v3452
    %v3463 = vunpack.c.l.b16 %v3453
    %v3464 = vpack.c.b16 %v3463, %v3462
    %v3467 = vsel %vm1282, %v3454, 0
    %3469 = vmatprep.subr.bf16.mxu0 0
    %3470 = vmatpush1.bf16.msra.mxu0 %v3464
    %3471 = vmatprep.subr.bf16.mxu0 0
    %3472 = vmatpush1.bf16.msra.mxu0 0
    %3473 = vmatprep.subr.bf16.mxu0 0
    %3474 = vmatpush1.bf16.msra.mxu0 0
    %3475 = vmatprep.subr.bf16.mxu0 0
    %3476 = vmatpush1.bf16.msra.mxu0 0
    %3477 = vmatprep.subr.bf16.mxu0 0
    %3478 = vmatpush1.bf16.msra.mxu0 0
    %3479 = vmatprep.subr.bf16.mxu0 0
    %3480 = vmatpush1.bf16.msra.mxu0 0
    %3481 = vmatprep.subr.bf16.mxu0 0
    %3482 = vmatpush1.bf16.msra.mxu0 0
    %3483 = vmatprep.subr.bf16.mxu0 0
    %3484 = vmatpush1.bf16.msra.mxu0 0
    %3485 = vmatprep.subr.bf16.mxu0 0
    %3486 = vmatpush1.bf16.msra.mxu0 0
    %3487 = vmatprep.subr.bf16.mxu0 0
    %3488 = vmatpush1.bf16.msra.mxu0 0
    %3489 = vmatprep.subr.bf16.mxu0 0
    %3490 = vmatpush1.bf16.msra.mxu0 0
    %3491 = vmatprep.subr.bf16.mxu0 0
    %3492 = vmatpush1.bf16.msra.mxu0 0
    %3493 = vmatprep.subr.bf16.mxu0 0
    %3494 = vmatpush1.bf16.msra.mxu0 0
    %3495 = vmatprep.subr.bf16.mxu0 0
    %3496 = vmatpush1.bf16.msra.mxu0 0
    %3497 = vmatprep.subr.bf16.mxu0 0
    %3498 = vmatpush1.bf16.msra.mxu0 0
    %3499 = vmatprep.subr.bf16.mxu0 0
    %3500 = vmatpush1.bf16.msra.mxu0 0
    %3501 = vmatprep.mubr.bf16.mxu0 0
    %3502 = vmatmul.mubr.bf16.gmra.mrb[0].mxu0 %v3467
    %v3503 = vpop.f32.mrb[0].mxu0
    %v3504 = vadd.f32 %v3459, %v3503
    %v3505 = vpop.f32.mrb[0].mxu0
    %v3506 = vpop.f32.mrb[0].mxu0
    %v3507 = vpop.f32.mrb[0].mxu0
    %3508 = vdwg.mxu0
    %3509 = vst [vmem:[#allocation5] sm:$0xff] %v3504
    // Predicated region
    $region34: #{tpu_custom_call.1} parent=1 // pred_check
      _
    $region35: #{tpu_custom_call.1} parent=1 // pred_check_branch
      %3511 = sbr.rel (0) target = $region37
    $region36: #{tpu_custom_call.1} parent=1 // pred_region
      %s3513 = ssub.s32 128, 128
      %3514 = vsyncadd [#allocation4], %s3513
      %s3516 = sshll.u32 [#allocation5], 4
      %s3517 = int_to_ptr.vmem [resolvable:$true] %s3516
      %3519 = dma.vmem_to_hbm [thread:$0]  %s3517, 128, %s7, [#allocation4]
    $region37: #{tpu_custom_call.1} parent=1 // pred_fallthru
      _
    // Predicated region
    $region38: #{tpu_custom_call.1} parent=1 // pred_check
      _
    $region39: #{tpu_custom_call.1} parent=1 // pred_check_branch
      %3521 = sbr.rel (0) target = $region41
    $region40: #{tpu_custom_call.1} parent=1 // pred_region
      %3522 = dma.done [#allocation4], 128
    $region41: #{tpu_custom_call.1} parent=1 // pred_fallthru
      _
    %3523 = vsyncpa [#allocation3], 1
    %3524 = vsyncpa [#allocation4], 1

</llo_original>
